<compile_context>
chip_gen: v7x
topology: tpu7x:2x2x1
jax: 0.10.0
libtpu: 0.0.40
codegen_flags: <defaults>
</compile_context>

<pallas_src>
import functools

import jax
import jax.numpy as jnp
from jax.experimental import pallas as pl
from jax.experimental.pallas import tpu as pltpu

_BN_EPS = 1e-5
_LANE = 128          # lane width: Cout padded to a multiple of this
_SUBLANE_BF16 = 16   # bf16 sublane packing: M padded to a multiple of this


def _round_up(x, m):
    return (x + m - 1) // m * m


# ---------------------------------------------------------------------------
# Kernels: one fused kernel per conv layer, grid-less, everything resident in
# VMEM (per-layer working set < ~2 MiB at these shapes).
# ---------------------------------------------------------------------------

def _conv_act_kernel(act, p_ref, w_ref, o_ref):
    """Conv-as-matmul (bf16 operands, f32 MXU accumulation) + activation."""
    acc = jnp.dot(p_ref[...], w_ref[...], preferred_element_type=jnp.float32)
    if act == "leaky":
        y = jnp.maximum(acc, 0.2 * acc)            # LeakyReLU(0.2)
    else:  # "sigmoid" -- exact reciprocal (perf-review correctness note)
        y = 1.0 / (1.0 + jnp.exp(-acc))
    o_ref[...] = y.astype(o_ref.dtype)


def _conv_bn_lrelu_kernel(m_real, p_ref, w_ref, g_ref, b_ref, o_ref):
    """Fused Conv + BatchNorm(batch statistics, eps=1e-5) + LeakyReLU(0.2).

    The whole (m_pad, cout_pad) f32 conv result stays in VMEM / vregs.  The
    per-channel sum goes through the MXU as a ones-row matmul; only the
    sum-of-squares stays on the VPU.  Zero-padded rows / channels contribute
    zero to both sums, so dividing by the real M keeps statistics exact.
    """
    acc = jnp.dot(p_ref[...], w_ref[...], preferred_element_type=jnp.float32)

    ones_row = jnp.ones((1, acc.shape[0]), jnp.float32)
    csum = jnp.dot(ones_row, acc, preferred_element_type=jnp.float32)   # (1, C) MXU
    csq = jnp.sum(acc * acc, axis=0, keepdims=True)                     # (1, C) VPU

    inv_m = 1.0 / m_real                      # static Python scalar
    mean = csum * inv_m
    var = jnp.maximum(csq * inv_m - mean * mean, 0.0)
    scale = g_ref[...] * jax.lax.rsqrt(var + _BN_EPS)
    shift = b_ref[...] - mean * scale

    y = acc * scale + shift                   # folded BN: one FMA
    o_ref[...] = jnp.maximum(y, 0.2 * y).astype(o_ref.dtype)


# ---------------------------------------------------------------------------
# Layer wrapper
# ---------------------------------------------------------------------------

def _im2col(x_bf16, kh_sz, kw_sz, stride, pad):
    """bf16 patch matrix (M, KH*KW*Cin), K ordered (kh, kw, cin).

    Pad + 16 static strided slices + stack + reshape: XLA fuses this into a
    single producer fusion feeding the pallas_call.
    """
    n, h, w, cin = x_bf16.shape
    x = x_bf16
    if pad > 0:
        x = jnp.pad(x, ((0, 0), (pad, pad), (pad, pad), (0, 0)))
    hp, wp = h + 2 * pad, w + 2 * pad
    ho = (hp - kh_sz) // stride + 1
    wo = (wp - kw_sz) // stride + 1
    cols = []
    for kh in range(kh_sz):
        for kw in range(kw_sz):
            cols.append(x[:, kh:kh + stride * ho:stride,
                          kw:kw + stride * wo:stride, :])
    patches = jnp.stack(cols, axis=3).reshape(n * ho * wo, kh_sz * kw_sz * cin)
    return patches, ho, wo


def _fused_conv_layer(x_nhwc, w_oihw, gamma, beta, *, stride, pad, use_bn,
                      act, out_dtype):
    """Conv2d(4x4, stride, pad, bias=False) [+ BatchNorm] + activation."""
    n = x_nhwc.shape[0]
    cout, cin, kh_sz, kw_sz = w_oihw.shape

    patches, ho, wo = _im2col(x_nhwc.astype(jnp.bfloat16), kh_sz, kw_sz,
                              stride, pad)
    m, k = patches.shape

    cout_pad = _round_up(cout, _LANE)          # lane-dense (unmasked) stores
    m_pad = _round_up(m, _SUBLANE_BF16)        # bf16 sublane packing
    if m_pad != m:
        patches = jnp.pad(patches, ((0, m_pad - m), (0, 0)))   # zero rows

    # PyTorch OIHW -> (KH, KW, Cin, Cout) -> (K, Cout_pad), bf16 for the MXU.
    wmat = jnp.transpose(w_oihw, (2, 3, 1, 0)).reshape(k, cout).astype(jnp.bfloat16)
    if cout_pad != cout:
        wmat = jnp.pad(wmat, ((0, 0), (0, cout_pad - cout)))    # zero channels

    vmem = pl.BlockSpec(memory_space=pltpu.MemorySpace.VMEM)
    out_shape = jax.ShapeDtypeStruct((m_pad, cout_pad), out_dtype)

    if use_bn:
        # TODO(synk): BatchNorm uses training-mode batch statistics (state of a
        # freshly constructed nn.Module); eval-mode running stats would simply
        # turn scale/shift into constants folded in the wrapper.
        g = jnp.pad(gamma, (0, cout_pad - cout)).reshape(1, cout_pad).astype(jnp.float32)
        b = jnp.pad(beta, (0, cout_pad - cout)).reshape(1, cout_pad).astype(jnp.float32)
        out = pl.pallas_call(
            functools.partial(_conv_bn_lrelu_kernel, m),
            in_specs=[vmem, vmem, vmem, vmem],
            out_specs=vmem,
            out_shape=out_shape,
        )(patches, wmat, g, b)
    else:
        out = pl.pallas_call(
            functools.partial(_conv_act_kernel, act),
            in_specs=[vmem, vmem],
            out_specs=vmem,
            out_shape=out_shape,
        )(patches, wmat)

    return out[:m, :cout].reshape(n, ho, wo, cout)


# ---------------------------------------------------------------------------
# Model
# ---------------------------------------------------------------------------

def init_discriminator_params(key, d_hidden, image_channel):
    """Synthetic DCGAN-style params: conv weights ~ N(0, 0.02) in PyTorch OIHW
    layout, BN gamma=1 / beta=0 (fresh nn.Module)."""
    specs = [
        (image_channel, d_hidden),
        (d_hidden, d_hidden * 2),
        (d_hidden * 2, d_hidden * 4),
        (d_hidden * 4, d_hidden * 8),
        (d_hidden * 8, 1),
    ]
    params = []
    for cin, cout in specs:
        key, sub = jax.random.split(key)
        w = jax.random.normal(sub, (cout, cin, 4, 4), jnp.float32) * 0.02
        params.append((w,
                       jnp.ones((cout,), jnp.float32),
                       jnp.zeros((cout,), jnp.float32)))
    return params


def discriminator_forward(params, x_nchw):
    # NCHW (PyTorch) -> NHWC (kernel layout)
    x = jnp.transpose(x_nchw, (0, 2, 3, 1))

    w1, g1, b1 = params[0]
    x = _fused_conv_layer(x, w1, g1, b1, stride=2, pad=1, use_bn=False,
                          act="leaky", out_dtype=jnp.bfloat16)
    for w, g, b in params[1:4]:
        x = _fused_conv_layer(x, w, g, b, stride=2, pad=1, use_bn=True,
                              act="leaky", out_dtype=jnp.bfloat16)
    w5, g5, b5 = params[4]
    x = _fused_conv_layer(x, w5, g5, b5, stride=1, pad=0, use_bn=False,
                          act="sigmoid", out_dtype=jnp.float32)

    # (N, 1, 1, 1) -> (N,)  == .view(-1, 1).squeeze(1)
    return x.reshape(-1)


if __name__ == "__main__":
    key = jax.random.PRNGKey(0)
    kp, kx = jax.random.split(key)

    d_hidden, image_channel = 4, 3
    batch = 2
    # Spatial size 64 is required by the architecture (64->32->16->8->4->1).
    x = jax.random.normal(kx, (batch, image_channel, 64, 64), jnp.float32)

    params = init_discriminator_params(kp, d_hidden, image_channel)
    fwd = jax.jit(discriminator_forward)
    out = jax.block_until_ready(fwd(params, x))

    assert out.shape == (batch,), out.shape
    assert bool(jnp.all(jnp.isfinite(out)))
    assert bool(jnp.all((out >= 0.0) & (out <= 1.0)))
    print("KERNEL_OK")
</pallas_src>

<mosaic_0001>
module attributes {stable_mosaic.version = 11 : i64} {
  func.func @_conv_act_kernel(%arg0: memref<2048x48xbf16, #tpu.memory_space<vmem>>, %arg1: memref<48x128xbf16, #tpu.memory_space<vmem>>, %arg2: memref<2048x128xbf16, #tpu.memory_space<vmem>>) attributes {dimension_semantics = [], scalar_prefetch = 0 : i64, scratch_operands = 0 : i64, tpu.core_type = #tpu.core_type<tc>} {
    %c0 = arith.constant 0 : index
    %c0_0 = arith.constant 0 : index
    %0 = vector.load %arg0[%c0, %c0_0] : memref<2048x48xbf16, #tpu.memory_space<vmem>>, vector<2048x48xbf16>
    %c0_1 = arith.constant 0 : index
    %c0_2 = arith.constant 0 : index
    %1 = vector.load %arg1[%c0_1, %c0_2] : memref<48x128xbf16, #tpu.memory_space<vmem>>, vector<48x128xbf16>
    %cst = arith.constant dense<0.000000e+00> : vector<2048x128xf32>
    %2 = tpu.matmul %0, %1, %cst {dimension_numbers = #tpu.dot_dimension_numbers<[1], [0], [0], [1], [0, 0, 1, 1], [], []>} : vector<2048x48xbf16>, vector<48x128xbf16>, vector<2048x128xf32> -> vector<2048x128xf32>
    %cst_3 = arith.constant 2.000000e-01 : f32
    %3 = vector.broadcast %cst_3 : f32 to vector<2048x128xf32>
    %4 = arith.mulf %3, %2 : vector<2048x128xf32>
    %5 = arith.maximumf %2, %4 : vector<2048x128xf32>
    %6 = arith.truncf %5 : vector<2048x128xf32> to vector<2048x128xbf16>
    %c0_4 = arith.constant 0 : index
    %c0_5 = arith.constant 0 : index
    %7 = vector.load %arg2[%c0_4, %c0_5] : memref<2048x128xbf16, #tpu.memory_space<vmem>>, vector<2048x128xbf16>
    tpu.vector_store %arg2[%c0_4, %c0_5], %6 {strides = array<i32>} : memref<2048x128xbf16, #tpu.memory_space<vmem>>, vector<2048x128xbf16>,
    return
  }
}

module attributes {stable_mosaic.version = 11 : i64} {
  func.func @_conv_bn_lrelu_kernel(%arg0: memref<512x64xbf16, #tpu.memory_space<vmem>>, %arg1: memref<64x128xbf16, #tpu.memory_space<vmem>>, %arg2: memref<1x128xf32, #tpu.memory_space<vmem>>, %arg3: memref<1x128xf32, #tpu.memory_space<vmem>>, %arg4: memref<512x128xbf16, #tpu.memory_space<vmem>>) attributes {dimension_semantics = [], scalar_prefetch = 0 : i64, scratch_operands = 0 : i64, tpu.core_type = #tpu.core_type<tc>} {
    %c0 = arith.constant 0 : index
    %c0_0 = arith.constant 0 : index
    %0 = vector.load %arg0[%c0, %c0_0] : memref<512x64xbf16, #tpu.memory_space<vmem>>, vector<512x64xbf16>
    %c0_1 = arith.constant 0 : index
    %c0_2 = arith.constant 0 : index
    %1 = vector.load %arg1[%c0_1, %c0_2] : memref<64x128xbf16, #tpu.memory_space<vmem>>, vector<64x128xbf16>
    %cst = arith.constant dense<0.000000e+00> : vector<512x128xf32>
    %2 = tpu.matmul %0, %1, %cst {dimension_numbers = #tpu.dot_dimension_numbers<[1], [0], [0], [1], [0, 0, 1, 1], [], []>} : vector<512x64xbf16>, vector<64x128xbf16>, vector<512x128xf32> -> vector<512x128xf32>
    %cst_3 = arith.constant 1.000000e+00 : f32
    %3 = vector.broadcast %cst_3 : f32 to vector<1x512xf32>
    %cst_4 = arith.constant dense<0.000000e+00> : vector<1x128xf32>
    %4 = tpu.matmul %3, %2, %cst_4 {dimension_numbers = #tpu.dot_dimension_numbers<[1], [0], [0], [1], [0, 0, 1, 1], [], []>} : vector<1x512xf32>, vector<512x128xf32>, vector<1x128xf32> -> vector<1x128xf32>
    %5 = arith.mulf %2, %2 : vector<512x128xf32>
    %cst_5 = arith.constant dense<0.000000e+00> : vector<128xf32>
    %6 = vector.multi_reduction <add>, %5, %cst_5 [0] : vector<512x128xf32> to vector<128xf32>
    %7 = vector.shape_cast %6 : vector<128xf32> to vector<1x128xf32>
    %cst_6 = arith.constant 0.001953125 : f32
    %8 = vector.broadcast %cst_6 : f32 to vector<1x128xf32>
    %9 = arith.mulf %4, %8 : vector<1x128xf32>
    %cst_7 = arith.constant 0.001953125 : f32
    %10 = vector.broadcast %cst_7 : f32 to vector<1x128xf32>
    %11 = arith.mulf %7, %10 : vector<1x128xf32>
    %12 = arith.mulf %9, %9 : vector<1x128xf32>
    %13 = arith.subf %11, %12 : vector<1x128xf32>
    %cst_8 = arith.constant 0.000000e+00 : f32
    %14 = vector.broadcast %cst_8 : f32 to vector<1x128xf32>
    %15 = arith.maximumf %13, %14 : vector<1x128xf32>
    %c0_9 = arith.constant 0 : index
    %c0_10 = arith.constant 0 : index
    %16 = vector.load %arg2[%c0_9, %c0_10] : memref<1x128xf32, #tpu.memory_space<vmem>>, vector<1x128xf32>
    %cst_11 = arith.constant 9.99999974E-6 : f32
    %17 = vector.broadcast %cst_11 : f32 to vector<1x128xf32>
    %18 = arith.addf %15, %17 : vector<1x128xf32>
    %19 = math.rsqrt %18 : vector<1x128xf32>
    %20 = arith.mulf %16, %19 : vector<1x128xf32>
    %c0_12 = arith.constant 0 : index
    %c0_13 = arith.constant 0 : index
    %21 = vector.load %arg3[%c0_12, %c0_13] : memref<1x128xf32, #tpu.memory_space<vmem>>, vector<1x128xf32>
    %22 = arith.mulf %9, %20 : vector<1x128xf32>
    %23 = arith.subf %21, %22 : vector<1x128xf32>
    %24 = vector.broadcast %20 : vector<1x128xf32> to vector<512x128xf32>
    %25 = arith.mulf %2, %24 : vector<512x128xf32>
    %26 = vector.broadcast %23 : vector<1x128xf32> to vector<512x128xf32>
    %27 = arith.addf %25, %26 : vector<512x128xf32>
    %cst_14 = arith.constant 2.000000e-01 : f32
    %28 = vector.broadcast %cst_14 : f32 to vector<512x128xf32>
    %29 = arith.mulf %28, %27 : vector<512x128xf32>
    %30 = arith.maximumf %27, %29 : vector<512x128xf32>
    %31 = arith.truncf %30 : vector<512x128xf32> to vector<512x128xbf16>
    %c0_15 = arith.constant 0 : index
    %c0_16 = arith.constant 0 : index
    %32 = vector.load %arg4[%c0_15, %c0_16] : memref<512x128xbf16, #tpu.memory_space<vmem>>, vector<512x128xbf16>
    tpu.vector_store %arg4[%c0_15, %c0_16], %31 {strides = array<i32>} : memref<512x128xbf16, #tpu.memory_space<vmem>>, vector<512x128xbf16>,
    return
  }
}

module attributes {stable_mosaic.version = 11 : i64} {
  func.func @_conv_bn_lrelu_kernel(%arg0: memref<128x128xbf16, #tpu.memory_space<vmem>>, %arg1: memref<128x128xbf16, #tpu.memory_space<vmem>>, %arg2: memref<1x128xf32, #tpu.memory_space<vmem>>, %arg3: memref<1x128xf32, #tpu.memory_space<vmem>>, %arg4: memref<128x128xbf16, #tpu.memory_space<vmem>>) attributes {dimension_semantics = [], scalar_prefetch = 0 : i64, scratch_operands = 0 : i64, tpu.core_type = #tpu.core_type<tc>} {
    %c0 = arith.constant 0 : index
    %c0_0 = arith.constant 0 : index
    %0 = vector.load %arg0[%c0, %c0_0] : memref<128x128xbf16, #tpu.memory_space<vmem>>, vector<128x128xbf16>
    %c0_1 = arith.constant 0 : index
    %c0_2 = arith.constant 0 : index
    %1 = vector.load %arg1[%c0_1, %c0_2] : memref<128x128xbf16, #tpu.memory_space<vmem>>, vector<128x128xbf16>
    %cst = arith.constant dense<0.000000e+00> : vector<128x128xf32>
    %2 = tpu.matmul %0, %1, %cst {dimension_numbers = #tpu.dot_dimension_numbers<[1], [0], [0], [1], [0, 0, 1, 1], [], []>} : vector<128x128xbf16>, vector<128x128xbf16>, vector<128x128xf32> -> vector<128x128xf32>
    %cst_3 = arith.constant 1.000000e+00 : f32
    %3 = vector.broadcast %cst_3 : f32 to vector<1x128xf32>
    %cst_4 = arith.constant dense<0.000000e+00> : vector<1x128xf32>
    %4 = tpu.matmul %3, %2, %cst_4 {dimension_numbers = #tpu.dot_dimension_numbers<[1], [0], [0], [1], [0, 0, 1, 1], [], []>} : vector<1x128xf32>, vector<128x128xf32>, vector<1x128xf32> -> vector<1x128xf32>
    %5 = arith.mulf %2, %2 : vector<128x128xf32>
    %cst_5 = arith.constant dense<0.000000e+00> : vector<128xf32>
    %6 = vector.multi_reduction <add>, %5, %cst_5 [0] : vector<128x128xf32> to vector<128xf32>
    %7 = vector.shape_cast %6 : vector<128xf32> to vector<1x128xf32>
    %cst_6 = arith.constant 7.812500e-03 : f32
    %8 = vector.broadcast %cst_6 : f32 to vector<1x128xf32>
    %9 = arith.mulf %4, %8 : vector<1x128xf32>
    %cst_7 = arith.constant 7.812500e-03 : f32
    %10 = vector.broadcast %cst_7 : f32 to vector<1x128xf32>
    %11 = arith.mulf %7, %10 : vector<1x128xf32>
    %12 = arith.mulf %9, %9 : vector<1x128xf32>
    %13 = arith.subf %11, %12 : vector<1x128xf32>
    %cst_8 = arith.constant 0.000000e+00 : f32
    %14 = vector.broadcast %cst_8 : f32 to vector<1x128xf32>
    %15 = arith.maximumf %13, %14 : vector<1x128xf32>
    %c0_9 = arith.constant 0 : index
    %c0_10 = arith.constant 0 : index
    %16 = vector.load %arg2[%c0_9, %c0_10] : memref<1x128xf32, #tpu.memory_space<vmem>>, vector<1x128xf32>
    %cst_11 = arith.constant 9.99999974E-6 : f32
    %17 = vector.broadcast %cst_11 : f32 to vector<1x128xf32>
    %18 = arith.addf %15, %17 : vector<1x128xf32>
    %19 = math.rsqrt %18 : vector<1x128xf32>
    %20 = arith.mulf %16, %19 : vector<1x128xf32>
    %c0_12 = arith.constant 0 : index
    %c0_13 = arith.constant 0 : index
    %21 = vector.load %arg3[%c0_12, %c0_13] : memref<1x128xf32, #tpu.memory_space<vmem>>, vector<1x128xf32>
    %22 = arith.mulf %9, %20 : vector<1x128xf32>
    %23 = arith.subf %21, %22 : vector<1x128xf32>
    %24 = vector.broadcast %20 : vector<1x128xf32> to vector<128x128xf32>
    %25 = arith.mulf %2, %24 : vector<128x128xf32>
    %26 = vector.broadcast %23 : vector<1x128xf32> to vector<128x128xf32>
    %27 = arith.addf %25, %26 : vector<128x128xf32>
    %cst_14 = arith.constant 2.000000e-01 : f32
    %28 = vector.broadcast %cst_14 : f32 to vector<128x128xf32>
    %29 = arith.mulf %28, %27 : vector<128x128xf32>
    %30 = arith.maximumf %27, %29 : vector<128x128xf32>
    %31 = arith.truncf %30 : vector<128x128xf32> to vector<128x128xbf16>
    %c0_15 = arith.constant 0 : index
    %c0_16 = arith.constant 0 : index
    %32 = vector.load %arg4[%c0_15, %c0_16] : memref<128x128xbf16, #tpu.memory_space<vmem>>, vector<128x128xbf16>
    tpu.vector_store %arg4[%c0_15, %c0_16], %31 {strides = array<i32>} : memref<128x128xbf16, #tpu.memory_space<vmem>>, vector<128x128xbf16>,
    return
  }
}

module attributes {stable_mosaic.version = 11 : i64} {
  func.func @_conv_bn_lrelu_kernel(%arg0: memref<32x256xbf16, #tpu.memory_space<vmem>>, %arg1: memref<256x128xbf16, #tpu.memory_space<vmem>>, %arg2: memref<1x128xf32, #tpu.memory_space<vmem>>, %arg3: memref<1x128xf32, #tpu.memory_space<vmem>>, %arg4: memref<32x128xbf16, #tpu.memory_space<vmem>>) attributes {dimension_semantics = [], scalar_prefetch = 0 : i64, scratch_operands = 0 : i64, tpu.core_type = #tpu.core_type<tc>} {
    %c0 = arith.constant 0 : index
    %c0_0 = arith.constant 0 : index
    %0 = vector.load %arg0[%c0, %c0_0] : memref<32x256xbf16, #tpu.memory_space<vmem>>, vector<32x256xbf16>
    %c0_1 = arith.constant 0 : index
    %c0_2 = arith.constant 0 : index
    %1 = vector.load %arg1[%c0_1, %c0_2] : memref<256x128xbf16, #tpu.memory_space<vmem>>, vector<256x128xbf16>
    %cst = arith.constant dense<0.000000e+00> : vector<32x128xf32>
    %2 = tpu.matmul %0, %1, %cst {dimension_numbers = #tpu.dot_dimension_numbers<[1], [0], [0], [1], [0, 0, 1, 1], [], []>} : vector<32x256xbf16>, vector<256x128xbf16>, vector<32x128xf32> -> vector<32x128xf32>
    %cst_3 = arith.constant 1.000000e+00 : f32
    %3 = vector.broadcast %cst_3 : f32 to vector<1x32xf32>
    %cst_4 = arith.constant dense<0.000000e+00> : vector<1x128xf32>
    %4 = tpu.matmul %3, %2, %cst_4 {dimension_numbers = #tpu.dot_dimension_numbers<[1], [0], [0], [1], [0, 0, 1, 1], [], []>} : vector<1x32xf32>, vector<32x128xf32>, vector<1x128xf32> -> vector<1x128xf32>
    %5 = arith.mulf %2, %2 : vector<32x128xf32>
    %cst_5 = arith.constant dense<0.000000e+00> : vector<128xf32>
    %6 = vector.multi_reduction <add>, %5, %cst_5 [0] : vector<32x128xf32> to vector<128xf32>
    %7 = vector.shape_cast %6 : vector<128xf32> to vector<1x128xf32>
    %cst_6 = arith.constant 3.125000e-02 : f32
    %8 = vector.broadcast %cst_6 : f32 to vector<1x128xf32>
    %9 = arith.mulf %4, %8 : vector<1x128xf32>
    %cst_7 = arith.constant 3.125000e-02 : f32
    %10 = vector.broadcast %cst_7 : f32 to vector<1x128xf32>
    %11 = arith.mulf %7, %10 : vector<1x128xf32>
    %12 = arith.mulf %9, %9 : vector<1x128xf32>
    %13 = arith.subf %11, %12 : vector<1x128xf32>
    %cst_8 = arith.constant 0.000000e+00 : f32
    %14 = vector.broadcast %cst_8 : f32 to vector<1x128xf32>
    %15 = arith.maximumf %13, %14 : vector<1x128xf32>
    %c0_9 = arith.constant 0 : index
    %c0_10 = arith.constant 0 : index
    %16 = vector.load %arg2[%c0_9, %c0_10] : memref<1x128xf32, #tpu.memory_space<vmem>>, vector<1x128xf32>
    %cst_11 = arith.constant 9.99999974E-6 : f32
    %17 = vector.broadcast %cst_11 : f32 to vector<1x128xf32>
    %18 = arith.addf %15, %17 : vector<1x128xf32>
    %19 = math.rsqrt %18 : vector<1x128xf32>
    %20 = arith.mulf %16, %19 : vector<1x128xf32>
    %c0_12 = arith.constant 0 : index
    %c0_13 = arith.constant 0 : index
    %21 = vector.load %arg3[%c0_12, %c0_13] : memref<1x128xf32, #tpu.memory_space<vmem>>, vector<1x128xf32>
    %22 = arith.mulf %9, %20 : vector<1x128xf32>
    %23 = arith.subf %21, %22 : vector<1x128xf32>
    %24 = vector.broadcast %20 : vector<1x128xf32> to vector<32x128xf32>
    %25 = arith.mulf %2, %24 : vector<32x128xf32>
    %26 = vector.broadcast %23 : vector<1x128xf32> to vector<32x128xf32>
    %27 = arith.addf %25, %26 : vector<32x128xf32>
    %cst_14 = arith.constant 2.000000e-01 : f32
    %28 = vector.broadcast %cst_14 : f32 to vector<32x128xf32>
    %29 = arith.mulf %28, %27 : vector<32x128xf32>
    %30 = arith.maximumf %27, %29 : vector<32x128xf32>
    %31 = arith.truncf %30 : vector<32x128xf32> to vector<32x128xbf16>
    %c0_15 = arith.constant 0 : index
    %c0_16 = arith.constant 0 : index
    %32 = vector.load %arg4[%c0_15, %c0_16] : memref<32x128xbf16, #tpu.memory_space<vmem>>, vector<32x128xbf16>
    tpu.vector_store %arg4[%c0_15, %c0_16], %31 {strides = array<i32>} : memref<32x128xbf16, #tpu.memory_space<vmem>>, vector<32x128xbf16>,
    return
  }
}

module attributes {stable_mosaic.version = 11 : i64} {
  func.func @_conv_act_kernel(%arg0: memref<16x512xbf16, #tpu.memory_space<vmem>>, %arg1: memref<512x128xbf16, #tpu.memory_space<vmem>>, %arg2: memref<16x128xf32, #tpu.memory_space<vmem>>) attributes {dimension_semantics = [], scalar_prefetch = 0 : i64, scratch_operands = 0 : i64, tpu.core_type = #tpu.core_type<tc>} {
    %c0 = arith.constant 0 : index
    %c0_0 = arith.constant 0 : index
    %0 = vector.load %arg0[%c0, %c0_0] : memref<16x512xbf16, #tpu.memory_space<vmem>>, vector<16x512xbf16>
    %c0_1 = arith.constant 0 : index
    %c0_2 = arith.constant 0 : index
    %1 = vector.load %arg1[%c0_1, %c0_2] : memref<512x128xbf16, #tpu.memory_space<vmem>>, vector<512x128xbf16>
    %cst = arith.constant dense<0.000000e+00> : vector<16x128xf32>
    %2 = tpu.matmul %0, %1, %cst {dimension_numbers = #tpu.dot_dimension_numbers<[1], [0], [0], [1], [0, 0, 1, 1], [], []>} : vector<16x512xbf16>, vector<512x128xbf16>, vector<16x128xf32> -> vector<16x128xf32>
    %cst_3 = arith.constant 0.000000e+00 : f32
    %3 = vector.broadcast %cst_3 : f32 to vector<16x128xf32>
    %4 = arith.subf %3, %2 : vector<16x128xf32>
    %5 = math.exp %4 : vector<16x128xf32>
    %cst_4 = arith.constant 1.000000e+00 : f32
    %6 = vector.broadcast %cst_4 : f32 to vector<16x128xf32>
    %7 = arith.addf %6, %5 : vector<16x128xf32>
    %cst_5 = arith.constant 1.000000e+00 : f32
    %8 = vector.broadcast %cst_5 : f32 to vector<16x128xf32>
    %9 = arith.divf %8, %7 : vector<16x128xf32>
    %c0_6 = arith.constant 0 : index
    %c0_7 = arith.constant 0 : index
    %10 = vector.load %arg2[%c0_6, %c0_7] : memref<16x128xf32, #tpu.memory_space<vmem>>, vector<16x128xf32>
    tpu.vector_store %arg2[%c0_6, %c0_7], %9 {strides = array<i32>} : memref<16x128xf32, #tpu.memory_space<vmem>>, vector<16x128xf32>,
    return
  }
}

</mosaic_0001>

<llo_original>
// kernel: discriminator_forward.5
$region0: #{discriminator_forward.5}
  #allocation0 [shape = 'u32[]', space=smem, size = 0x4, offset = 0x4, fixed_abs, tag = 'smem constant byte address 0x4 - core index']
  #allocation1 [shape = 'u32[144,128]{1,0:T(1,128)}', space=vmem, size = 0x12000, scoped, tag = 'internal scratch']
  %s0 = inlined_call_operand.vmem [shape: bf16[2048,48], index: 0, kind: input, shape index: {}]
  %s1 = inlined_call_operand.vmem [shape: bf16[48,128], index: 1, kind: input, shape index: {}]
  %s2 = inlined_call_operand.vmem [shape: bf16[2048,128], index: 2, kind: output, shape index: {}]
  %s3 = sld [smem:[#allocation0]]
  $region18: #{discriminator_forward.5} parent=0
    _
  %s5 = ssub.s32 1, %s3
  %s6 = scalar_select 0, %s5, %s3
  // Predicated region
  $region2: #{discriminator_forward.5} parent=0 // pred_check
    _
  $region3: #{discriminator_forward.5} parent=0 // pred_check_branch
    %8 = sbr.rel (0) target = $region5
  $region4: #{discriminator_forward.5} parent=0 // pred_region
    _
  $region5: #{discriminator_forward.5} parent=0 // pred_fallthru
    _
  // Predicated region
  $region6: #{discriminator_forward.5} parent=0 // pred_check
    _
  $region7: #{discriminator_forward.5} parent=0 // pred_check_branch
    %10 = sbr.rel (0) target = $region9
  $region8: #{discriminator_forward.5} parent=0 // pred_region
    _
  $region9: #{discriminator_forward.5} parent=0 // pred_fallthru
    _
  %v12 = vld [vmem:[%s0] sm:$0xf]
  %v13 = vld [vmem:[%s0 + $0x4] sm:$0xf]
  %v14 = vld [vmem:[%s0 + $0x8] sm:$0xf]
  %v15 = vld [vmem:[%s0 + $0xc] sm:$0xf]
  %v16 = vld [vmem:[%s0 + $0x10] sm:$0xf]
  %v17 = vld [vmem:[%s0 + $0x14] sm:$0xf]
  %v18 = vld [vmem:[%s0 + $0x18] sm:$0xf]
  %v19 = vld [vmem:[%s0 + $0x1c] sm:$0xf]
  %v20 = vld [vmem:[%s0 + $0x20] sm:$0xf]
  %v21 = vld [vmem:[%s0 + $0x24] sm:$0xf]
  %v22 = vld [vmem:[%s0 + $0x28] sm:$0xf]
  %v23 = vld [vmem:[%s0 + $0x2c] sm:$0xf]
  %v24 = vld [vmem:[%s0 + $0x30] sm:$0xf]
  %v25 = vld [vmem:[%s0 + $0x34] sm:$0xf]
  %v26 = vld [vmem:[%s0 + $0x38] sm:$0xf]
  %v27 = vld [vmem:[%s0 + $0x3c] sm:$0xf]
  %v28 = vld [vmem:[%s0 + $0x40] sm:$0xf]
  %v29 = vld [vmem:[%s0 + $0x44] sm:$0xf]
  %v30 = vld [vmem:[%s0 + $0x48] sm:$0xf]
  %v31 = vld [vmem:[%s0 + $0x4c] sm:$0xf]
  %v32 = vld [vmem:[%s0 + $0x50] sm:$0xf]
  %v33 = vld [vmem:[%s0 + $0x54] sm:$0xf]
  %v34 = vld [vmem:[%s0 + $0x58] sm:$0xf]
  %v35 = vld [vmem:[%s0 + $0x5c] sm:$0xf]
  %v36 = vld [vmem:[%s0 + $0x60] sm:$0xf]
  %v37 = vld [vmem:[%s0 + $0x64] sm:$0xf]
  %v38 = vld [vmem:[%s0 + $0x68] sm:$0xf]
  %v39 = vld [vmem:[%s0 + $0x6c] sm:$0xf]
  %v40 = vld [vmem:[%s0 + $0x70] sm:$0xf]
  %v41 = vld [vmem:[%s0 + $0x74] sm:$0xf]
  %v42 = vld [vmem:[%s0 + $0x78] sm:$0xf]
  %v43 = vld [vmem:[%s0 + $0x7c] sm:$0xf]
  %v44 = vld [vmem:[%s0 + $0x80] sm:$0xf]
  %v45 = vld [vmem:[%s0 + $0x84] sm:$0xf]
  %v46 = vld [vmem:[%s0 + $0x88] sm:$0xf]
  %v47 = vld [vmem:[%s0 + $0x8c] sm:$0xf]
  %v48 = vld [vmem:[%s0 + $0x90] sm:$0xf]
  %v49 = vld [vmem:[%s0 + $0x94] sm:$0xf]
  %v50 = vld [vmem:[%s0 + $0x98] sm:$0xf]
  %v51 = vld [vmem:[%s0 + $0x9c] sm:$0xf]
  %v52 = vld [vmem:[%s0 + $0xa0] sm:$0xf]
  %v53 = vld [vmem:[%s0 + $0xa4] sm:$0xf]
  %v54 = vld [vmem:[%s0 + $0xa8] sm:$0xf]
  %v55 = vld [vmem:[%s0 + $0xac] sm:$0xf]
  %v56 = vld [vmem:[%s0 + $0xb0] sm:$0xf]
  %v57 = vld [vmem:[%s0 + $0xb4] sm:$0xf]
  %v58 = vld [vmem:[%s0 + $0xb8] sm:$0xf]
  %v59 = vld [vmem:[%s0 + $0xbc] sm:$0xf]
  %v60 = vld [vmem:[%s0 + $0xc0] sm:$0xf]
  %v61 = vld [vmem:[%s0 + $0xc4] sm:$0xf]
  %v62 = vld [vmem:[%s0 + $0xc8] sm:$0xf]
  %v63 = vld [vmem:[%s0 + $0xcc] sm:$0xf]
  %v64 = vld [vmem:[%s0 + $0xd0] sm:$0xf]
  %v65 = vld [vmem:[%s0 + $0xd4] sm:$0xf]
  %v66 = vld [vmem:[%s0 + $0xd8] sm:$0xf]
  %v67 = vld [vmem:[%s0 + $0xdc] sm:$0xf]
  %v68 = vld [vmem:[%s0 + $0xe0] sm:$0xf]
  %v69 = vld [vmem:[%s0 + $0xe4] sm:$0xf]
  %v70 = vld [vmem:[%s0 + $0xe8] sm:$0xf]
  %v71 = vld [vmem:[%s0 + $0xec] sm:$0xf]
  %v72 = vld [vmem:[%s0 + $0xf0] sm:$0xf]
  %v73 = vld [vmem:[%s0 + $0xf4] sm:$0xf]
  %v74 = vld [vmem:[%s0 + $0xf8] sm:$0xf]
  %v75 = vld [vmem:[%s0 + $0xfc] sm:$0xf]
  %v76 = vld [vmem:[%s0 + $0x100] sm:$0xf]
  %v77 = vld [vmem:[%s0 + $0x104] sm:$0xf]
  %v78 = vld [vmem:[%s0 + $0x108] sm:$0xf]
  %v79 = vld [vmem:[%s0 + $0x10c] sm:$0xf]
  %v80 = vld [vmem:[%s0 + $0x110] sm:$0xf]
  %v81 = vld [vmem:[%s0 + $0x114] sm:$0xf]
  %v82 = vld [vmem:[%s0 + $0x118] sm:$0xf]
  %v83 = vld [vmem:[%s0 + $0x11c] sm:$0xf]
  %v84 = vld [vmem:[%s0 + $0x120] sm:$0xf]
  %v85 = vld [vmem:[%s0 + $0x124] sm:$0xf]
  %v86 = vld [vmem:[%s0 + $0x128] sm:$0xf]
  %v87 = vld [vmem:[%s0 + $0x12c] sm:$0xf]
  %v88 = vld [vmem:[%s0 + $0x130] sm:$0xf]
  %v89 = vld [vmem:[%s0 + $0x134] sm:$0xf]
  %v90 = vld [vmem:[%s0 + $0x138] sm:$0xf]
  %v91 = vld [vmem:[%s0 + $0x13c] sm:$0xf]
  %v92 = vld [vmem:[%s0 + $0x140] sm:$0xf]
  %v93 = vld [vmem:[%s0 + $0x144] sm:$0xf]
  %v94 = vld [vmem:[%s0 + $0x148] sm:$0xf]
  %v95 = vld [vmem:[%s0 + $0x14c] sm:$0xf]
  %v96 = vld [vmem:[%s0 + $0x150] sm:$0xf]
  %v97 = vld [vmem:[%s0 + $0x154] sm:$0xf]
  %v98 = vld [vmem:[%s0 + $0x158] sm:$0xf]
  %v99 = vld [vmem:[%s0 + $0x15c] sm:$0xf]
  %v100 = vld [vmem:[%s0 + $0x160] sm:$0xf]
  %v101 = vld [vmem:[%s0 + $0x164] sm:$0xf]
  %v102 = vld [vmem:[%s0 + $0x168] sm:$0xf]
  %v103 = vld [vmem:[%s0 + $0x16c] sm:$0xf]
  %v104 = vld [vmem:[%s0 + $0x170] sm:$0xf]
  %v105 = vld [vmem:[%s0 + $0x174] sm:$0xf]
  %v106 = vld [vmem:[%s0 + $0x178] sm:$0xf]
  %v107 = vld [vmem:[%s0 + $0x17c] sm:$0xf]
  %v108 = vld [vmem:[%s0 + $0x180] sm:$0xf]
  %v109 = vld [vmem:[%s0 + $0x184] sm:$0xf]
  %v110 = vld [vmem:[%s0 + $0x188] sm:$0xf]
  %v111 = vld [vmem:[%s0 + $0x18c] sm:$0xf]
  %v112 = vld [vmem:[%s0 + $0x190] sm:$0xf]
  %v113 = vld [vmem:[%s0 + $0x194] sm:$0xf]
  %v114 = vld [vmem:[%s0 + $0x198] sm:$0xf]
  %v115 = vld [vmem:[%s0 + $0x19c] sm:$0xf]
  %v116 = vld [vmem:[%s0 + $0x1a0] sm:$0xf]
  %v117 = vld [vmem:[%s0 + $0x1a4] sm:$0xf]
  %v118 = vld [vmem:[%s0 + $0x1a8] sm:$0xf]
  %v119 = vld [vmem:[%s0 + $0x1ac] sm:$0xf]
  %v120 = vld [vmem:[%s0 + $0x1b0] sm:$0xf]
  %v121 = vld [vmem:[%s0 + $0x1b4] sm:$0xf]
  %v122 = vld [vmem:[%s0 + $0x1b8] sm:$0xf]
  %v123 = vld [vmem:[%s0 + $0x1bc] sm:$0xf]
  %v124 = vld [vmem:[%s0 + $0x1c0] sm:$0xf]
  %v125 = vld [vmem:[%s0 + $0x1c4] sm:$0xf]
  %v126 = vld [vmem:[%s0 + $0x1c8] sm:$0xf]
  %v127 = vld [vmem:[%s0 + $0x1cc] sm:$0xf]
  %v128 = vld [vmem:[%s0 + $0x1d0] sm:$0xf]
  %v129 = vld [vmem:[%s0 + $0x1d4] sm:$0xf]
  %v130 = vld [vmem:[%s0 + $0x1d8] sm:$0xf]
  %v131 = vld [vmem:[%s0 + $0x1dc] sm:$0xf]
  %v132 = vld [vmem:[%s0 + $0x1e0] sm:$0xf]
  %v133 = vld [vmem:[%s0 + $0x1e4] sm:$0xf]
  %v134 = vld [vmem:[%s0 + $0x1e8] sm:$0xf]
  %v135 = vld [vmem:[%s0 + $0x1ec] sm:$0xf]
  %v136 = vld [vmem:[%s0 + $0x1f0] sm:$0xf]
  %v137 = vld [vmem:[%s0 + $0x1f4] sm:$0xf]
  %v138 = vld [vmem:[%s0 + $0x1f8] sm:$0xf]
  %v139 = vld [vmem:[%s0 + $0x1fc] sm:$0xf]
  %v140 = vld [vmem:[%s0 + $0x200] sm:$0xf]
  %v141 = vld [vmem:[%s0 + $0x204] sm:$0xf]
  %v142 = vld [vmem:[%s0 + $0x208] sm:$0xf]
  %v143 = vld [vmem:[%s0 + $0x20c] sm:$0xf]
  %v144 = vld [vmem:[%s0 + $0x210] sm:$0xf]
  %v145 = vld [vmem:[%s0 + $0x214] sm:$0xf]
  %v146 = vld [vmem:[%s0 + $0x218] sm:$0xf]
  %v147 = vld [vmem:[%s0 + $0x21c] sm:$0xf]
  %v148 = vld [vmem:[%s0 + $0x220] sm:$0xf]
  %v149 = vld [vmem:[%s0 + $0x224] sm:$0xf]
  %v150 = vld [vmem:[%s0 + $0x228] sm:$0xf]
  %v151 = vld [vmem:[%s0 + $0x22c] sm:$0xf]
  %v152 = vld [vmem:[%s0 + $0x230] sm:$0xf]
  %v153 = vld [vmem:[%s0 + $0x234] sm:$0xf]
  %v154 = vld [vmem:[%s0 + $0x238] sm:$0xf]
  %v155 = vld [vmem:[%s0 + $0x23c] sm:$0xf]
  %v156 = vld [vmem:[%s0 + $0x240] sm:$0xf]
  %v157 = vld [vmem:[%s0 + $0x244] sm:$0xf]
  %v158 = vld [vmem:[%s0 + $0x248] sm:$0xf]
  %v159 = vld [vmem:[%s0 + $0x24c] sm:$0xf]
  %v160 = vld [vmem:[%s0 + $0x250] sm:$0xf]
  %v161 = vld [vmem:[%s0 + $0x254] sm:$0xf]
  %v162 = vld [vmem:[%s0 + $0x258] sm:$0xf]
  %v163 = vld [vmem:[%s0 + $0x25c] sm:$0xf]
  %v164 = vld [vmem:[%s0 + $0x260] sm:$0xf]
  %v165 = vld [vmem:[%s0 + $0x264] sm:$0xf]
  %v166 = vld [vmem:[%s0 + $0x268] sm:$0xf]
  %v167 = vld [vmem:[%s0 + $0x26c] sm:$0xf]
  %v168 = vld [vmem:[%s0 + $0x270] sm:$0xf]
  %v169 = vld [vmem:[%s0 + $0x274] sm:$0xf]
  %v170 = vld [vmem:[%s0 + $0x278] sm:$0xf]
  %v171 = vld [vmem:[%s0 + $0x27c] sm:$0xf]
  %v172 = vld [vmem:[%s0 + $0x280] sm:$0xf]
  %v173 = vld [vmem:[%s0 + $0x284] sm:$0xf]
  %v174 = vld [vmem:[%s0 + $0x288] sm:$0xf]
  %v175 = vld [vmem:[%s0 + $0x28c] sm:$0xf]
  %v176 = vld [vmem:[%s0 + $0x290] sm:$0xf]
  %v177 = vld [vmem:[%s0 + $0x294] sm:$0xf]
  %v178 = vld [vmem:[%s0 + $0x298] sm:$0xf]
  %v179 = vld [vmem:[%s0 + $0x29c] sm:$0xf]
  %v180 = vld [vmem:[%s0 + $0x2a0] sm:$0xf]
  %v181 = vld [vmem:[%s0 + $0x2a4] sm:$0xf]
  %v182 = vld [vmem:[%s0 + $0x2a8] sm:$0xf]
  %v183 = vld [vmem:[%s0 + $0x2ac] sm:$0xf]
  %v184 = vld [vmem:[%s0 + $0x2b0] sm:$0xf]
  %v185 = vld [vmem:[%s0 + $0x2b4] sm:$0xf]
  %v186 = vld [vmem:[%s0 + $0x2b8] sm:$0xf]
  %v187 = vld [vmem:[%s0 + $0x2bc] sm:$0xf]
  %v188 = vld [vmem:[%s0 + $0x2c0] sm:$0xf]
  %v189 = vld [vmem:[%s0 + $0x2c4] sm:$0xf]
  %v190 = vld [vmem:[%s0 + $0x2c8] sm:$0xf]
  %v191 = vld [vmem:[%s0 + $0x2cc] sm:$0xf]
  %v192 = vld [vmem:[%s0 + $0x2d0] sm:$0xf]
  %v193 = vld [vmem:[%s0 + $0x2d4] sm:$0xf]
  %v194 = vld [vmem:[%s0 + $0x2d8] sm:$0xf]
  %v195 = vld [vmem:[%s0 + $0x2dc] sm:$0xf]
  %v196 = vld [vmem:[%s0 + $0x2e0] sm:$0xf]
  %v197 = vld [vmem:[%s0 + $0x2e4] sm:$0xf]
  %v198 = vld [vmem:[%s0 + $0x2e8] sm:$0xf]
  %v199 = vld [vmem:[%s0 + $0x2ec] sm:$0xf]
  %v200 = vld [vmem:[%s0 + $0x2f0] sm:$0xf]
  %v201 = vld [vmem:[%s0 + $0x2f4] sm:$0xf]
  %v202 = vld [vmem:[%s0 + $0x2f8] sm:$0xf]
  %v203 = vld [vmem:[%s0 + $0x2fc] sm:$0xf]
  %v204 = vld [vmem:[%s0 + $0x300] sm:$0xf]
  %v205 = vld [vmem:[%s0 + $0x304] sm:$0xf]
  %v206 = vld [vmem:[%s0 + $0x308] sm:$0xf]
  %v207 = vld [vmem:[%s0 + $0x30c] sm:$0xf]
  %v208 = vld [vmem:[%s0 + $0x310] sm:$0xf]
  %v209 = vld [vmem:[%s0 + $0x314] sm:$0xf]
  %v210 = vld [vmem:[%s0 + $0x318] sm:$0xf]
  %v211 = vld [vmem:[%s0 + $0x31c] sm:$0xf]
  %v212 = vld [vmem:[%s0 + $0x320] sm:$0xf]
  %v213 = vld [vmem:[%s0 + $0x324] sm:$0xf]
  %v214 = vld [vmem:[%s0 + $0x328] sm:$0xf]
  %v215 = vld [vmem:[%s0 + $0x32c] sm:$0xf]
  %v216 = vld [vmem:[%s0 + $0x330] sm:$0xf]
  %v217 = vld [vmem:[%s0 + $0x334] sm:$0xf]
  %v218 = vld [vmem:[%s0 + $0x338] sm:$0xf]
  %v219 = vld [vmem:[%s0 + $0x33c] sm:$0xf]
  %v220 = vld [vmem:[%s0 + $0x340] sm:$0xf]
  %v221 = vld [vmem:[%s0 + $0x344] sm:$0xf]
  %v222 = vld [vmem:[%s0 + $0x348] sm:$0xf]
  %v223 = vld [vmem:[%s0 + $0x34c] sm:$0xf]
  %v224 = vld [vmem:[%s0 + $0x350] sm:$0xf]
  %v225 = vld [vmem:[%s0 + $0x354] sm:$0xf]
  %v226 = vld [vmem:[%s0 + $0x358] sm:$0xf]
  %v227 = vld [vmem:[%s0 + $0x35c] sm:$0xf]
  %v228 = vld [vmem:[%s0 + $0x360] sm:$0xf]
  %v229 = vld [vmem:[%s0 + $0x364] sm:$0xf]
  %v230 = vld [vmem:[%s0 + $0x368] sm:$0xf]
  %v231 = vld [vmem:[%s0 + $0x36c] sm:$0xf]
  %v232 = vld [vmem:[%s0 + $0x370] sm:$0xf]
  %v233 = vld [vmem:[%s0 + $0x374] sm:$0xf]
  %v234 = vld [vmem:[%s0 + $0x378] sm:$0xf]
  %v235 = vld [vmem:[%s0 + $0x37c] sm:$0xf]
  %v236 = vld [vmem:[%s0 + $0x380] sm:$0xf]
  %v237 = vld [vmem:[%s0 + $0x384] sm:$0xf]
  %v238 = vld [vmem:[%s0 + $0x388] sm:$0xf]
  %v239 = vld [vmem:[%s0 + $0x38c] sm:$0xf]
  %v240 = vld [vmem:[%s0 + $0x390] sm:$0xf]
  %v241 = vld [vmem:[%s0 + $0x394] sm:$0xf]
  %v242 = vld [vmem:[%s0 + $0x398] sm:$0xf]
  %v243 = vld [vmem:[%s0 + $0x39c] sm:$0xf]
  %v244 = vld [vmem:[%s0 + $0x3a0] sm:$0xf]
  %v245 = vld [vmem:[%s0 + $0x3a4] sm:$0xf]
  %v246 = vld [vmem:[%s0 + $0x3a8] sm:$0xf]
  %v247 = vld [vmem:[%s0 + $0x3ac] sm:$0xf]
  %v248 = vld [vmem:[%s0 + $0x3b0] sm:$0xf]
  %v249 = vld [vmem:[%s0 + $0x3b4] sm:$0xf]
  %v250 = vld [vmem:[%s0 + $0x3b8] sm:$0xf]
  %v251 = vld [vmem:[%s0 + $0x3bc] sm:$0xf]
  %v252 = vld [vmem:[%s0 + $0x3c0] sm:$0xf]
  %v253 = vld [vmem:[%s0 + $0x3c4] sm:$0xf]
  %v254 = vld [vmem:[%s0 + $0x3c8] sm:$0xf]
  %v255 = vld [vmem:[%s0 + $0x3cc] sm:$0xf]
  %v256 = vld [vmem:[%s0 + $0x3d0] sm:$0xf]
  %v257 = vld [vmem:[%s0 + $0x3d4] sm:$0xf]
  %v258 = vld [vmem:[%s0 + $0x3d8] sm:$0xf]
  %v259 = vld [vmem:[%s0 + $0x3dc] sm:$0xf]
  %v260 = vld [vmem:[%s0 + $0x3e0] sm:$0xf]
  %v261 = vld [vmem:[%s0 + $0x3e4] sm:$0xf]
  %v262 = vld [vmem:[%s0 + $0x3e8] sm:$0xf]
  %v263 = vld [vmem:[%s0 + $0x3ec] sm:$0xf]
  %v264 = vld [vmem:[%s0 + $0x3f0] sm:$0xf]
  %v265 = vld [vmem:[%s0 + $0x3f4] sm:$0xf]
  %v266 = vld [vmem:[%s0 + $0x3f8] sm:$0xf]
  %v267 = vld [vmem:[%s0 + $0x3fc] sm:$0xf]
  %v268 = vld [vmem:[%s1] sm:$0xf]
  %v269 = vld [vmem:[%s1 + $0x4] sm:$0xf]
  %v270 = vld [vmem:[%s1 + $0x8] sm:$0xf]
  %v271 = vld [vmem:[%s1 + $0xc] sm:$0xf]
  %v272 = vld [vmem:[%s1 + $0x10] sm:$0xf]
  %v273 = vld [vmem:[%s1 + $0x14] sm:$0xf]
  %v530 = vunpack.c.l.b16 %v12
  %v531 = vunpack.c.l.b16 %v13
  %v532 = vunpack.c.l.b16 %v14
  %v533 = vunpack.c.l.b16 %v15
  %v534 = vunpack.c.l.b16 %v16
  %v535 = vunpack.c.l.b16 %v17
  %v536 = vunpack.c.l.b16 %v18
  %v537 = vunpack.c.l.b16 %v19
  %v538 = vunpack.c.l.b16 %v20
  %v539 = vunpack.c.l.b16 %v21
  %v540 = vunpack.c.l.b16 %v22
  %v541 = vunpack.c.l.b16 %v23
  %v542 = vunpack.c.l.b16 %v24
  %v543 = vunpack.c.l.b16 %v25
  %v544 = vunpack.c.l.b16 %v26
  %v545 = vunpack.c.l.b16 %v27
  %v546 = vunpack.c.l.b16 %v28
  %v547 = vunpack.c.l.b16 %v29
  %v548 = vunpack.c.l.b16 %v30
  %v549 = vunpack.c.l.b16 %v31
  %v550 = vunpack.c.l.b16 %v32
  %v551 = vunpack.c.l.b16 %v33
  %v552 = vunpack.c.l.b16 %v34
  %v553 = vunpack.c.l.b16 %v35
  %v554 = vunpack.c.l.b16 %v36
  %v555 = vunpack.c.l.b16 %v37
  %v556 = vunpack.c.l.b16 %v38
  %v557 = vunpack.c.l.b16 %v39
  %v558 = vunpack.c.l.b16 %v40
  %v559 = vunpack.c.l.b16 %v41
  %v560 = vunpack.c.l.b16 %v42
  %v561 = vunpack.c.l.b16 %v43
  %v562 = vunpack.c.l.b16 %v44
  %v563 = vunpack.c.l.b16 %v45
  %v564 = vunpack.c.l.b16 %v46
  %v565 = vunpack.c.l.b16 %v47
  %v566 = vunpack.c.l.b16 %v48
  %v567 = vunpack.c.l.b16 %v49
  %v568 = vunpack.c.l.b16 %v50
  %v569 = vunpack.c.l.b16 %v51
  %v570 = vunpack.c.l.b16 %v52
  %v571 = vunpack.c.l.b16 %v53
  %v572 = vunpack.c.l.b16 %v54
  %v573 = vunpack.c.l.b16 %v55
  %v574 = vunpack.c.l.b16 %v56
  %v575 = vunpack.c.l.b16 %v57
  %v576 = vunpack.c.l.b16 %v58
  %v577 = vunpack.c.l.b16 %v59
  %v578 = vunpack.c.l.b16 %v60
  %v579 = vunpack.c.l.b16 %v61
  %v580 = vunpack.c.l.b16 %v62
  %v581 = vunpack.c.l.b16 %v63
  %v582 = vunpack.c.l.b16 %v64
  %v583 = vunpack.c.l.b16 %v65
  %v584 = vunpack.c.l.b16 %v66
  %v585 = vunpack.c.l.b16 %v67
  %v586 = vunpack.c.l.b16 %v68
  %v587 = vunpack.c.l.b16 %v69
  %v588 = vunpack.c.l.b16 %v70
  %v589 = vunpack.c.l.b16 %v71
  %v590 = vunpack.c.l.b16 %v72
  %v591 = vunpack.c.l.b16 %v73
  %v592 = vunpack.c.l.b16 %v74
  %v593 = vunpack.c.l.b16 %v75
  %v594 = vunpack.c.l.b16 %v76
  %v595 = vunpack.c.l.b16 %v77
  %v596 = vunpack.c.l.b16 %v78
  %v597 = vunpack.c.l.b16 %v79
  %v598 = vunpack.c.l.b16 %v80
  %v599 = vunpack.c.l.b16 %v81
  %v600 = vunpack.c.l.b16 %v82
  %v601 = vunpack.c.l.b16 %v83
  %v602 = vunpack.c.l.b16 %v84
  %v603 = vunpack.c.l.b16 %v85
  %v604 = vunpack.c.l.b16 %v86
  %v605 = vunpack.c.l.b16 %v87
  %v606 = vunpack.c.l.b16 %v88
  %v607 = vunpack.c.l.b16 %v89
  %v608 = vunpack.c.l.b16 %v90
  %v609 = vunpack.c.l.b16 %v91
  %v610 = vunpack.c.l.b16 %v92
  %v611 = vunpack.c.l.b16 %v93
  %v612 = vunpack.c.l.b16 %v94
  %v613 = vunpack.c.l.b16 %v95
  %v614 = vunpack.c.l.b16 %v96
  %v615 = vunpack.c.l.b16 %v97
  %v616 = vunpack.c.l.b16 %v98
  %v617 = vunpack.c.l.b16 %v99
  %v618 = vunpack.c.l.b16 %v100
  %v619 = vunpack.c.l.b16 %v101
  %v620 = vunpack.c.l.b16 %v102
  %v621 = vunpack.c.l.b16 %v103
  %v622 = vunpack.c.l.b16 %v104
  %v623 = vunpack.c.l.b16 %v105
  %v624 = vunpack.c.l.b16 %v106
  %v625 = vunpack.c.l.b16 %v107
  %v626 = vunpack.c.l.b16 %v108
  %v627 = vunpack.c.l.b16 %v109
  %v628 = vunpack.c.l.b16 %v110
  %v629 = vunpack.c.l.b16 %v111
  %v630 = vunpack.c.l.b16 %v112
  %v631 = vunpack.c.l.b16 %v113
  %v632 = vunpack.c.l.b16 %v114
  %v633 = vunpack.c.l.b16 %v115
  %v634 = vunpack.c.l.b16 %v116
  %v635 = vunpack.c.l.b16 %v117
  %v636 = vunpack.c.l.b16 %v118
  %v637 = vunpack.c.l.b16 %v119
  %v638 = vunpack.c.l.b16 %v120
  %v639 = vunpack.c.l.b16 %v121
  %v640 = vunpack.c.l.b16 %v122
  %v641 = vunpack.c.l.b16 %v123
  %v642 = vunpack.c.l.b16 %v124
  %v643 = vunpack.c.l.b16 %v125
  %v644 = vunpack.c.l.b16 %v126
  %v645 = vunpack.c.l.b16 %v127
  %v646 = vunpack.c.l.b16 %v128
  %v647 = vunpack.c.l.b16 %v129
  %v648 = vunpack.c.l.b16 %v130
  %v649 = vunpack.c.l.b16 %v131
  %v650 = vunpack.c.l.b16 %v132
  %v651 = vunpack.c.l.b16 %v133
  %v652 = vunpack.c.l.b16 %v134
  %v653 = vunpack.c.l.b16 %v135
  %v654 = vunpack.c.l.b16 %v136
  %v655 = vunpack.c.l.b16 %v137
  %v656 = vunpack.c.l.b16 %v138
  %v657 = vunpack.c.l.b16 %v139
  %v658 = vunpack.c.l.b16 %v140
  %v659 = vunpack.c.l.b16 %v141
  %v660 = vunpack.c.l.b16 %v142
  %v661 = vunpack.c.l.b16 %v143
  %v662 = vunpack.c.l.b16 %v144
  %v663 = vunpack.c.l.b16 %v145
  %v664 = vunpack.c.l.b16 %v146
  %v665 = vunpack.c.l.b16 %v147
  %v666 = vunpack.c.l.b16 %v148
  %v667 = vunpack.c.l.b16 %v149
  %v668 = vunpack.c.l.b16 %v150
  %v669 = vunpack.c.l.b16 %v151
  %v670 = vunpack.c.l.b16 %v152
  %v671 = vunpack.c.l.b16 %v153
  %v672 = vunpack.c.l.b16 %v154
  %v673 = vunpack.c.l.b16 %v155
  %v674 = vunpack.c.l.b16 %v156
  %v675 = vunpack.c.l.b16 %v157
  %v676 = vunpack.c.l.b16 %v158
  %v677 = vunpack.c.l.b16 %v159
  %v678 = vunpack.c.l.b16 %v160
  %v679 = vunpack.c.l.b16 %v161
  %v680 = vunpack.c.l.b16 %v162
  %v681 = vunpack.c.l.b16 %v163
  %v682 = vunpack.c.l.b16 %v164
  %v683 = vunpack.c.l.b16 %v165
  %v684 = vunpack.c.l.b16 %v166
  %v685 = vunpack.c.l.b16 %v167
  %v686 = vunpack.c.l.b16 %v168
  %v687 = vunpack.c.l.b16 %v169
  %v688 = vunpack.c.l.b16 %v170
  %v689 = vunpack.c.l.b16 %v171
  %v690 = vunpack.c.l.b16 %v172
  %v691 = vunpack.c.l.b16 %v173
  %v692 = vunpack.c.l.b16 %v174
  %v693 = vunpack.c.l.b16 %v175
  %v694 = vunpack.c.l.b16 %v176
  %v695 = vunpack.c.l.b16 %v177
  %v696 = vunpack.c.l.b16 %v178
  %v697 = vunpack.c.l.b16 %v179
  %v698 = vunpack.c.l.b16 %v180
  %v699 = vunpack.c.l.b16 %v181
  %v700 = vunpack.c.l.b16 %v182
  %v701 = vunpack.c.l.b16 %v183
  %v702 = vunpack.c.l.b16 %v184
  %v703 = vunpack.c.l.b16 %v185
  %v704 = vunpack.c.l.b16 %v186
  %v705 = vunpack.c.l.b16 %v187
  %v706 = vunpack.c.l.b16 %v188
  %v707 = vunpack.c.l.b16 %v189
  %v708 = vunpack.c.l.b16 %v190
  %v709 = vunpack.c.l.b16 %v191
  %v710 = vunpack.c.l.b16 %v192
  %v711 = vunpack.c.l.b16 %v193
  %v712 = vunpack.c.l.b16 %v194
  %v713 = vunpack.c.l.b16 %v195
  %v714 = vunpack.c.l.b16 %v196
  %v715 = vunpack.c.l.b16 %v197
  %v716 = vunpack.c.l.b16 %v198
  %v717 = vunpack.c.l.b16 %v199
  %v718 = vunpack.c.l.b16 %v200
  %v719 = vunpack.c.l.b16 %v201
  %v720 = vunpack.c.l.b16 %v202
  %v721 = vunpack.c.l.b16 %v203
  %v722 = vunpack.c.l.b16 %v204
  %v723 = vunpack.c.l.b16 %v205
  %v724 = vunpack.c.l.b16 %v206
  %v725 = vunpack.c.l.b16 %v207
  %v726 = vunpack.c.l.b16 %v208
  %v727 = vunpack.c.l.b16 %v209
  %v728 = vunpack.c.l.b16 %v210
  %v729 = vunpack.c.l.b16 %v211
  %v730 = vunpack.c.l.b16 %v212
  %v731 = vunpack.c.l.b16 %v213
  %v732 = vunpack.c.l.b16 %v214
  %v733 = vunpack.c.l.b16 %v215
  %v734 = vunpack.c.l.b16 %v216
  %v735 = vunpack.c.l.b16 %v217
  %v736 = vunpack.c.l.b16 %v218
  %v737 = vunpack.c.l.b16 %v219
  %v738 = vunpack.c.l.b16 %v220
  %v739 = vunpack.c.l.b16 %v221
  %v740 = vunpack.c.l.b16 %v222
  %v741 = vunpack.c.l.b16 %v223
  %v742 = vunpack.c.l.b16 %v224
  %v743 = vunpack.c.l.b16 %v225
  %v744 = vunpack.c.l.b16 %v226
  %v745 = vunpack.c.l.b16 %v227
  %v746 = vunpack.c.l.b16 %v228
  %v747 = vunpack.c.l.b16 %v229
  %v748 = vunpack.c.l.b16 %v230
  %v749 = vunpack.c.l.b16 %v231
  %v750 = vunpack.c.l.b16 %v232
  %v751 = vunpack.c.l.b16 %v233
  %v752 = vunpack.c.l.b16 %v234
  %v753 = vunpack.c.l.b16 %v235
  %v754 = vunpack.c.l.b16 %v236
  %v755 = vunpack.c.l.b16 %v237
  %v756 = vunpack.c.l.b16 %v238
  %v757 = vunpack.c.l.b16 %v239
  %v758 = vunpack.c.l.b16 %v240
  %v759 = vunpack.c.l.b16 %v241
  %v760 = vunpack.c.l.b16 %v242
  %v761 = vunpack.c.l.b16 %v243
  %v762 = vunpack.c.l.b16 %v244
  %v763 = vunpack.c.l.b16 %v245
  %v764 = vunpack.c.l.b16 %v246
  %v765 = vunpack.c.l.b16 %v247
  %v766 = vunpack.c.l.b16 %v248
  %v767 = vunpack.c.l.b16 %v249
  %v768 = vunpack.c.l.b16 %v250
  %v769 = vunpack.c.l.b16 %v251
  %v770 = vunpack.c.l.b16 %v252
  %v771 = vunpack.c.l.b16 %v253
  %v772 = vunpack.c.l.b16 %v254
  %v773 = vunpack.c.l.b16 %v255
  %v774 = vunpack.c.l.b16 %v256
  %v775 = vunpack.c.l.b16 %v257
  %v776 = vunpack.c.l.b16 %v258
  %v777 = vunpack.c.l.b16 %v259
  %v778 = vunpack.c.l.b16 %v260
  %v779 = vunpack.c.l.b16 %v261
  %v780 = vunpack.c.l.b16 %v262
  %v781 = vunpack.c.l.b16 %v263
  %v782 = vunpack.c.l.b16 %v264
  %v783 = vunpack.c.l.b16 %v265
  %v784 = vunpack.c.l.b16 %v266
  %v785 = vunpack.c.l.b16 %v267
  %v786 = vpack.c.b16 %v531, %v530
  %v787 = vpack.c.b16 %v533, %v532
  %v788 = vpack.c.b16 %v535, %v534
  %v789 = vpack.c.b16 %v537, %v536
  %v790 = vpack.c.b16 %v539, %v538
  %v791 = vpack.c.b16 %v541, %v540
  %v792 = vpack.c.b16 %v543, %v542
  %v793 = vpack.c.b16 %v545, %v544
  %v794 = vpack.c.b16 %v547, %v546
  %v795 = vpack.c.b16 %v549, %v548
  %v796 = vpack.c.b16 %v551, %v550
  %v797 = vpack.c.b16 %v553, %v552
  %v798 = vpack.c.b16 %v555, %v554
  %v799 = vpack.c.b16 %v557, %v556
  %v800 = vpack.c.b16 %v559, %v558
  %v801 = vpack.c.b16 %v561, %v560
  %v802 = vpack.c.b16 %v563, %v562
  %v803 = vpack.c.b16 %v565, %v564
  %v804 = vpack.c.b16 %v567, %v566
  %v805 = vpack.c.b16 %v569, %v568
  %v806 = vpack.c.b16 %v571, %v570
  %v807 = vpack.c.b16 %v573, %v572
  %v808 = vpack.c.b16 %v575, %v574
  %v809 = vpack.c.b16 %v577, %v576
  %v810 = vpack.c.b16 %v579, %v578
  %v811 = vpack.c.b16 %v581, %v580
  %v812 = vpack.c.b16 %v583, %v582
  %v813 = vpack.c.b16 %v585, %v584
  %v814 = vpack.c.b16 %v587, %v586
  %v815 = vpack.c.b16 %v589, %v588
  %v816 = vpack.c.b16 %v591, %v590
  %v817 = vpack.c.b16 %v593, %v592
  %v818 = vpack.c.b16 %v595, %v594
  %v819 = vpack.c.b16 %v597, %v596
  %v820 = vpack.c.b16 %v599, %v598
  %v821 = vpack.c.b16 %v601, %v600
  %v822 = vpack.c.b16 %v603, %v602
  %v823 = vpack.c.b16 %v605, %v604
  %v824 = vpack.c.b16 %v607, %v606
  %v825 = vpack.c.b16 %v609, %v608
  %v826 = vpack.c.b16 %v611, %v610
  %v827 = vpack.c.b16 %v613, %v612
  %v828 = vpack.c.b16 %v615, %v614
  %v829 = vpack.c.b16 %v617, %v616
  %v830 = vpack.c.b16 %v619, %v618
  %v831 = vpack.c.b16 %v621, %v620
  %v832 = vpack.c.b16 %v623, %v622
  %v833 = vpack.c.b16 %v625, %v624
  %v834 = vpack.c.b16 %v627, %v626
  %v835 = vpack.c.b16 %v629, %v628
  %v836 = vpack.c.b16 %v631, %v630
  %v837 = vpack.c.b16 %v633, %v632
  %v838 = vpack.c.b16 %v635, %v634
  %v839 = vpack.c.b16 %v637, %v636
  %v840 = vpack.c.b16 %v639, %v638
  %v841 = vpack.c.b16 %v641, %v640
  %v842 = vpack.c.b16 %v643, %v642
  %v843 = vpack.c.b16 %v645, %v644
  %v844 = vpack.c.b16 %v647, %v646
  %v845 = vpack.c.b16 %v649, %v648
  %v846 = vpack.c.b16 %v651, %v650
  %v847 = vpack.c.b16 %v653, %v652
  %v848 = vpack.c.b16 %v655, %v654
  %v849 = vpack.c.b16 %v657, %v656
  %v850 = vpack.c.b16 %v659, %v658
  %v851 = vpack.c.b16 %v661, %v660
  %v852 = vpack.c.b16 %v663, %v662
  %v853 = vpack.c.b16 %v665, %v664
  %v854 = vpack.c.b16 %v667, %v666
  %v855 = vpack.c.b16 %v669, %v668
  %v856 = vpack.c.b16 %v671, %v670
  %v857 = vpack.c.b16 %v673, %v672
  %v858 = vpack.c.b16 %v675, %v674
  %v859 = vpack.c.b16 %v677, %v676
  %v860 = vpack.c.b16 %v679, %v678
  %v861 = vpack.c.b16 %v681, %v680
  %v862 = vpack.c.b16 %v683, %v682
  %v863 = vpack.c.b16 %v685, %v684
  %v864 = vpack.c.b16 %v687, %v686
  %v865 = vpack.c.b16 %v689, %v688
  %v866 = vpack.c.b16 %v691, %v690
  %v867 = vpack.c.b16 %v693, %v692
  %v868 = vpack.c.b16 %v695, %v694
  %v869 = vpack.c.b16 %v697, %v696
  %v870 = vpack.c.b16 %v699, %v698
  %v871 = vpack.c.b16 %v701, %v700
  %v872 = vpack.c.b16 %v703, %v702
  %v873 = vpack.c.b16 %v705, %v704
  %v874 = vpack.c.b16 %v707, %v706
  %v875 = vpack.c.b16 %v709, %v708
  %v876 = vpack.c.b16 %v711, %v710
  %v877 = vpack.c.b16 %v713, %v712
  %v878 = vpack.c.b16 %v715, %v714
  %v879 = vpack.c.b16 %v717, %v716
  %v880 = vpack.c.b16 %v719, %v718
  %v881 = vpack.c.b16 %v721, %v720
  %v882 = vpack.c.b16 %v723, %v722
  %v883 = vpack.c.b16 %v725, %v724
  %v884 = vpack.c.b16 %v727, %v726
  %v885 = vpack.c.b16 %v729, %v728
  %v886 = vpack.c.b16 %v731, %v730
  %v887 = vpack.c.b16 %v733, %v732
  %v888 = vpack.c.b16 %v735, %v734
  %v889 = vpack.c.b16 %v737, %v736
  %v890 = vpack.c.b16 %v739, %v738
  %v891 = vpack.c.b16 %v741, %v740
  %v892 = vpack.c.b16 %v743, %v742
  %v893 = vpack.c.b16 %v745, %v744
  %v894 = vpack.c.b16 %v747, %v746
  %v895 = vpack.c.b16 %v749, %v748
  %v896 = vpack.c.b16 %v751, %v750
  %v897 = vpack.c.b16 %v753, %v752
  %v898 = vpack.c.b16 %v755, %v754
  %v899 = vpack.c.b16 %v757, %v756
  %v900 = vpack.c.b16 %v759, %v758
  %v901 = vpack.c.b16 %v761, %v760
  %v902 = vpack.c.b16 %v763, %v762
  %v903 = vpack.c.b16 %v765, %v764
  %v904 = vpack.c.b16 %v767, %v766
  %v905 = vpack.c.b16 %v769, %v768
  %v906 = vpack.c.b16 %v771, %v770
  %v907 = vpack.c.b16 %v773, %v772
  %v908 = vpack.c.b16 %v775, %v774
  %v909 = vpack.c.b16 %v777, %v776
  %v910 = vpack.c.b16 %v779, %v778
  %v911 = vpack.c.b16 %v781, %v780
  %v912 = vpack.c.b16 %v783, %v782
  %v913 = vpack.c.b16 %v785, %v784
  %v920 = vunpack.c.l.b16 %v268
  %v921 = vunpack.c.l.b16 %v269
  %v922 = vunpack.c.l.b16 %v270
  %v923 = vunpack.c.l.b16 %v271
  %v924 = vunpack.c.l.b16 %v272
  %v925 = vunpack.c.l.b16 %v273
  %v926 = vpack.c.b16 %v921, %v920
  %v927 = vpack.c.b16 %v923, %v922
  %v928 = vpack.c.b16 %v925, %v924
  %vm932 = vcmask 392192
  %v934 = vsel %vm932, %v786, 0
  %v937 = vsel %vm932, %v787, 0
  %v940 = vsel %vm932, %v788, 0
  %v943 = vsel %vm932, %v789, 0
  %v946 = vsel %vm932, %v790, 0
  %v949 = vsel %vm932, %v791, 0
  %v952 = vsel %vm932, %v792, 0
  %v955 = vsel %vm932, %v793, 0
  %v958 = vsel %vm932, %v794, 0
  %v961 = vsel %vm932, %v795, 0
  %v964 = vsel %vm932, %v796, 0
  %v967 = vsel %vm932, %v797, 0
  %v970 = vsel %vm932, %v798, 0
  %v973 = vsel %vm932, %v799, 0
  %v976 = vsel %vm932, %v800, 0
  %v979 = vsel %vm932, %v801, 0
  %v982 = vsel %vm932, %v802, 0
  %v985 = vsel %vm932, %v803, 0
  %v988 = vsel %vm932, %v804, 0
  %v991 = vsel %vm932, %v805, 0
  %v994 = vsel %vm932, %v806, 0
  %v997 = vsel %vm932, %v807, 0
  %v1000 = vsel %vm932, %v808, 0
  %v1003 = vsel %vm932, %v809, 0
  %v1006 = vsel %vm932, %v810, 0
  %v1009 = vsel %vm932, %v811, 0
  %v1012 = vsel %vm932, %v812, 0
  %v1015 = vsel %vm932, %v813, 0
  %v1018 = vsel %vm932, %v814, 0
  %v1021 = vsel %vm932, %v815, 0
  %v1024 = vsel %vm932, %v816, 0
  %v1027 = vsel %vm932, %v817, 0
  %v1030 = vsel %vm932, %v818, 0
  %v1033 = vsel %vm932, %v819, 0
  %v1036 = vsel %vm932, %v820, 0
  %v1039 = vsel %vm932, %v821, 0
  %v1042 = vsel %vm932, %v822, 0
  %v1045 = vsel %vm932, %v823, 0
  %v1048 = vsel %vm932, %v824, 0
  %v1051 = vsel %vm932, %v825, 0
  %v1054 = vsel %vm932, %v826, 0
  %v1057 = vsel %vm932, %v827, 0
  %v1060 = vsel %vm932, %v828, 0
  %v1063 = vsel %vm932, %v829, 0
  %v1066 = vsel %vm932, %v830, 0
  %v1069 = vsel %vm932, %v831, 0
  %v1072 = vsel %vm932, %v832, 0
  %v1075 = vsel %vm932, %v833, 0
  %v1078 = vsel %vm932, %v834, 0
  %v1081 = vsel %vm932, %v835, 0
  %v1084 = vsel %vm932, %v836, 0
  %v1087 = vsel %vm932, %v837, 0
  %v1090 = vsel %vm932, %v838, 0
  %v1093 = vsel %vm932, %v839, 0
  %v1096 = vsel %vm932, %v840, 0
  %v1099 = vsel %vm932, %v841, 0
  %v1102 = vsel %vm932, %v842, 0
  %v1105 = vsel %vm932, %v843, 0
  %v1108 = vsel %vm932, %v844, 0
  %v1111 = vsel %vm932, %v845, 0
  %v1114 = vsel %vm932, %v846, 0
  %v1117 = vsel %vm932, %v847, 0
  %v1120 = vsel %vm932, %v848, 0
  %v1123 = vsel %vm932, %v849, 0
  %v1126 = vsel %vm932, %v850, 0
  %v1129 = vsel %vm932, %v851, 0
  %v1132 = vsel %vm932, %v852, 0
  %v1135 = vsel %vm932, %v853, 0
  %v1138 = vsel %vm932, %v854, 0
  %v1141 = vsel %vm932, %v855, 0
  %v1144 = vsel %vm932, %v856, 0
  %v1147 = vsel %vm932, %v857, 0
  %v1150 = vsel %vm932, %v858, 0
  %v1153 = vsel %vm932, %v859, 0
  %v1156 = vsel %vm932, %v860, 0
  %v1159 = vsel %vm932, %v861, 0
  %v1162 = vsel %vm932, %v862, 0
  %v1165 = vsel %vm932, %v863, 0
  %v1168 = vsel %vm932, %v864, 0
  %v1171 = vsel %vm932, %v865, 0
  %v1174 = vsel %vm932, %v866, 0
  %v1177 = vsel %vm932, %v867, 0
  %v1180 = vsel %vm932, %v868, 0
  %v1183 = vsel %vm932, %v869, 0
  %v1186 = vsel %vm932, %v870, 0
  %v1189 = vsel %vm932, %v871, 0
  %v1192 = vsel %vm932, %v872, 0
  %v1195 = vsel %vm932, %v873, 0
  %v1198 = vsel %vm932, %v874, 0
  %v1201 = vsel %vm932, %v875, 0
  %v1204 = vsel %vm932, %v876, 0
  %v1207 = vsel %vm932, %v877, 0
  %v1210 = vsel %vm932, %v878, 0
  %v1213 = vsel %vm932, %v879, 0
  %v1216 = vsel %vm932, %v880, 0
  %v1219 = vsel %vm932, %v881, 0
  %v1222 = vsel %vm932, %v882, 0
  %v1225 = vsel %vm932, %v883, 0
  %v1228 = vsel %vm932, %v884, 0
  %v1231 = vsel %vm932, %v885, 0
  %v1234 = vsel %vm932, %v886, 0
  %v1237 = vsel %vm932, %v887, 0
  %v1240 = vsel %vm932, %v888, 0
  %v1243 = vsel %vm932, %v889, 0
  %v1246 = vsel %vm932, %v890, 0
  %v1249 = vsel %vm932, %v891, 0
  %v1252 = vsel %vm932, %v892, 0
  %v1255 = vsel %vm932, %v893, 0
  %v1258 = vsel %vm932, %v894, 0
  %v1261 = vsel %vm932, %v895, 0
  %v1264 = vsel %vm932, %v896, 0
  %v1267 = vsel %vm932, %v897, 0
  %v1270 = vsel %vm932, %v898, 0
  %v1273 = vsel %vm932, %v899, 0
  %v1276 = vsel %vm932, %v900, 0
  %v1279 = vsel %vm932, %v901, 0
  %v1282 = vsel %vm932, %v902, 0
  %v1285 = vsel %vm932, %v903, 0
  %v1288 = vsel %vm932, %v904, 0
  %v1291 = vsel %vm932, %v905, 0
  %v1294 = vsel %vm932, %v906, 0
  %v1297 = vsel %vm932, %v907, 0
  %v1300 = vsel %vm932, %v908, 0
  %v1303 = vsel %vm932, %v909, 0
  %v1306 = vsel %vm932, %v910, 0
  %v1309 = vsel %vm932, %v911, 0
  %v1312 = vsel %vm932, %v912, 0
  %v1315 = vsel %vm932, %v913, 0
  %1317 = vmatprep.subr.bf16.mxu0 0
  %1318 = vmatpush1.bf16.msra.mxu0 %v926
  %1319 = vmatprep.subr.bf16.mxu0 0
  %1320 = vmatpush1.bf16.msra.mxu0 %v927
  %1321 = vmatprep.subr.bf16.mxu0 0
  %1322 = vmatpush1.bf16.msra.mxu0 %v928
  %1323 = vmatprep.subr.bf16.mxu0 0
  %1324 = vmatpush1.bf16.msra.mxu0 0
  %1325 = vmatprep.subr.bf16.mxu0 0
  %1326 = vmatpush1.bf16.msra.mxu0 0
  %1327 = vmatprep.subr.bf16.mxu0 0
  %1328 = vmatpush1.bf16.msra.mxu0 0
  %1329 = vmatprep.subr.bf16.mxu0 0
  %1330 = vmatpush1.bf16.msra.mxu0 0
  %1331 = vmatprep.subr.bf16.mxu0 0
  %1332 = vmatpush1.bf16.msra.mxu0 0
  %1333 = vmatprep.subr.bf16.mxu0 0
  %1334 = vmatpush1.bf16.msra.mxu0 0
  %1335 = vmatprep.subr.bf16.mxu0 0
  %1336 = vmatpush1.bf16.msra.mxu0 0
  %1337 = vmatprep.subr.bf16.mxu0 0
  %1338 = vmatpush1.bf16.msra.mxu0 0
  %1339 = vmatprep.subr.bf16.mxu0 0
  %1340 = vmatpush1.bf16.msra.mxu0 0
  %1341 = vmatprep.subr.bf16.mxu0 0
  %1342 = vmatpush1.bf16.msra.mxu0 0
  %1343 = vmatprep.subr.bf16.mxu0 0
  %1344 = vmatpush1.bf16.msra.mxu0 0
  %1345 = vmatprep.subr.bf16.mxu0 0
  %1346 = vmatpush1.bf16.msra.mxu0 0
  %1347 = vmatprep.subr.bf16.mxu0 0
  %1348 = vmatpush1.bf16.msra.mxu0 0
  %1349 = vmatprep.mubr.bf16.mxu0 0
  %1350 = vmatmul.mubr.bf16.gmra.mrb[0].mxu0 %v934
  %v1351 = vpop.f32.mrb[0].mxu0
  %v1352 = vadd.f32 0.0, %v1351
  %v1353 = vpop.f32.mrb[0].mxu0
  %v1354 = vpop.f32.mrb[0].mxu0
  %v1355 = vadd.f32 0.0, %v1354
  %v1356 = vpop.f32.mrb[0].mxu0
  %1357 = vmatprep.mubr.bf16.mxu0 0
  %1358 = vmatmul.mubr.bf16.gmra.mrb[0].mxu0 %v937
  %v1359 = vpop.f32.mrb[0].mxu0
  %v1360 = vadd.f32 0.0, %v1359
  %v1361 = vpop.f32.mrb[0].mxu0
  %v1362 = vpop.f32.mrb[0].mxu0
  %v1363 = vadd.f32 0.0, %v1362
  %v1364 = vpop.f32.mrb[0].mxu0
  %1365 = vmatprep.mubr.bf16.mxu0 0
  %1366 = vmatmul.mubr.bf16.gmra.mrb[0].mxu0 %v940
  %v1367 = vpop.f32.mrb[0].mxu0
  %v1368 = vadd.f32 0.0, %v1367
  %v1369 = vpop.f32.mrb[0].mxu0
  %v1370 = vpop.f32.mrb[0].mxu0
  %v1371 = vadd.f32 0.0, %v1370
  %v1372 = vpop.f32.mrb[0].mxu0
  %1373 = vmatprep.mubr.bf16.mxu0 0
  %1374 = vmatmul.mubr.bf16.gmra.mrb[0].mxu0 %v943
  %v1375 = vpop.f32.mrb[0].mxu0
  %v1376 = vadd.f32 0.0, %v1375
  %v1377 = vpop.f32.mrb[0].mxu0
  %v1378 = vpop.f32.mrb[0].mxu0
  %v1379 = vadd.f32 0.0, %v1378
  %v1380 = vpop.f32.mrb[0].mxu0
  %1381 = vmatprep.mubr.bf16.mxu0 0
  %1382 = vmatmul.mubr.bf16.gmra.mrb[0].mxu0 %v946
  %v1383 = vpop.f32.mrb[0].mxu0
  %v1384 = vadd.f32 0.0, %v1383
  %v1385 = vpop.f32.mrb[0].mxu0
  %v1386 = vpop.f32.mrb[0].mxu0
  %v1387 = vadd.f32 0.0, %v1386
  %v1388 = vpop.f32.mrb[0].mxu0
  %1389 = vmatprep.mubr.bf16.mxu0 0
  %1390 = vmatmul.mubr.bf16.gmra.mrb[0].mxu0 %v949
  %v1391 = vpop.f32.mrb[0].mxu0
  %v1392 = vadd.f32 0.0, %v1391
  %v1393 = vpop.f32.mrb[0].mxu0
  %v1394 = vpop.f32.mrb[0].mxu0
  %v1395 = vadd.f32 0.0, %v1394
  %v1396 = vpop.f32.mrb[0].mxu0
  %1397 = vmatprep.mubr.bf16.mxu0 0
  %1398 = vmatmul.mubr.bf16.gmra.mrb[0].mxu0 %v952
  %v1399 = vpop.f32.mrb[0].mxu0
  %v1400 = vadd.f32 0.0, %v1399
  %v1401 = vpop.f32.mrb[0].mxu0
  %v1402 = vpop.f32.mrb[0].mxu0
  %v1403 = vadd.f32 0.0, %v1402
  %v1404 = vpop.f32.mrb[0].mxu0
  %1405 = vmatprep.mubr.bf16.mxu0 0
  %1406 = vmatmul.mubr.bf16.gmra.mrb[0].mxu0 %v955
  %v1407 = vpop.f32.mrb[0].mxu0
  %v1408 = vadd.f32 0.0, %v1407
  %v1409 = vpop.f32.mrb[0].mxu0
  %v1410 = vpop.f32.mrb[0].mxu0
  %v1411 = vadd.f32 0.0, %v1410
  %v1412 = vpop.f32.mrb[0].mxu0
  %1413 = vmatprep.mubr.bf16.mxu0 0
  %1414 = vmatmul.mubr.bf16.gmra.mrb[0].mxu0 %v958
  %v1415 = vpop.f32.mrb[0].mxu0
  %v1416 = vadd.f32 0.0, %v1415
  %v1417 = vpop.f32.mrb[0].mxu0
  %v1418 = vpop.f32.mrb[0].mxu0
  %v1419 = vadd.f32 0.0, %v1418
  %v1420 = vpop.f32.mrb[0].mxu0
  %1421 = vmatprep.mubr.bf16.mxu0 0
  %1422 = vmatmul.mubr.bf16.gmra.mrb[0].mxu0 %v961
  %v1423 = vpop.f32.mrb[0].mxu0
  %v1424 = vadd.f32 0.0, %v1423
  %v1425 = vpop.f32.mrb[0].mxu0
  %v1426 = vpop.f32.mrb[0].mxu0
  %v1427 = vadd.f32 0.0, %v1426
  %v1428 = vpop.f32.mrb[0].mxu0
  %1429 = vmatprep.mubr.bf16.mxu0 0
  %1430 = vmatmul.mubr.bf16.gmra.mrb[0].mxu0 %v964
  %v1431 = vpop.f32.mrb[0].mxu0
  %v1432 = vadd.f32 0.0, %v1431
  %v1433 = vpop.f32.mrb[0].mxu0
  %v1434 = vpop.f32.mrb[0].mxu0
  %v1435 = vadd.f32 0.0, %v1434
  %v1436 = vpop.f32.mrb[0].mxu0
  %1437 = vmatprep.mubr.bf16.mxu0 0
  %1438 = vmatmul.mubr.bf16.gmra.mrb[0].mxu0 %v967
  %v1439 = vpop.f32.mrb[0].mxu0
  %v1440 = vadd.f32 0.0, %v1439
  %v1441 = vpop.f32.mrb[0].mxu0
  %v1442 = vpop.f32.mrb[0].mxu0
  %v1443 = vadd.f32 0.0, %v1442
  %v1444 = vpop.f32.mrb[0].mxu0
  %1445 = vmatprep.mubr.bf16.mxu0 0
  %1446 = vmatmul.mubr.bf16.gmra.mrb[0].mxu0 %v970
  %v1447 = vpop.f32.mrb[0].mxu0
  %v1448 = vadd.f32 0.0, %v1447
  %v1449 = vpop.f32.mrb[0].mxu0
  %v1450 = vpop.f32.mrb[0].mxu0
  %v1451 = vadd.f32 0.0, %v1450
  %v1452 = vpop.f32.mrb[0].mxu0
  %1453 = vmatprep.mubr.bf16.mxu0 0
  %1454 = vmatmul.mubr.bf16.gmra.mrb[0].mxu0 %v973
  %v1455 = vpop.f32.mrb[0].mxu0
  %v1456 = vadd.f32 0.0, %v1455
  %v1457 = vpop.f32.mrb[0].mxu0
  %v1458 = vpop.f32.mrb[0].mxu0
  %v1459 = vadd.f32 0.0, %v1458
  %v1460 = vpop.f32.mrb[0].mxu0
  %1461 = vmatprep.mubr.bf16.mxu0 0
  %1462 = vmatmul.mubr.bf16.gmra.mrb[0].mxu0 %v976
  %v1463 = vpop.f32.mrb[0].mxu0
  %v1464 = vadd.f32 0.0, %v1463
  %v1465 = vpop.f32.mrb[0].mxu0
  %v1466 = vpop.f32.mrb[0].mxu0
  %v1467 = vadd.f32 0.0, %v1466
  %v1468 = vpop.f32.mrb[0].mxu0
  %1469 = vmatprep.mubr.bf16.mxu0 0
  %1470 = vmatmul.mubr.bf16.gmra.mrb[0].mxu0 %v979
  %v1471 = vpop.f32.mrb[0].mxu0
  %v1472 = vadd.f32 0.0, %v1471
  %v1473 = vpop.f32.mrb[0].mxu0
  %v1474 = vpop.f32.mrb[0].mxu0
  %v1475 = vadd.f32 0.0, %v1474
  %v1476 = vpop.f32.mrb[0].mxu0
  %1477 = vmatprep.mubr.bf16.mxu0 0
  %1478 = vmatmul.mubr.bf16.gmra.mrb[0].mxu0 %v982
  %v1479 = vpop.f32.mrb[0].mxu0
  %v1480 = vadd.f32 0.0, %v1479
  %v1481 = vpop.f32.mrb[0].mxu0
  %v1482 = vpop.f32.mrb[0].mxu0
  %v1483 = vadd.f32 0.0, %v1482
  %v1484 = vpop.f32.mrb[0].mxu0
  %1485 = vmatprep.mubr.bf16.mxu0 0
  %1486 = vmatmul.mubr.bf16.gmra.mrb[0].mxu0 %v985
  %v1487 = vpop.f32.mrb[0].mxu0
  %v1488 = vadd.f32 0.0, %v1487
  %v1489 = vpop.f32.mrb[0].mxu0
  %v1490 = vpop.f32.mrb[0].mxu0
  %v1491 = vadd.f32 0.0, %v1490
  %v1492 = vpop.f32.mrb[0].mxu0
  %1493 = vmatprep.mubr.bf16.mxu0 0
  %1494 = vmatmul.mubr.bf16.gmra.mrb[0].mxu0 %v988
  %v1495 = vpop.f32.mrb[0].mxu0
  %v1496 = vadd.f32 0.0, %v1495
  %v1497 = vpop.f32.mrb[0].mxu0
  %v1498 = vpop.f32.mrb[0].mxu0
  %v1499 = vadd.f32 0.0, %v1498
  %v1500 = vpop.f32.mrb[0].mxu0
  %1501 = vmatprep.mubr.bf16.mxu0 0
  %1502 = vmatmul.mubr.bf16.gmra.mrb[0].mxu0 %v991
  %v1503 = vpop.f32.mrb[0].mxu0
  %v1504 = vadd.f32 0.0, %v1503
  %v1505 = vpop.f32.mrb[0].mxu0
  %v1506 = vpop.f32.mrb[0].mxu0
  %v1507 = vadd.f32 0.0, %v1506
  %v1508 = vpop.f32.mrb[0].mxu0
  %1509 = vmatprep.mubr.bf16.mxu0 0
  %1510 = vmatmul.mubr.bf16.gmra.mrb[0].mxu0 %v994
  %v1511 = vpop.f32.mrb[0].mxu0
  %v1512 = vadd.f32 0.0, %v1511
  %v1513 = vpop.f32.mrb[0].mxu0
  %v1514 = vpop.f32.mrb[0].mxu0
  %v1515 = vadd.f32 0.0, %v1514
  %v1516 = vpop.f32.mrb[0].mxu0
  %1517 = vmatprep.mubr.bf16.mxu0 0
  %1518 = vmatmul.mubr.bf16.gmra.mrb[0].mxu0 %v997
  %v1519 = vpop.f32.mrb[0].mxu0
  %v1520 = vadd.f32 0.0, %v1519
  %v1521 = vpop.f32.mrb[0].mxu0
  %v1522 = vpop.f32.mrb[0].mxu0
  %v1523 = vadd.f32 0.0, %v1522
  %v1524 = vpop.f32.mrb[0].mxu0
  %1525 = vmatprep.mubr.bf16.mxu0 0
  %1526 = vmatmul.mubr.bf16.gmra.mrb[0].mxu0 %v1000
  %v1527 = vpop.f32.mrb[0].mxu0
  %v1528 = vadd.f32 0.0, %v1527
  %v1529 = vpop.f32.mrb[0].mxu0
  %v1530 = vpop.f32.mrb[0].mxu0
  %v1531 = vadd.f32 0.0, %v1530
  %v1532 = vpop.f32.mrb[0].mxu0
  %1533 = vmatprep.mubr.bf16.mxu0 0
  %1534 = vmatmul.mubr.bf16.gmra.mrb[0].mxu0 %v1003
  %v1535 = vpop.f32.mrb[0].mxu0
  %v1536 = vadd.f32 0.0, %v1535
  %v1537 = vpop.f32.mrb[0].mxu0
  %v1538 = vpop.f32.mrb[0].mxu0
  %v1539 = vadd.f32 0.0, %v1538
  %v1540 = vpop.f32.mrb[0].mxu0
  %1541 = vmatprep.mubr.bf16.mxu0 0
  %1542 = vmatmul.mubr.bf16.gmra.mrb[0].mxu0 %v1006
  %v1543 = vpop.f32.mrb[0].mxu0
  %v1544 = vadd.f32 0.0, %v1543
  %v1545 = vpop.f32.mrb[0].mxu0
  %v1546 = vpop.f32.mrb[0].mxu0
  %v1547 = vadd.f32 0.0, %v1546
  %v1548 = vpop.f32.mrb[0].mxu0
  %1549 = vmatprep.mubr.bf16.mxu0 0
  %1550 = vmatmul.mubr.bf16.gmra.mrb[0].mxu0 %v1009
  %v1551 = vpop.f32.mrb[0].mxu0
  %v1552 = vadd.f32 0.0, %v1551
  %v1553 = vpop.f32.mrb[0].mxu0
  %v1554 = vpop.f32.mrb[0].mxu0
  %v1555 = vadd.f32 0.0, %v1554
  %v1556 = vpop.f32.mrb[0].mxu0
  %1557 = vmatprep.mubr.bf16.mxu0 0
  %1558 = vmatmul.mubr.bf16.gmra.mrb[0].mxu0 %v1012
  %v1559 = vpop.f32.mrb[0].mxu0
  %v1560 = vadd.f32 0.0, %v1559
  %v1561 = vpop.f32.mrb[0].mxu0
  %v1562 = vpop.f32.mrb[0].mxu0
  %v1563 = vadd.f32 0.0, %v1562
  %v1564 = vpop.f32.mrb[0].mxu0
  %1565 = vmatprep.mubr.bf16.mxu0 0
  %1566 = vmatmul.mubr.bf16.gmra.mrb[0].mxu0 %v1015
  %v1567 = vpop.f32.mrb[0].mxu0
  %v1568 = vadd.f32 0.0, %v1567
  %v1569 = vpop.f32.mrb[0].mxu0
  %v1570 = vpop.f32.mrb[0].mxu0
  %v1571 = vadd.f32 0.0, %v1570
  %v1572 = vpop.f32.mrb[0].mxu0
  %1573 = vmatprep.mubr.bf16.mxu0 0
  %1574 = vmatmul.mubr.bf16.gmra.mrb[0].mxu0 %v1018
  %v1575 = vpop.f32.mrb[0].mxu0
  %v1576 = vadd.f32 0.0, %v1575
  %v1577 = vpop.f32.mrb[0].mxu0
  %v1578 = vpop.f32.mrb[0].mxu0
  %v1579 = vadd.f32 0.0, %v1578
  %v1580 = vpop.f32.mrb[0].mxu0
  %1581 = vmatprep.mubr.bf16.mxu0 0
  %1582 = vmatmul.mubr.bf16.gmra.mrb[0].mxu0 %v1021
  %v1583 = vpop.f32.mrb[0].mxu0
  %v1584 = vadd.f32 0.0, %v1583
  %v1585 = vpop.f32.mrb[0].mxu0
  %v1586 = vpop.f32.mrb[0].mxu0
  %v1587 = vadd.f32 0.0, %v1586
  %v1588 = vpop.f32.mrb[0].mxu0
  %1589 = vmatprep.mubr.bf16.mxu0 0
  %1590 = vmatmul.mubr.bf16.gmra.mrb[0].mxu0 %v1024
  %v1591 = vpop.f32.mrb[0].mxu0
  %v1592 = vadd.f32 0.0, %v1591
  %v1593 = vpop.f32.mrb[0].mxu0
  %v1594 = vpop.f32.mrb[0].mxu0
  %v1595 = vadd.f32 0.0, %v1594
  %v1596 = vpop.f32.mrb[0].mxu0
  %1597 = vmatprep.mubr.bf16.mxu0 0
  %1598 = vmatmul.mubr.bf16.gmra.mrb[0].mxu0 %v1027
  %v1599 = vpop.f32.mrb[0].mxu0
  %v1600 = vadd.f32 0.0, %v1599
  %v1601 = vpop.f32.mrb[0].mxu0
  %v1602 = vpop.f32.mrb[0].mxu0
  %v1603 = vadd.f32 0.0, %v1602
  %v1604 = vpop.f32.mrb[0].mxu0
  %1605 = vmatprep.mubr.bf16.mxu0 0
  %1606 = vmatmul.mubr.bf16.gmra.mrb[0].mxu0 %v1030
  %v1607 = vpop.f32.mrb[0].mxu0
  %v1608 = vadd.f32 0.0, %v1607
  %v1609 = vpop.f32.mrb[0].mxu0
  %v1610 = vpop.f32.mrb[0].mxu0
  %v1611 = vadd.f32 0.0, %v1610
  %v1612 = vpop.f32.mrb[0].mxu0
  %1613 = vmatprep.mubr.bf16.mxu0 0
  %1614 = vmatmul.mubr.bf16.gmra.mrb[0].mxu0 %v1033
  %v1615 = vpop.f32.mrb[0].mxu0
  %v1616 = vadd.f32 0.0, %v1615
  %v1617 = vpop.f32.mrb[0].mxu0
  %v1618 = vpop.f32.mrb[0].mxu0
  %v1619 = vadd.f32 0.0, %v1618
  %v1620 = vpop.f32.mrb[0].mxu0
  %1621 = vmatprep.mubr.bf16.mxu0 0
  %1622 = vmatmul.mubr.bf16.gmra.mrb[0].mxu0 %v1036
  %v1623 = vpop.f32.mrb[0].mxu0
  %v1624 = vadd.f32 0.0, %v1623
  %v1625 = vpop.f32.mrb[0].mxu0
  %v1626 = vpop.f32.mrb[0].mxu0
  %v1627 = vadd.f32 0.0, %v1626
  %v1628 = vpop.f32.mrb[0].mxu0
  %1629 = vmatprep.mubr.bf16.mxu0 0
  %1630 = vmatmul.mubr.bf16.gmra.mrb[0].mxu0 %v1039
  %v1631 = vpop.f32.mrb[0].mxu0
  %v1632 = vadd.f32 0.0, %v1631
  %v1633 = vpop.f32.mrb[0].mxu0
  %v1634 = vpop.f32.mrb[0].mxu0
  %v1635 = vadd.f32 0.0, %v1634
  %v1636 = vpop.f32.mrb[0].mxu0
  %1637 = vmatprep.mubr.bf16.mxu0 0
  %1638 = vmatmul.mubr.bf16.gmra.mrb[0].mxu0 %v1042
  %v1639 = vpop.f32.mrb[0].mxu0
  %v1640 = vadd.f32 0.0, %v1639
  %v1641 = vpop.f32.mrb[0].mxu0
  %v1642 = vpop.f32.mrb[0].mxu0
  %v1643 = vadd.f32 0.0, %v1642
  %v1644 = vpop.f32.mrb[0].mxu0
  %1645 = vmatprep.mubr.bf16.mxu0 0
  %1646 = vmatmul.mubr.bf16.gmra.mrb[0].mxu0 %v1045
  %v1647 = vpop.f32.mrb[0].mxu0
  %v1648 = vadd.f32 0.0, %v1647
  %v1649 = vpop.f32.mrb[0].mxu0
  %v1650 = vpop.f32.mrb[0].mxu0
  %v1651 = vadd.f32 0.0, %v1650
  %v1652 = vpop.f32.mrb[0].mxu0
  %1653 = vmatprep.mubr.bf16.mxu0 0
  %1654 = vmatmul.mubr.bf16.gmra.mrb[0].mxu0 %v1048
  %v1655 = vpop.f32.mrb[0].mxu0
  %v1656 = vadd.f32 0.0, %v1655
  %v1657 = vpop.f32.mrb[0].mxu0
  %v1658 = vpop.f32.mrb[0].mxu0
  %v1659 = vadd.f32 0.0, %v1658
  %v1660 = vpop.f32.mrb[0].mxu0
  %1661 = vmatprep.mubr.bf16.mxu0 0
  %1662 = vmatmul.mubr.bf16.gmra.mrb[0].mxu0 %v1051
  %v1663 = vpop.f32.mrb[0].mxu0
  %v1664 = vadd.f32 0.0, %v1663
  %v1665 = vpop.f32.mrb[0].mxu0
  %v1666 = vpop.f32.mrb[0].mxu0
  %v1667 = vadd.f32 0.0, %v1666
  %v1668 = vpop.f32.mrb[0].mxu0
  %1669 = vmatprep.mubr.bf16.mxu0 0
  %1670 = vmatmul.mubr.bf16.gmra.mrb[0].mxu0 %v1054
  %v1671 = vpop.f32.mrb[0].mxu0
  %v1672 = vadd.f32 0.0, %v1671
  %v1673 = vpop.f32.mrb[0].mxu0
  %v1674 = vpop.f32.mrb[0].mxu0
  %v1675 = vadd.f32 0.0, %v1674
  %v1676 = vpop.f32.mrb[0].mxu0
  %1677 = vmatprep.mubr.bf16.mxu0 0
  %1678 = vmatmul.mubr.bf16.gmra.mrb[0].mxu0 %v1057
  %v1679 = vpop.f32.mrb[0].mxu0
  %v1680 = vadd.f32 0.0, %v1679
  %v1681 = vpop.f32.mrb[0].mxu0
  %v1682 = vpop.f32.mrb[0].mxu0
  %v1683 = vadd.f32 0.0, %v1682
  %v1684 = vpop.f32.mrb[0].mxu0
  %1685 = vmatprep.mubr.bf16.mxu0 0
  %1686 = vmatmul.mubr.bf16.gmra.mrb[0].mxu0 %v1060
  %v1687 = vpop.f32.mrb[0].mxu0
  %v1688 = vadd.f32 0.0, %v1687
  %v1689 = vpop.f32.mrb[0].mxu0
  %v1690 = vpop.f32.mrb[0].mxu0
  %v1691 = vadd.f32 0.0, %v1690
  %v1692 = vpop.f32.mrb[0].mxu0
  %1693 = vmatprep.mubr.bf16.mxu0 0
  %1694 = vmatmul.mubr.bf16.gmra.mrb[0].mxu0 %v1063
  %v1695 = vpop.f32.mrb[0].mxu0
  %v1696 = vadd.f32 0.0, %v1695
  %v1697 = vpop.f32.mrb[0].mxu0
  %v1698 = vpop.f32.mrb[0].mxu0
  %v1699 = vadd.f32 0.0, %v1698
  %v1700 = vpop.f32.mrb[0].mxu0
  %1701 = vmatprep.mubr.bf16.mxu0 0
  %1702 = vmatmul.mubr.bf16.gmra.mrb[0].mxu0 %v1066
  %v1703 = vpop.f32.mrb[0].mxu0
  %v1704 = vadd.f32 0.0, %v1703
  %v1705 = vpop.f32.mrb[0].mxu0
  %v1706 = vpop.f32.mrb[0].mxu0
  %v1707 = vadd.f32 0.0, %v1706
  %v1708 = vpop.f32.mrb[0].mxu0
  %1709 = vmatprep.mubr.bf16.mxu0 0
  %1710 = vmatmul.mubr.bf16.gmra.mrb[0].mxu0 %v1069
  %v1711 = vpop.f32.mrb[0].mxu0
  %v1712 = vadd.f32 0.0, %v1711
  %v1713 = vpop.f32.mrb[0].mxu0
  %v1714 = vpop.f32.mrb[0].mxu0
  %v1715 = vadd.f32 0.0, %v1714
  %v1716 = vpop.f32.mrb[0].mxu0
  %1717 = vmatprep.mubr.bf16.mxu0 0
  %1718 = vmatmul.mubr.bf16.gmra.mrb[0].mxu0 %v1072
  %v1719 = vpop.f32.mrb[0].mxu0
  %v1720 = vadd.f32 0.0, %v1719
  %v1721 = vpop.f32.mrb[0].mxu0
  %v1722 = vpop.f32.mrb[0].mxu0
  %v1723 = vadd.f32 0.0, %v1722
  %v1724 = vpop.f32.mrb[0].mxu0
  %1725 = vmatprep.mubr.bf16.mxu0 0
  %1726 = vmatmul.mubr.bf16.gmra.mrb[0].mxu0 %v1075
  %v1727 = vpop.f32.mrb[0].mxu0
  %v1728 = vadd.f32 0.0, %v1727
  %v1729 = vpop.f32.mrb[0].mxu0
  %v1730 = vpop.f32.mrb[0].mxu0
  %v1731 = vadd.f32 0.0, %v1730
  %v1732 = vpop.f32.mrb[0].mxu0
  %1733 = vmatprep.mubr.bf16.mxu0 0
  %1734 = vmatmul.mubr.bf16.gmra.mrb[0].mxu0 %v1078
  %v1735 = vpop.f32.mrb[0].mxu0
  %v1736 = vadd.f32 0.0, %v1735
  %v1737 = vpop.f32.mrb[0].mxu0
  %v1738 = vpop.f32.mrb[0].mxu0
  %v1739 = vadd.f32 0.0, %v1738
  %v1740 = vpop.f32.mrb[0].mxu0
  %1741 = vmatprep.mubr.bf16.mxu0 0
  %1742 = vmatmul.mubr.bf16.gmra.mrb[0].mxu0 %v1081
  %v1743 = vpop.f32.mrb[0].mxu0
  %v1744 = vadd.f32 0.0, %v1743
  %v1745 = vpop.f32.mrb[0].mxu0
  %v1746 = vpop.f32.mrb[0].mxu0
  %v1747 = vadd.f32 0.0, %v1746
  %v1748 = vpop.f32.mrb[0].mxu0
  %1749 = vmatprep.mubr.bf16.mxu0 0
  %1750 = vmatmul.mubr.bf16.gmra.mrb[0].mxu0 %v1084
  %v1751 = vpop.f32.mrb[0].mxu0
  %v1752 = vadd.f32 0.0, %v1751
  %v1753 = vpop.f32.mrb[0].mxu0
  %v1754 = vpop.f32.mrb[0].mxu0
  %v1755 = vadd.f32 0.0, %v1754
  %v1756 = vpop.f32.mrb[0].mxu0
  %1757 = vmatprep.mubr.bf16.mxu0 0
  %1758 = vmatmul.mubr.bf16.gmra.mrb[0].mxu0 %v1087
  %v1759 = vpop.f32.mrb[0].mxu0
  %v1760 = vadd.f32 0.0, %v1759
  %v1761 = vpop.f32.mrb[0].mxu0
  %v1762 = vpop.f32.mrb[0].mxu0
  %v1763 = vadd.f32 0.0, %v1762
  %v1764 = vpop.f32.mrb[0].mxu0
  %1765 = vmatprep.mubr.bf16.mxu0 0
  %1766 = vmatmul.mubr.bf16.gmra.mrb[0].mxu0 %v1090
  %v1767 = vpop.f32.mrb[0].mxu0
  %v1768 = vadd.f32 0.0, %v1767
  %v1769 = vpop.f32.mrb[0].mxu0
  %v1770 = vpop.f32.mrb[0].mxu0
  %v1771 = vadd.f32 0.0, %v1770
  %v1772 = vpop.f32.mrb[0].mxu0
  %1773 = vmatprep.mubr.bf16.mxu0 0
  %1774 = vmatmul.mubr.bf16.gmra.mrb[0].mxu0 %v1093
  %v1775 = vpop.f32.mrb[0].mxu0
  %v1776 = vadd.f32 0.0, %v1775
  %v1777 = vpop.f32.mrb[0].mxu0
  %v1778 = vpop.f32.mrb[0].mxu0
  %v1779 = vadd.f32 0.0, %v1778
  %v1780 = vpop.f32.mrb[0].mxu0
  %1781 = vmatprep.mubr.bf16.mxu0 0
  %1782 = vmatmul.mubr.bf16.gmra.mrb[0].mxu0 %v1096
  %v1783 = vpop.f32.mrb[0].mxu0
  %v1784 = vadd.f32 0.0, %v1783
  %v1785 = vpop.f32.mrb[0].mxu0
  %v1786 = vpop.f32.mrb[0].mxu0
  %v1787 = vadd.f32 0.0, %v1786
  %v1788 = vpop.f32.mrb[0].mxu0
  %1789 = vmatprep.mubr.bf16.mxu0 0
  %1790 = vmatmul.mubr.bf16.gmra.mrb[0].mxu0 %v1099
  %v1791 = vpop.f32.mrb[0].mxu0
  %v1792 = vadd.f32 0.0, %v1791
  %v1793 = vpop.f32.mrb[0].mxu0
  %v1794 = vpop.f32.mrb[0].mxu0
  %v1795 = vadd.f32 0.0, %v1794
  %v1796 = vpop.f32.mrb[0].mxu0
  %1797 = vmatprep.mubr.bf16.mxu0 0
  %1798 = vmatmul.mubr.bf16.gmra.mrb[0].mxu0 %v1102
  %v1799 = vpop.f32.mrb[0].mxu0
  %v1800 = vadd.f32 0.0, %v1799
  %v1801 = vpop.f32.mrb[0].mxu0
  %v1802 = vpop.f32.mrb[0].mxu0
  %v1803 = vadd.f32 0.0, %v1802
  %v1804 = vpop.f32.mrb[0].mxu0
  %1805 = vmatprep.mubr.bf16.mxu0 0
  %1806 = vmatmul.mubr.bf16.gmra.mrb[0].mxu0 %v1105
  %v1807 = vpop.f32.mrb[0].mxu0
  %v1808 = vadd.f32 0.0, %v1807
  %v1809 = vpop.f32.mrb[0].mxu0
  %v1810 = vpop.f32.mrb[0].mxu0
  %v1811 = vadd.f32 0.0, %v1810
  %v1812 = vpop.f32.mrb[0].mxu0
  %1813 = vmatprep.mubr.bf16.mxu0 0
  %1814 = vmatmul.mubr.bf16.gmra.mrb[0].mxu0 %v1108
  %v1815 = vpop.f32.mrb[0].mxu0
  %v1816 = vadd.f32 0.0, %v1815
  %v1817 = vpop.f32.mrb[0].mxu0
  %v1818 = vpop.f32.mrb[0].mxu0
  %v1819 = vadd.f32 0.0, %v1818
  %v1820 = vpop.f32.mrb[0].mxu0
  %1821 = vmatprep.mubr.bf16.mxu0 0
  %1822 = vmatmul.mubr.bf16.gmra.mrb[0].mxu0 %v1111
  %v1823 = vpop.f32.mrb[0].mxu0
  %v1824 = vadd.f32 0.0, %v1823
  %v1825 = vpop.f32.mrb[0].mxu0
  %v1826 = vpop.f32.mrb[0].mxu0
  %v1827 = vadd.f32 0.0, %v1826
  %v1828 = vpop.f32.mrb[0].mxu0
  %1829 = vmatprep.mubr.bf16.mxu0 0
  %1830 = vmatmul.mubr.bf16.gmra.mrb[0].mxu0 %v1114
  %v1831 = vpop.f32.mrb[0].mxu0
  %v1832 = vadd.f32 0.0, %v1831
  %v1833 = vpop.f32.mrb[0].mxu0
  %v1834 = vpop.f32.mrb[0].mxu0
  %v1835 = vadd.f32 0.0, %v1834
  %v1836 = vpop.f32.mrb[0].mxu0
  %1837 = vmatprep.mubr.bf16.mxu0 0
  %1838 = vmatmul.mubr.bf16.gmra.mrb[0].mxu0 %v1117
  %v1839 = vpop.f32.mrb[0].mxu0
  %v1840 = vadd.f32 0.0, %v1839
  %v1841 = vpop.f32.mrb[0].mxu0
  %v1842 = vpop.f32.mrb[0].mxu0
  %v1843 = vadd.f32 0.0, %v1842
  %v1844 = vpop.f32.mrb[0].mxu0
  %1845 = vmatprep.mubr.bf16.mxu0 0
  %1846 = vmatmul.mubr.bf16.gmra.mrb[0].mxu0 %v1120
  %v1847 = vpop.f32.mrb[0].mxu0
  %v1848 = vadd.f32 0.0, %v1847
  %v1849 = vpop.f32.mrb[0].mxu0
  %v1850 = vpop.f32.mrb[0].mxu0
  %v1851 = vadd.f32 0.0, %v1850
  %v1852 = vpop.f32.mrb[0].mxu0
  %1853 = vmatprep.mubr.bf16.mxu0 0
  %1854 = vmatmul.mubr.bf16.gmra.mrb[0].mxu0 %v1123
  %v1855 = vpop.f32.mrb[0].mxu0
  %v1856 = vadd.f32 0.0, %v1855
  %v1857 = vpop.f32.mrb[0].mxu0
  %v1858 = vpop.f32.mrb[0].mxu0
  %v1859 = vadd.f32 0.0, %v1858
  %v1860 = vpop.f32.mrb[0].mxu0
  %1861 = vmatprep.mubr.bf16.mxu0 0
  %1862 = vmatmul.mubr.bf16.gmra.mrb[0].mxu0 %v1126
  %v1863 = vpop.f32.mrb[0].mxu0
  %v1864 = vadd.f32 0.0, %v1863
  %v1865 = vpop.f32.mrb[0].mxu0
  %v1866 = vpop.f32.mrb[0].mxu0
  %v1867 = vadd.f32 0.0, %v1866
  %v1868 = vpop.f32.mrb[0].mxu0
  %1869 = vmatprep.mubr.bf16.mxu0 0
  %1870 = vmatmul.mubr.bf16.gmra.mrb[0].mxu0 %v1129
  %v1871 = vpop.f32.mrb[0].mxu0
  %v1872 = vadd.f32 0.0, %v1871
  %v1873 = vpop.f32.mrb[0].mxu0
  %v1874 = vpop.f32.mrb[0].mxu0
  %v1875 = vadd.f32 0.0, %v1874
  %v1876 = vpop.f32.mrb[0].mxu0
  %1877 = vmatprep.mubr.bf16.mxu0 0
  %1878 = vmatmul.mubr.bf16.gmra.mrb[0].mxu0 %v1132
  %v1879 = vpop.f32.mrb[0].mxu0
  %v1880 = vadd.f32 0.0, %v1879
  %v1881 = vpop.f32.mrb[0].mxu0
  %v1882 = vpop.f32.mrb[0].mxu0
  %v1883 = vadd.f32 0.0, %v1882
  %v1884 = vpop.f32.mrb[0].mxu0
  %1885 = vmatprep.mubr.bf16.mxu0 0
  %1886 = vmatmul.mubr.bf16.gmra.mrb[0].mxu0 %v1135
  %v1887 = vpop.f32.mrb[0].mxu0
  %v1888 = vadd.f32 0.0, %v1887
  %v1889 = vpop.f32.mrb[0].mxu0
  %v1890 = vpop.f32.mrb[0].mxu0
  %v1891 = vadd.f32 0.0, %v1890
  %v1892 = vpop.f32.mrb[0].mxu0
  %1893 = vmatprep.mubr.bf16.mxu0 0
  %1894 = vmatmul.mubr.bf16.gmra.mrb[0].mxu0 %v1138
  %v1895 = vpop.f32.mrb[0].mxu0
  %v1896 = vadd.f32 0.0, %v1895
  %v1897 = vpop.f32.mrb[0].mxu0
  %v1898 = vpop.f32.mrb[0].mxu0
  %v1899 = vadd.f32 0.0, %v1898
  %v1900 = vpop.f32.mrb[0].mxu0
  %1901 = vmatprep.mubr.bf16.mxu0 0
  %1902 = vmatmul.mubr.bf16.gmra.mrb[0].mxu0 %v1141
  %v1903 = vpop.f32.mrb[0].mxu0
  %v1904 = vadd.f32 0.0, %v1903
  %v1905 = vpop.f32.mrb[0].mxu0
  %v1906 = vpop.f32.mrb[0].mxu0
  %v1907 = vadd.f32 0.0, %v1906
  %v1908 = vpop.f32.mrb[0].mxu0
  %1909 = vmatprep.mubr.bf16.mxu0 0
  %1910 = vmatmul.mubr.bf16.gmra.mrb[0].mxu0 %v1144
  %v1911 = vpop.f32.mrb[0].mxu0
  %v1912 = vadd.f32 0.0, %v1911
  %v1913 = vpop.f32.mrb[0].mxu0
  %v1914 = vpop.f32.mrb[0].mxu0
  %v1915 = vadd.f32 0.0, %v1914
  %v1916 = vpop.f32.mrb[0].mxu0
  %1917 = vmatprep.mubr.bf16.mxu0 0
  %1918 = vmatmul.mubr.bf16.gmra.mrb[0].mxu0 %v1147
  %v1919 = vpop.f32.mrb[0].mxu0
  %v1920 = vadd.f32 0.0, %v1919
  %v1921 = vpop.f32.mrb[0].mxu0
  %v1922 = vpop.f32.mrb[0].mxu0
  %v1923 = vadd.f32 0.0, %v1922
  %v1924 = vpop.f32.mrb[0].mxu0
  %1925 = vmatprep.mubr.bf16.mxu0 0
  %1926 = vmatmul.mubr.bf16.gmra.mrb[0].mxu0 %v1150
  %v1927 = vpop.f32.mrb[0].mxu0
  %v1928 = vadd.f32 0.0, %v1927
  %v1929 = vpop.f32.mrb[0].mxu0
  %v1930 = vpop.f32.mrb[0].mxu0
  %v1931 = vadd.f32 0.0, %v1930
  %v1932 = vpop.f32.mrb[0].mxu0
  %1933 = vmatprep.mubr.bf16.mxu0 0
  %1934 = vmatmul.mubr.bf16.gmra.mrb[0].mxu0 %v1153
  %v1935 = vpop.f32.mrb[0].mxu0
  %v1936 = vadd.f32 0.0, %v1935
  %v1937 = vpop.f32.mrb[0].mxu0
  %v1938 = vpop.f32.mrb[0].mxu0
  %v1939 = vadd.f32 0.0, %v1938
  %v1940 = vpop.f32.mrb[0].mxu0
  %1941 = vmatprep.mubr.bf16.mxu0 0
  %1942 = vmatmul.mubr.bf16.gmra.mrb[0].mxu0 %v1156
  %v1943 = vpop.f32.mrb[0].mxu0
  %v1944 = vadd.f32 0.0, %v1943
  %v1945 = vpop.f32.mrb[0].mxu0
  %v1946 = vpop.f32.mrb[0].mxu0
  %v1947 = vadd.f32 0.0, %v1946
  %v1948 = vpop.f32.mrb[0].mxu0
  %1949 = vmatprep.mubr.bf16.mxu0 0
  %1950 = vmatmul.mubr.bf16.gmra.mrb[0].mxu0 %v1159
  %v1951 = vpop.f32.mrb[0].mxu0
  %v1952 = vadd.f32 0.0, %v1951
  %v1953 = vpop.f32.mrb[0].mxu0
  %v1954 = vpop.f32.mrb[0].mxu0
  %v1955 = vadd.f32 0.0, %v1954
  %v1956 = vpop.f32.mrb[0].mxu0
  %1957 = vmatprep.mubr.bf16.mxu0 0
  %1958 = vmatmul.mubr.bf16.gmra.mrb[0].mxu0 %v1162
  %v1959 = vpop.f32.mrb[0].mxu0
  %v1960 = vadd.f32 0.0, %v1959
  %v1961 = vpop.f32.mrb[0].mxu0
  %v1962 = vpop.f32.mrb[0].mxu0
  %v1963 = vadd.f32 0.0, %v1962
  %v1964 = vpop.f32.mrb[0].mxu0
  %1965 = vmatprep.mubr.bf16.mxu0 0
  %1966 = vmatmul.mubr.bf16.gmra.mrb[0].mxu0 %v1165
  %v1967 = vpop.f32.mrb[0].mxu0
  %v1968 = vadd.f32 0.0, %v1967
  %v1969 = vpop.f32.mrb[0].mxu0
  %v1970 = vpop.f32.mrb[0].mxu0
  %v1971 = vadd.f32 0.0, %v1970
  %v1972 = vpop.f32.mrb[0].mxu0
  %1973 = vmatprep.mubr.bf16.mxu0 0
  %1974 = vmatmul.mubr.bf16.gmra.mrb[0].mxu0 %v1168
  %v1975 = vpop.f32.mrb[0].mxu0
  %v1976 = vadd.f32 0.0, %v1975
  %v1977 = vpop.f32.mrb[0].mxu0
  %v1978 = vpop.f32.mrb[0].mxu0
  %v1979 = vadd.f32 0.0, %v1978
  %v1980 = vpop.f32.mrb[0].mxu0
  %1981 = vmatprep.mubr.bf16.mxu0 0
  %1982 = vmatmul.mubr.bf16.gmra.mrb[0].mxu0 %v1171
  %v1983 = vpop.f32.mrb[0].mxu0
  %v1984 = vadd.f32 0.0, %v1983
  %v1985 = vpop.f32.mrb[0].mxu0
  %v1986 = vpop.f32.mrb[0].mxu0
  %v1987 = vadd.f32 0.0, %v1986
  %v1988 = vpop.f32.mrb[0].mxu0
  %1989 = vmatprep.mubr.bf16.mxu0 0
  %1990 = vmatmul.mubr.bf16.gmra.mrb[0].mxu0 %v1174
  %v1991 = vpop.f32.mrb[0].mxu0
  %v1992 = vadd.f32 0.0, %v1991
  %v1993 = vpop.f32.mrb[0].mxu0
  %v1994 = vpop.f32.mrb[0].mxu0
  %v1995 = vadd.f32 0.0, %v1994
  %v1996 = vpop.f32.mrb[0].mxu0
  %1997 = vmatprep.mubr.bf16.mxu0 0
  %1998 = vmatmul.mubr.bf16.gmra.mrb[0].mxu0 %v1177
  %v1999 = vpop.f32.mrb[0].mxu0
  %v2000 = vadd.f32 0.0, %v1999
  %v2001 = vpop.f32.mrb[0].mxu0
  %v2002 = vpop.f32.mrb[0].mxu0
  %v2003 = vadd.f32 0.0, %v2002
  %v2004 = vpop.f32.mrb[0].mxu0
  %2005 = vmatprep.mubr.bf16.mxu0 0
  %2006 = vmatmul.mubr.bf16.gmra.mrb[0].mxu0 %v1180
  %v2007 = vpop.f32.mrb[0].mxu0
  %v2008 = vadd.f32 0.0, %v2007
  %v2009 = vpop.f32.mrb[0].mxu0
  %v2010 = vpop.f32.mrb[0].mxu0
  %v2011 = vadd.f32 0.0, %v2010
  %v2012 = vpop.f32.mrb[0].mxu0
  %2013 = vmatprep.mubr.bf16.mxu0 0
  %2014 = vmatmul.mubr.bf16.gmra.mrb[0].mxu0 %v1183
  %v2015 = vpop.f32.mrb[0].mxu0
  %v2016 = vadd.f32 0.0, %v2015
  %v2017 = vpop.f32.mrb[0].mxu0
  %v2018 = vpop.f32.mrb[0].mxu0
  %v2019 = vadd.f32 0.0, %v2018
  %v2020 = vpop.f32.mrb[0].mxu0
  %2021 = vmatprep.mubr.bf16.mxu0 0
  %2022 = vmatmul.mubr.bf16.gmra.mrb[0].mxu0 %v1186
  %v2023 = vpop.f32.mrb[0].mxu0
  %v2024 = vadd.f32 0.0, %v2023
  %v2025 = vpop.f32.mrb[0].mxu0
  %v2026 = vpop.f32.mrb[0].mxu0
  %v2027 = vadd.f32 0.0, %v2026
  %v2028 = vpop.f32.mrb[0].mxu0
  %2029 = vmatprep.mubr.bf16.mxu0 0
  %2030 = vmatmul.mubr.bf16.gmra.mrb[0].mxu0 %v1189
  %v2031 = vpop.f32.mrb[0].mxu0
  %v2032 = vadd.f32 0.0, %v2031
  %v2033 = vpop.f32.mrb[0].mxu0
  %v2034 = vpop.f32.mrb[0].mxu0
  %v2035 = vadd.f32 0.0, %v2034
  %v2036 = vpop.f32.mrb[0].mxu0
  %2037 = vmatprep.mubr.bf16.mxu0 0
  %2038 = vmatmul.mubr.bf16.gmra.mrb[0].mxu0 %v1192
  %v2039 = vpop.f32.mrb[0].mxu0
  %v2040 = vadd.f32 0.0, %v2039
  %v2041 = vpop.f32.mrb[0].mxu0
  %v2042 = vpop.f32.mrb[0].mxu0
  %v2043 = vadd.f32 0.0, %v2042
  %v2044 = vpop.f32.mrb[0].mxu0
  %2045 = vmatprep.mubr.bf16.mxu0 0
  %2046 = vmatmul.mubr.bf16.gmra.mrb[0].mxu0 %v1195
  %v2047 = vpop.f32.mrb[0].mxu0
  %v2048 = vadd.f32 0.0, %v2047
  %v2049 = vpop.f32.mrb[0].mxu0
  %v2050 = vpop.f32.mrb[0].mxu0
  %v2051 = vadd.f32 0.0, %v2050
  %v2052 = vpop.f32.mrb[0].mxu0
  %2053 = vmatprep.mubr.bf16.mxu0 0
  %2054 = vmatmul.mubr.bf16.gmra.mrb[0].mxu0 %v1198
  %v2055 = vpop.f32.mrb[0].mxu0
  %v2056 = vadd.f32 0.0, %v2055
  %v2057 = vpop.f32.mrb[0].mxu0
  %v2058 = vpop.f32.mrb[0].mxu0
  %v2059 = vadd.f32 0.0, %v2058
  %v2060 = vpop.f32.mrb[0].mxu0
  %2061 = vmatprep.mubr.bf16.mxu0 0
  %2062 = vmatmul.mubr.bf16.gmra.mrb[0].mxu0 %v1201
  %v2063 = vpop.f32.mrb[0].mxu0
  %v2064 = vadd.f32 0.0, %v2063
  %v2065 = vpop.f32.mrb[0].mxu0
  %v2066 = vpop.f32.mrb[0].mxu0
  %v2067 = vadd.f32 0.0, %v2066
  %v2068 = vpop.f32.mrb[0].mxu0
  %2069 = vmatprep.mubr.bf16.mxu0 0
  %2070 = vmatmul.mubr.bf16.gmra.mrb[0].mxu0 %v1204
  %v2071 = vpop.f32.mrb[0].mxu0
  %v2072 = vadd.f32 0.0, %v2071
  %v2073 = vpop.f32.mrb[0].mxu0
  %v2074 = vpop.f32.mrb[0].mxu0
  %v2075 = vadd.f32 0.0, %v2074
  %v2076 = vpop.f32.mrb[0].mxu0
  %2077 = vmatprep.mubr.bf16.mxu0 0
  %2078 = vmatmul.mubr.bf16.gmra.mrb[0].mxu0 %v1207
  %v2079 = vpop.f32.mrb[0].mxu0
  %v2080 = vadd.f32 0.0, %v2079
  %v2081 = vpop.f32.mrb[0].mxu0
  %v2082 = vpop.f32.mrb[0].mxu0
  %v2083 = vadd.f32 0.0, %v2082
  %v2084 = vpop.f32.mrb[0].mxu0
  %2085 = vmatprep.mubr.bf16.mxu0 0
  %2086 = vmatmul.mubr.bf16.gmra.mrb[0].mxu0 %v1210
  %v2087 = vpop.f32.mrb[0].mxu0
  %v2088 = vadd.f32 0.0, %v2087
  %v2089 = vpop.f32.mrb[0].mxu0
  %v2090 = vpop.f32.mrb[0].mxu0
  %v2091 = vadd.f32 0.0, %v2090
  %v2092 = vpop.f32.mrb[0].mxu0
  %2093 = vmatprep.mubr.bf16.mxu0 0
  %2094 = vmatmul.mubr.bf16.gmra.mrb[0].mxu0 %v1213
  %v2095 = vpop.f32.mrb[0].mxu0
  %v2096 = vadd.f32 0.0, %v2095
  %v2097 = vpop.f32.mrb[0].mxu0
  %v2098 = vpop.f32.mrb[0].mxu0
  %v2099 = vadd.f32 0.0, %v2098
  %v2100 = vpop.f32.mrb[0].mxu0
  %2101 = vmatprep.mubr.bf16.mxu0 0
  %2102 = vmatmul.mubr.bf16.gmra.mrb[0].mxu0 %v1216
  %v2103 = vpop.f32.mrb[0].mxu0
  %v2104 = vadd.f32 0.0, %v2103
  %v2105 = vpop.f32.mrb[0].mxu0
  %v2106 = vpop.f32.mrb[0].mxu0
  %v2107 = vadd.f32 0.0, %v2106
  %v2108 = vpop.f32.mrb[0].mxu0
  %2109 = vmatprep.mubr.bf16.mxu0 0
  %2110 = vmatmul.mubr.bf16.gmra.mrb[0].mxu0 %v1219
  %v2111 = vpop.f32.mrb[0].mxu0
  %v2112 = vadd.f32 0.0, %v2111
  %v2113 = vpop.f32.mrb[0].mxu0
  %v2114 = vpop.f32.mrb[0].mxu0
  %v2115 = vadd.f32 0.0, %v2114
  %v2116 = vpop.f32.mrb[0].mxu0
  %2117 = vmatprep.mubr.bf16.mxu0 0
  %2118 = vmatmul.mubr.bf16.gmra.mrb[0].mxu0 %v1222
  %v2119 = vpop.f32.mrb[0].mxu0
  %v2120 = vadd.f32 0.0, %v2119
  %v2121 = vpop.f32.mrb[0].mxu0
  %v2122 = vpop.f32.mrb[0].mxu0
  %v2123 = vadd.f32 0.0, %v2122
  %v2124 = vpop.f32.mrb[0].mxu0
  %2125 = vmatprep.mubr.bf16.mxu0 0
  %2126 = vmatmul.mubr.bf16.gmra.mrb[0].mxu0 %v1225
  %v2127 = vpop.f32.mrb[0].mxu0
  %v2128 = vadd.f32 0.0, %v2127
  %v2129 = vpop.f32.mrb[0].mxu0
  %v2130 = vpop.f32.mrb[0].mxu0
  %v2131 = vadd.f32 0.0, %v2130
  %v2132 = vpop.f32.mrb[0].mxu0
  %2133 = vmatprep.mubr.bf16.mxu0 0
  %2134 = vmatmul.mubr.bf16.gmra.mrb[0].mxu0 %v1228
  %v2135 = vpop.f32.mrb[0].mxu0
  %v2136 = vadd.f32 0.0, %v2135
  %v2137 = vpop.f32.mrb[0].mxu0
  %v2138 = vpop.f32.mrb[0].mxu0
  %v2139 = vadd.f32 0.0, %v2138
  %v2140 = vpop.f32.mrb[0].mxu0
  %2141 = vmatprep.mubr.bf16.mxu0 0
  %2142 = vmatmul.mubr.bf16.gmra.mrb[0].mxu0 %v1231
  %v2143 = vpop.f32.mrb[0].mxu0
  %v2144 = vadd.f32 0.0, %v2143
  %v2145 = vpop.f32.mrb[0].mxu0
  %v2146 = vpop.f32.mrb[0].mxu0
  %v2147 = vadd.f32 0.0, %v2146
  %v2148 = vpop.f32.mrb[0].mxu0
  %2149 = vmatprep.mubr.bf16.mxu0 0
  %2150 = vmatmul.mubr.bf16.gmra.mrb[0].mxu0 %v1234
  %v2151 = vpop.f32.mrb[0].mxu0
  %v2152 = vadd.f32 0.0, %v2151
  %v2153 = vpop.f32.mrb[0].mxu0
  %v2154 = vpop.f32.mrb[0].mxu0
  %v2155 = vadd.f32 0.0, %v2154
  %v2156 = vpop.f32.mrb[0].mxu0
  %2157 = vmatprep.mubr.bf16.mxu0 0
  %2158 = vmatmul.mubr.bf16.gmra.mrb[0].mxu0 %v1237
  %v2159 = vpop.f32.mrb[0].mxu0
  %v2160 = vadd.f32 0.0, %v2159
  %v2161 = vpop.f32.mrb[0].mxu0
  %v2162 = vpop.f32.mrb[0].mxu0
  %v2163 = vadd.f32 0.0, %v2162
  %v2164 = vpop.f32.mrb[0].mxu0
  %2165 = vmatprep.mubr.bf16.mxu0 0
  %2166 = vmatmul.mubr.bf16.gmra.mrb[0].mxu0 %v1240
  %v2167 = vpop.f32.mrb[0].mxu0
  %v2168 = vadd.f32 0.0, %v2167
  %v2169 = vpop.f32.mrb[0].mxu0
  %v2170 = vpop.f32.mrb[0].mxu0
  %v2171 = vadd.f32 0.0, %v2170
  %v2172 = vpop.f32.mrb[0].mxu0
  %2173 = vmatprep.mubr.bf16.mxu0 0
  %2174 = vmatmul.mubr.bf16.gmra.mrb[0].mxu0 %v1243
  %v2175 = vpop.f32.mrb[0].mxu0
  %v2176 = vadd.f32 0.0, %v2175
  %v2177 = vpop.f32.mrb[0].mxu0
  %v2178 = vpop.f32.mrb[0].mxu0
  %v2179 = vadd.f32 0.0, %v2178
  %v2180 = vpop.f32.mrb[0].mxu0
  %2181 = vmatprep.mubr.bf16.mxu0 0
  %2182 = vmatmul.mubr.bf16.gmra.mrb[0].mxu0 %v1246
  %v2183 = vpop.f32.mrb[0].mxu0
  %v2184 = vadd.f32 0.0, %v2183
  %v2185 = vpop.f32.mrb[0].mxu0
  %v2186 = vpop.f32.mrb[0].mxu0
  %v2187 = vadd.f32 0.0, %v2186
  %v2188 = vpop.f32.mrb[0].mxu0
  %2189 = vmatprep.mubr.bf16.mxu0 0
  %2190 = vmatmul.mubr.bf16.gmra.mrb[0].mxu0 %v1249
  %v2191 = vpop.f32.mrb[0].mxu0
  %v2192 = vadd.f32 0.0, %v2191
  %v2193 = vpop.f32.mrb[0].mxu0
  %v2194 = vpop.f32.mrb[0].mxu0
  %v2195 = vadd.f32 0.0, %v2194
  %v2196 = vpop.f32.mrb[0].mxu0
  %2197 = vmatprep.mubr.bf16.mxu0 0
  %2198 = vmatmul.mubr.bf16.gmra.mrb[0].mxu0 %v1252
  %v2199 = vpop.f32.mrb[0].mxu0
  %v2200 = vadd.f32 0.0, %v2199
  %v2201 = vpop.f32.mrb[0].mxu0
  %v2202 = vpop.f32.mrb[0].mxu0
  %v2203 = vadd.f32 0.0, %v2202
  %v2204 = vpop.f32.mrb[0].mxu0
  %2205 = vmatprep.mubr.bf16.mxu0 0
  %2206 = vmatmul.mubr.bf16.gmra.mrb[0].mxu0 %v1255
  %v2207 = vpop.f32.mrb[0].mxu0
  %v2208 = vadd.f32 0.0, %v2207
  %v2209 = vpop.f32.mrb[0].mxu0
  %v2210 = vpop.f32.mrb[0].mxu0
  %v2211 = vadd.f32 0.0, %v2210
  %v2212 = vpop.f32.mrb[0].mxu0
  %2213 = vmatprep.mubr.bf16.mxu0 0
  %2214 = vmatmul.mubr.bf16.gmra.mrb[0].mxu0 %v1258
  %v2215 = vpop.f32.mrb[0].mxu0
  %v2216 = vadd.f32 0.0, %v2215
  %v2217 = vpop.f32.mrb[0].mxu0
  %v2218 = vpop.f32.mrb[0].mxu0
  %v2219 = vadd.f32 0.0, %v2218
  %v2220 = vpop.f32.mrb[0].mxu0
  %2221 = vmatprep.mubr.bf16.mxu0 0
  %2222 = vmatmul.mubr.bf16.gmra.mrb[0].mxu0 %v1261
  %v2223 = vpop.f32.mrb[0].mxu0
  %v2224 = vadd.f32 0.0, %v2223
  %v2225 = vpop.f32.mrb[0].mxu0
  %v2226 = vpop.f32.mrb[0].mxu0
  %v2227 = vadd.f32 0.0, %v2226
  %v2228 = vpop.f32.mrb[0].mxu0
  %2229 = vmatprep.mubr.bf16.mxu0 0
  %2230 = vmatmul.mubr.bf16.gmra.mrb[0].mxu0 %v1264
  %v2231 = vpop.f32.mrb[0].mxu0
  %v2232 = vadd.f32 0.0, %v2231
  %v2233 = vpop.f32.mrb[0].mxu0
  %v2234 = vpop.f32.mrb[0].mxu0
  %v2235 = vadd.f32 0.0, %v2234
  %v2236 = vpop.f32.mrb[0].mxu0
  %2237 = vmatprep.mubr.bf16.mxu0 0
  %2238 = vmatmul.mubr.bf16.gmra.mrb[0].mxu0 %v1267
  %v2239 = vpop.f32.mrb[0].mxu0
  %v2240 = vadd.f32 0.0, %v2239
  %v2241 = vpop.f32.mrb[0].mxu0
  %v2242 = vpop.f32.mrb[0].mxu0
  %v2243 = vadd.f32 0.0, %v2242
  %v2244 = vpop.f32.mrb[0].mxu0
  %2245 = vmatprep.mubr.bf16.mxu0 0
  %2246 = vmatmul.mubr.bf16.gmra.mrb[0].mxu0 %v1270
  %v2247 = vpop.f32.mrb[0].mxu0
  %v2248 = vadd.f32 0.0, %v2247
  %v2249 = vpop.f32.mrb[0].mxu0
  %v2250 = vpop.f32.mrb[0].mxu0
  %v2251 = vadd.f32 0.0, %v2250
  %v2252 = vpop.f32.mrb[0].mxu0
  %2253 = vmatprep.mubr.bf16.mxu0 0
  %2254 = vmatmul.mubr.bf16.gmra.mrb[0].mxu0 %v1273
  %v2255 = vpop.f32.mrb[0].mxu0
  %v2256 = vadd.f32 0.0, %v2255
  %v2257 = vpop.f32.mrb[0].mxu0
  %v2258 = vpop.f32.mrb[0].mxu0
  %v2259 = vadd.f32 0.0, %v2258
  %v2260 = vpop.f32.mrb[0].mxu0
  %2261 = vmatprep.mubr.bf16.mxu0 0
  %2262 = vmatmul.mubr.bf16.gmra.mrb[0].mxu0 %v1276
  %v2263 = vpop.f32.mrb[0].mxu0
  %v2264 = vadd.f32 0.0, %v2263
  %v2265 = vpop.f32.mrb[0].mxu0
  %v2266 = vpop.f32.mrb[0].mxu0
  %v2267 = vadd.f32 0.0, %v2266
  %v2268 = vpop.f32.mrb[0].mxu0
  %2269 = vmatprep.mubr.bf16.mxu0 0
  %2270 = vmatmul.mubr.bf16.gmra.mrb[0].mxu0 %v1279
  %v2271 = vpop.f32.mrb[0].mxu0
  %v2272 = vadd.f32 0.0, %v2271
  %v2273 = vpop.f32.mrb[0].mxu0
  %v2274 = vpop.f32.mrb[0].mxu0
  %v2275 = vadd.f32 0.0, %v2274
  %v2276 = vpop.f32.mrb[0].mxu0
  %2277 = vmatprep.mubr.bf16.mxu0 0
  %2278 = vmatmul.mubr.bf16.gmra.mrb[0].mxu0 %v1282
  %v2279 = vpop.f32.mrb[0].mxu0
  %v2280 = vadd.f32 0.0, %v2279
  %v2281 = vpop.f32.mrb[0].mxu0
  %v2282 = vpop.f32.mrb[0].mxu0
  %v2283 = vadd.f32 0.0, %v2282
  %v2284 = vpop.f32.mrb[0].mxu0
  %2285 = vmatprep.mubr.bf16.mxu0 0
  %2286 = vmatmul.mubr.bf16.gmra.mrb[0].mxu0 %v1285
  %v2287 = vpop.f32.mrb[0].mxu0
  %v2288 = vadd.f32 0.0, %v2287
  %v2289 = vpop.f32.mrb[0].mxu0
  %v2290 = vpop.f32.mrb[0].mxu0
  %v2291 = vadd.f32 0.0, %v2290
  %v2292 = vpop.f32.mrb[0].mxu0
  %2293 = vmatprep.mubr.bf16.mxu0 0
  %2294 = vmatmul.mubr.bf16.gmra.mrb[0].mxu0 %v1288
  %v2295 = vpop.f32.mrb[0].mxu0
  %v2296 = vadd.f32 0.0, %v2295
  %v2297 = vpop.f32.mrb[0].mxu0
  %v2298 = vpop.f32.mrb[0].mxu0
  %v2299 = vadd.f32 0.0, %v2298
  %v2300 = vpop.f32.mrb[0].mxu0
  %2301 = vmatprep.mubr.bf16.mxu0 0
  %2302 = vmatmul.mubr.bf16.gmra.mrb[0].mxu0 %v1291
  %v2303 = vpop.f32.mrb[0].mxu0
  %v2304 = vadd.f32 0.0, %v2303
  %v2305 = vpop.f32.mrb[0].mxu0
  %v2306 = vpop.f32.mrb[0].mxu0
  %v2307 = vadd.f32 0.0, %v2306
  %v2308 = vpop.f32.mrb[0].mxu0
  %2309 = vmatprep.mubr.bf16.mxu0 0
  %2310 = vmatmul.mubr.bf16.gmra.mrb[0].mxu0 %v1294
  %v2311 = vpop.f32.mrb[0].mxu0
  %v2312 = vadd.f32 0.0, %v2311
  %v2313 = vpop.f32.mrb[0].mxu0
  %v2314 = vpop.f32.mrb[0].mxu0
  %v2315 = vadd.f32 0.0, %v2314
  %v2316 = vpop.f32.mrb[0].mxu0
  %2317 = vmatprep.mubr.bf16.mxu0 0
  %2318 = vmatmul.mubr.bf16.gmra.mrb[0].mxu0 %v1297
  %v2319 = vpop.f32.mrb[0].mxu0
  %v2320 = vadd.f32 0.0, %v2319
  %v2321 = vpop.f32.mrb[0].mxu0
  %v2322 = vpop.f32.mrb[0].mxu0
  %v2323 = vadd.f32 0.0, %v2322
  %v2324 = vpop.f32.mrb[0].mxu0
  %2325 = vmatprep.mubr.bf16.mxu0 0
  %2326 = vmatmul.mubr.bf16.gmra.mrb[0].mxu0 %v1300
  %v2327 = vpop.f32.mrb[0].mxu0
  %v2328 = vadd.f32 0.0, %v2327
  %v2329 = vpop.f32.mrb[0].mxu0
  %v2330 = vpop.f32.mrb[0].mxu0
  %v2331 = vadd.f32 0.0, %v2330
  %v2332 = vpop.f32.mrb[0].mxu0
  %2333 = vmatprep.mubr.bf16.mxu0 0
  %2334 = vmatmul.mubr.bf16.gmra.mrb[0].mxu0 %v1303
  %v2335 = vpop.f32.mrb[0].mxu0
  %v2336 = vadd.f32 0.0, %v2335
  %v2337 = vpop.f32.mrb[0].mxu0
  %v2338 = vpop.f32.mrb[0].mxu0
  %v2339 = vadd.f32 0.0, %v2338
  %v2340 = vpop.f32.mrb[0].mxu0
  %2341 = vmatprep.mubr.bf16.mxu0 0
  %2342 = vmatmul.mubr.bf16.gmra.mrb[0].mxu0 %v1306
  %v2343 = vpop.f32.mrb[0].mxu0
  %v2344 = vadd.f32 0.0, %v2343
  %v2345 = vpop.f32.mrb[0].mxu0
  %v2346 = vpop.f32.mrb[0].mxu0
  %v2347 = vadd.f32 0.0, %v2346
  %v2348 = vpop.f32.mrb[0].mxu0
  %2349 = vmatprep.mubr.bf16.mxu0 0
  %2350 = vmatmul.mubr.bf16.gmra.mrb[0].mxu0 %v1309
  %v2351 = vpop.f32.mrb[0].mxu0
  %v2352 = vadd.f32 0.0, %v2351
  %v2353 = vpop.f32.mrb[0].mxu0
  %v2354 = vpop.f32.mrb[0].mxu0
  %v2355 = vadd.f32 0.0, %v2354
  %v2356 = vpop.f32.mrb[0].mxu0
  %2357 = vmatprep.mubr.bf16.mxu0 0
  %2358 = vmatmul.mubr.bf16.gmra.mrb[0].mxu0 %v1312
  %v2359 = vpop.f32.mrb[0].mxu0
  %v2360 = vadd.f32 0.0, %v2359
  %v2361 = vpop.f32.mrb[0].mxu0
  %v2362 = vpop.f32.mrb[0].mxu0
  %v2363 = vadd.f32 0.0, %v2362
  %v2364 = vpop.f32.mrb[0].mxu0
  %2365 = vmatprep.mubr.bf16.mxu0 0
  %2366 = vmatmul.mubr.bf16.gmra.mrb[0].mxu0 %v1315
  %v2367 = vpop.f32.mrb[0].mxu0
  %v2368 = vadd.f32 0.0, %v2367
  %v2369 = vpop.f32.mrb[0].mxu0
  %v2370 = vpop.f32.mrb[0].mxu0
  %v2371 = vadd.f32 0.0, %v2370
  %v2372 = vpop.f32.mrb[0].mxu0
  %2373 = vdwg.mxu0
  %v2374 = vmul.f32 %v1352, 0.2
  %v2375 = vmul.f32 %v1355, 0.2
  %v2376 = vmul.f32 %v1360, 0.2
  %v2377 = vmul.f32 %v1363, 0.2
  %v2378 = vmul.f32 %v1368, 0.2
  %v2379 = vmul.f32 %v1371, 0.2
  %v2380 = vmul.f32 %v1376, 0.2
  %v2381 = vmul.f32 %v1379, 0.2
  %v2382 = vmul.f32 %v1384, 0.2
  %v2383 = vmul.f32 %v1387, 0.2
  %v2384 = vmul.f32 %v1392, 0.2
  %v2385 = vmul.f32 %v1395, 0.2
  %v2386 = vmul.f32 %v1400, 0.2
  %v2387 = vmul.f32 %v1403, 0.2
  %v2388 = vmul.f32 %v1408, 0.2
  %v2389 = vmul.f32 %v1411, 0.2
  %v2390 = vmul.f32 %v1416, 0.2
  %v2391 = vmul.f32 %v1419, 0.2
  %v2392 = vmul.f32 %v1424, 0.2
  %v2393 = vmul.f32 %v1427, 0.2
  %v2394 = vmul.f32 %v1432, 0.2
  %v2395 = vmul.f32 %v1435, 0.2
  %v2396 = vmul.f32 %v1440, 0.2
  %v2397 = vmul.f32 %v1443, 0.2
  %v2398 = vmul.f32 %v1448, 0.2
  %v2399 = vmul.f32 %v1451, 0.2
  %v2400 = vmul.f32 %v1456, 0.2
  %v2401 = vmul.f32 %v1459, 0.2
  %v2402 = vmul.f32 %v1464, 0.2
  %v2403 = vmul.f32 %v1467, 0.2
  %v2404 = vmul.f32 %v1472, 0.2
  %v2405 = vmul.f32 %v1475, 0.2
  %v2406 = vmul.f32 %v1480, 0.2
  %v2407 = vmul.f32 %v1483, 0.2
  %v2408 = vmul.f32 %v1488, 0.2
  %v2409 = vmul.f32 %v1491, 0.2
  %v2410 = vmul.f32 %v1496, 0.2
  %v2411 = vmul.f32 %v1499, 0.2
  %v2412 = vmul.f32 %v1504, 0.2
  %v2413 = vmul.f32 %v1507, 0.2
  %v2414 = vmul.f32 %v1512, 0.2
  %v2415 = vmul.f32 %v1515, 0.2
  %v2416 = vmul.f32 %v1520, 0.2
  %v2417 = vmul.f32 %v1523, 0.2
  %v2418 = vmul.f32 %v1528, 0.2
  %v2419 = vmul.f32 %v1531, 0.2
  %v2420 = vmul.f32 %v1536, 0.2
  %v2421 = vmul.f32 %v1539, 0.2
  %v2422 = vmul.f32 %v1544, 0.2
  %v2423 = vmul.f32 %v1547, 0.2
  %v2424 = vmul.f32 %v1552, 0.2
  %v2425 = vmul.f32 %v1555, 0.2
  %v2426 = vmul.f32 %v1560, 0.2
  %v2427 = vmul.f32 %v1563, 0.2
  %v2428 = vmul.f32 %v1568, 0.2
  %v2429 = vmul.f32 %v1571, 0.2
  %v2430 = vmul.f32 %v1576, 0.2
  %v2431 = vmul.f32 %v1579, 0.2
  %v2432 = vmul.f32 %v1584, 0.2
  %v2433 = vmul.f32 %v1587, 0.2
  %v2434 = vmul.f32 %v1592, 0.2
  %v2435 = vmul.f32 %v1595, 0.2
  %v2436 = vmul.f32 %v1600, 0.2
  %v2437 = vmul.f32 %v1603, 0.2
  %v2438 = vmul.f32 %v1608, 0.2
  %v2439 = vmul.f32 %v1611, 0.2
  %v2440 = vmul.f32 %v1616, 0.2
  %v2441 = vmul.f32 %v1619, 0.2
  %v2442 = vmul.f32 %v1624, 0.2
  %v2443 = vmul.f32 %v1627, 0.2
  %v2444 = vmul.f32 %v1632, 0.2
  %v2445 = vmul.f32 %v1635, 0.2
  %v2446 = vmul.f32 %v1640, 0.2
  %v2447 = vmul.f32 %v1643, 0.2
  %v2448 = vmul.f32 %v1648, 0.2
  %v2449 = vmul.f32 %v1651, 0.2
  %v2450 = vmul.f32 %v1656, 0.2
  %v2451 = vmul.f32 %v1659, 0.2
  %v2452 = vmul.f32 %v1664, 0.2
  %v2453 = vmul.f32 %v1667, 0.2
  %v2454 = vmul.f32 %v1672, 0.2
  %v2455 = vmul.f32 %v1675, 0.2
  %v2456 = vmul.f32 %v1680, 0.2
  %v2457 = vmul.f32 %v1683, 0.2
  %v2458 = vmul.f32 %v1688, 0.2
  %v2459 = vmul.f32 %v1691, 0.2
  %v2460 = vmul.f32 %v1696, 0.2
  %v2461 = vmul.f32 %v1699, 0.2
  %v2462 = vmul.f32 %v1704, 0.2
  %v2463 = vmul.f32 %v1707, 0.2
  %v2464 = vmul.f32 %v1712, 0.2
  %v2465 = vmul.f32 %v1715, 0.2
  %v2466 = vmul.f32 %v1720, 0.2
  %v2467 = vmul.f32 %v1723, 0.2
  %v2468 = vmul.f32 %v1728, 0.2
  %v2469 = vmul.f32 %v1731, 0.2
  %v2470 = vmul.f32 %v1736, 0.2
  %v2471 = vmul.f32 %v1739, 0.2
  %v2472 = vmul.f32 %v1744, 0.2
  %v2473 = vmul.f32 %v1747, 0.2
  %v2474 = vmul.f32 %v1752, 0.2
  %v2475 = vmul.f32 %v1755, 0.2
  %v2476 = vmul.f32 %v1760, 0.2
  %v2477 = vmul.f32 %v1763, 0.2
  %v2478 = vmul.f32 %v1768, 0.2
  %v2479 = vmul.f32 %v1771, 0.2
  %v2480 = vmul.f32 %v1776, 0.2
  %v2481 = vmul.f32 %v1779, 0.2
  %v2482 = vmul.f32 %v1784, 0.2
  %v2483 = vmul.f32 %v1787, 0.2
  %v2484 = vmul.f32 %v1792, 0.2
  %v2485 = vmul.f32 %v1795, 0.2
  %v2486 = vmul.f32 %v1800, 0.2
  %v2487 = vmul.f32 %v1803, 0.2
  %v2488 = vmul.f32 %v1808, 0.2
  %v2489 = vmul.f32 %v1811, 0.2
  %v2490 = vmul.f32 %v1816, 0.2
  %v2491 = vmul.f32 %v1819, 0.2
  %v2492 = vmul.f32 %v1824, 0.2
  %v2493 = vmul.f32 %v1827, 0.2
  %v2494 = vmul.f32 %v1832, 0.2
  %v2495 = vmul.f32 %v1835, 0.2
  %v2496 = vmul.f32 %v1840, 0.2
  %v2497 = vmul.f32 %v1843, 0.2
  %v2498 = vmul.f32 %v1848, 0.2
  %v2499 = vmul.f32 %v1851, 0.2
  %v2500 = vmul.f32 %v1856, 0.2
  %v2501 = vmul.f32 %v1859, 0.2
  %v2502 = vmul.f32 %v1864, 0.2
  %v2503 = vmul.f32 %v1867, 0.2
  %v2504 = vmul.f32 %v1872, 0.2
  %v2505 = vmul.f32 %v1875, 0.2
  %v2506 = vmul.f32 %v1880, 0.2
  %v2507 = vmul.f32 %v1883, 0.2
  %v2508 = vmul.f32 %v1888, 0.2
  %v2509 = vmul.f32 %v1891, 0.2
  %v2510 = vmul.f32 %v1896, 0.2
  %v2511 = vmul.f32 %v1899, 0.2
  %v2512 = vmul.f32 %v1904, 0.2
  %v2513 = vmul.f32 %v1907, 0.2
  %v2514 = vmul.f32 %v1912, 0.2
  %v2515 = vmul.f32 %v1915, 0.2
  %v2516 = vmul.f32 %v1920, 0.2
  %v2517 = vmul.f32 %v1923, 0.2
  %v2518 = vmul.f32 %v1928, 0.2
  %v2519 = vmul.f32 %v1931, 0.2
  %v2520 = vmul.f32 %v1936, 0.2
  %v2521 = vmul.f32 %v1939, 0.2
  %v2522 = vmul.f32 %v1944, 0.2
  %v2523 = vmul.f32 %v1947, 0.2
  %v2524 = vmul.f32 %v1952, 0.2
  %v2525 = vmul.f32 %v1955, 0.2
  %v2526 = vmul.f32 %v1960, 0.2
  %v2527 = vmul.f32 %v1963, 0.2
  %v2528 = vmul.f32 %v1968, 0.2
  %v2529 = vmul.f32 %v1971, 0.2
  %v2530 = vmul.f32 %v1976, 0.2
  %v2531 = vmul.f32 %v1979, 0.2
  %v2532 = vmul.f32 %v1984, 0.2
  %v2533 = vmul.f32 %v1987, 0.2
  %v2534 = vmul.f32 %v1992, 0.2
  %v2535 = vmul.f32 %v1995, 0.2
  %v2536 = vmul.f32 %v2000, 0.2
  %v2537 = vmul.f32 %v2003, 0.2
  %v2538 = vmul.f32 %v2008, 0.2
  %v2539 = vmul.f32 %v2011, 0.2
  %v2540 = vmul.f32 %v2016, 0.2
  %v2541 = vmul.f32 %v2019, 0.2
  %v2542 = vmul.f32 %v2024, 0.2
  %v2543 = vmul.f32 %v2027, 0.2
  %v2544 = vmul.f32 %v2032, 0.2
  %v2545 = vmul.f32 %v2035, 0.2
  %v2546 = vmul.f32 %v2040, 0.2
  %v2547 = vmul.f32 %v2043, 0.2
  %v2548 = vmul.f32 %v2048, 0.2
  %v2549 = vmul.f32 %v2051, 0.2
  %v2550 = vmul.f32 %v2056, 0.2
  %v2551 = vmul.f32 %v2059, 0.2
  %v2552 = vmul.f32 %v2064, 0.2
  %v2553 = vmul.f32 %v2067, 0.2
  %v2554 = vmul.f32 %v2072, 0.2
  %v2555 = vmul.f32 %v2075, 0.2
  %v2556 = vmul.f32 %v2080, 0.2
  %v2557 = vmul.f32 %v2083, 0.2
  %v2558 = vmul.f32 %v2088, 0.2
  %v2559 = vmul.f32 %v2091, 0.2
  %v2560 = vmul.f32 %v2096, 0.2
  %v2561 = vmul.f32 %v2099, 0.2
  %v2562 = vmul.f32 %v2104, 0.2
  %v2563 = vmul.f32 %v2107, 0.2
  %v2564 = vmul.f32 %v2112, 0.2
  %v2565 = vmul.f32 %v2115, 0.2
  %v2566 = vmul.f32 %v2120, 0.2
  %v2567 = vmul.f32 %v2123, 0.2
  %v2568 = vmul.f32 %v2128, 0.2
  %v2569 = vmul.f32 %v2131, 0.2
  %v2570 = vmul.f32 %v2136, 0.2
  %v2571 = vmul.f32 %v2139, 0.2
  %v2572 = vmul.f32 %v2144, 0.2
  %v2573 = vmul.f32 %v2147, 0.2
  %v2574 = vmul.f32 %v2152, 0.2
  %v2575 = vmul.f32 %v2155, 0.2
  %v2576 = vmul.f32 %v2160, 0.2
  %v2577 = vmul.f32 %v2163, 0.2
  %v2578 = vmul.f32 %v2168, 0.2
  %v2579 = vmul.f32 %v2171, 0.2
  %v2580 = vmul.f32 %v2176, 0.2
  %v2581 = vmul.f32 %v2179, 0.2
  %v2582 = vmul.f32 %v2184, 0.2
  %v2583 = vmul.f32 %v2187, 0.2
  %v2584 = vmul.f32 %v2192, 0.2
  %v2585 = vmul.f32 %v2195, 0.2
  %v2586 = vmul.f32 %v2200, 0.2
  %v2587 = vmul.f32 %v2203, 0.2
  %v2588 = vmul.f32 %v2208, 0.2
  %v2589 = vmul.f32 %v2211, 0.2
  %v2590 = vmul.f32 %v2216, 0.2
  %v2591 = vmul.f32 %v2219, 0.2
  %v2592 = vmul.f32 %v2224, 0.2
  %v2593 = vmul.f32 %v2227, 0.2
  %v2594 = vmul.f32 %v2232, 0.2
  %v2595 = vmul.f32 %v2235, 0.2
  %v2596 = vmul.f32 %v2240, 0.2
  %v2597 = vmul.f32 %v2243, 0.2
  %v2598 = vmul.f32 %v2248, 0.2
  %v2599 = vmul.f32 %v2251, 0.2
  %v2600 = vmul.f32 %v2256, 0.2
  %v2601 = vmul.f32 %v2259, 0.2
  %v2602 = vmul.f32 %v2264, 0.2
  %v2603 = vmul.f32 %v2267, 0.2
  %v2604 = vmul.f32 %v2272, 0.2
  %v2605 = vmul.f32 %v2275, 0.2
  %v2606 = vmul.f32 %v2280, 0.2
  %v2607 = vmul.f32 %v2283, 0.2
  %v2608 = vmul.f32 %v2288, 0.2
  %v2609 = vmul.f32 %v2291, 0.2
  %v2610 = vmul.f32 %v2296, 0.2
  %v2611 = vmul.f32 %v2299, 0.2
  %v2612 = vmul.f32 %v2304, 0.2
  %v2613 = vmul.f32 %v2307, 0.2
  %v2614 = vmul.f32 %v2312, 0.2
  %v2615 = vmul.f32 %v2315, 0.2
  %v2616 = vmul.f32 %v2320, 0.2
  %v2617 = vmul.f32 %v2323, 0.2
  %v2618 = vmul.f32 %v2328, 0.2
  %v2619 = vmul.f32 %v2331, 0.2
  %v2620 = vmul.f32 %v2336, 0.2
  %v2621 = vmul.f32 %v2339, 0.2
  %v2622 = vmul.f32 %v2344, 0.2
  %v2623 = vmul.f32 %v2347, 0.2
  %v2624 = vmul.f32 %v2352, 0.2
  %v2625 = vmul.f32 %v2355, 0.2
  %v2626 = vmul.f32 %v2360, 0.2
  %v2627 = vmul.f32 %v2363, 0.2
  %v2628 = vmul.f32 %v2368, 0.2
  %v2629 = vmul.f32 %v2371, 0.2
  %v2630 = vmax.f32 %v1352, %v2374
  %v2631 = vmax.f32 %v1355, %v2375
  %v2632 = vmax.f32 %v1360, %v2376
  %v2633 = vmax.f32 %v1363, %v2377
  %v2634 = vmax.f32 %v1368, %v2378
  %v2635 = vmax.f32 %v1371, %v2379
  %v2636 = vmax.f32 %v1376, %v2380
  %v2637 = vmax.f32 %v1379, %v2381
  %v2638 = vmax.f32 %v1384, %v2382
  %v2639 = vmax.f32 %v1387, %v2383
  %v2640 = vmax.f32 %v1392, %v2384
  %v2641 = vmax.f32 %v1395, %v2385
  %v2642 = vmax.f32 %v1400, %v2386
  %v2643 = vmax.f32 %v1403, %v2387
  %v2644 = vmax.f32 %v1408, %v2388
  %v2645 = vmax.f32 %v1411, %v2389
  %v2646 = vmax.f32 %v1416, %v2390
  %v2647 = vmax.f32 %v1419, %v2391
  %v2648 = vmax.f32 %v1424, %v2392
  %v2649 = vmax.f32 %v1427, %v2393
  %v2650 = vmax.f32 %v1432, %v2394
  %v2651 = vmax.f32 %v1435, %v2395
  %v2652 = vmax.f32 %v1440, %v2396
  %v2653 = vmax.f32 %v1443, %v2397
  %v2654 = vmax.f32 %v1448, %v2398
  %v2655 = vmax.f32 %v1451, %v2399
  %v2656 = vmax.f32 %v1456, %v2400
  %v2657 = vmax.f32 %v1459, %v2401
  %v2658 = vmax.f32 %v1464, %v2402
  %v2659 = vmax.f32 %v1467, %v2403
  %v2660 = vmax.f32 %v1472, %v2404
  %v2661 = vmax.f32 %v1475, %v2405
  %v2662 = vmax.f32 %v1480, %v2406
  %v2663 = vmax.f32 %v1483, %v2407
  %v2664 = vmax.f32 %v1488, %v2408
  %v2665 = vmax.f32 %v1491, %v2409
  %v2666 = vmax.f32 %v1496, %v2410
  %v2667 = vmax.f32 %v1499, %v2411
  %v2668 = vmax.f32 %v1504, %v2412
  %v2669 = vmax.f32 %v1507, %v2413
  %v2670 = vmax.f32 %v1512, %v2414
  %v2671 = vmax.f32 %v1515, %v2415
  %v2672 = vmax.f32 %v1520, %v2416
  %v2673 = vmax.f32 %v1523, %v2417
  %v2674 = vmax.f32 %v1528, %v2418
  %v2675 = vmax.f32 %v1531, %v2419
  %v2676 = vmax.f32 %v1536, %v2420
  %v2677 = vmax.f32 %v1539, %v2421
  %v2678 = vmax.f32 %v1544, %v2422
  %v2679 = vmax.f32 %v1547, %v2423
  %v2680 = vmax.f32 %v1552, %v2424
  %v2681 = vmax.f32 %v1555, %v2425
  %v2682 = vmax.f32 %v1560, %v2426
  %v2683 = vmax.f32 %v1563, %v2427
  %v2684 = vmax.f32 %v1568, %v2428
  %v2685 = vmax.f32 %v1571, %v2429
  %v2686 = vmax.f32 %v1576, %v2430
  %v2687 = vmax.f32 %v1579, %v2431
  %v2688 = vmax.f32 %v1584, %v2432
  %v2689 = vmax.f32 %v1587, %v2433
  %v2690 = vmax.f32 %v1592, %v2434
  %v2691 = vmax.f32 %v1595, %v2435
  %v2692 = vmax.f32 %v1600, %v2436
  %v2693 = vmax.f32 %v1603, %v2437
  %v2694 = vmax.f32 %v1608, %v2438
  %v2695 = vmax.f32 %v1611, %v2439
  %v2696 = vmax.f32 %v1616, %v2440
  %v2697 = vmax.f32 %v1619, %v2441
  %v2698 = vmax.f32 %v1624, %v2442
  %v2699 = vmax.f32 %v1627, %v2443
  %v2700 = vmax.f32 %v1632, %v2444
  %v2701 = vmax.f32 %v1635, %v2445
  %v2702 = vmax.f32 %v1640, %v2446
  %v2703 = vmax.f32 %v1643, %v2447
  %v2704 = vmax.f32 %v1648, %v2448
  %v2705 = vmax.f32 %v1651, %v2449
  %v2706 = vmax.f32 %v1656, %v2450
  %v2707 = vmax.f32 %v1659, %v2451
  %v2708 = vmax.f32 %v1664, %v2452
  %v2709 = vmax.f32 %v1667, %v2453
  %v2710 = vmax.f32 %v1672, %v2454
  %v2711 = vmax.f32 %v1675, %v2455
  %v2712 = vmax.f32 %v1680, %v2456
  %v2713 = vmax.f32 %v1683, %v2457
  %v2714 = vmax.f32 %v1688, %v2458
  %v2715 = vmax.f32 %v1691, %v2459
  %v2716 = vmax.f32 %v1696, %v2460
  %v2717 = vmax.f32 %v1699, %v2461
  %v2718 = vmax.f32 %v1704, %v2462
  %v2719 = vmax.f32 %v1707, %v2463
  %v2720 = vmax.f32 %v1712, %v2464
  %v2721 = vmax.f32 %v1715, %v2465
  %v2722 = vmax.f32 %v1720, %v2466
  %v2723 = vmax.f32 %v1723, %v2467
  %v2724 = vmax.f32 %v1728, %v2468
  %v2725 = vmax.f32 %v1731, %v2469
  %v2726 = vmax.f32 %v1736, %v2470
  %v2727 = vmax.f32 %v1739, %v2471
  %v2728 = vmax.f32 %v1744, %v2472
  %v2729 = vmax.f32 %v1747, %v2473
  %v2730 = vmax.f32 %v1752, %v2474
  %v2731 = vmax.f32 %v1755, %v2475
  %v2732 = vmax.f32 %v1760, %v2476
  %v2733 = vmax.f32 %v1763, %v2477
  %v2734 = vmax.f32 %v1768, %v2478
  %v2735 = vmax.f32 %v1771, %v2479
  %v2736 = vmax.f32 %v1776, %v2480
  %v2737 = vmax.f32 %v1779, %v2481
  %v2738 = vmax.f32 %v1784, %v2482
  %v2739 = vmax.f32 %v1787, %v2483
  %v2740 = vmax.f32 %v1792, %v2484
  %v2741 = vmax.f32 %v1795, %v2485
  %v2742 = vmax.f32 %v1800, %v2486
  %v2743 = vmax.f32 %v1803, %v2487
  %v2744 = vmax.f32 %v1808, %v2488
  %v2745 = vmax.f32 %v1811, %v2489
  %v2746 = vmax.f32 %v1816, %v2490
  %v2747 = vmax.f32 %v1819, %v2491
  %v2748 = vmax.f32 %v1824, %v2492
  %v2749 = vmax.f32 %v1827, %v2493
  %v2750 = vmax.f32 %v1832, %v2494
  %v2751 = vmax.f32 %v1835, %v2495
  %v2752 = vmax.f32 %v1840, %v2496
  %v2753 = vmax.f32 %v1843, %v2497
  %v2754 = vmax.f32 %v1848, %v2498
  %v2755 = vmax.f32 %v1851, %v2499
  %v2756 = vmax.f32 %v1856, %v2500
  %v2757 = vmax.f32 %v1859, %v2501
  %v2758 = vmax.f32 %v1864, %v2502
  %v2759 = vmax.f32 %v1867, %v2503
  %v2760 = vmax.f32 %v1872, %v2504
  %v2761 = vmax.f32 %v1875, %v2505
  %v2762 = vmax.f32 %v1880, %v2506
  %v2763 = vmax.f32 %v1883, %v2507
  %v2764 = vmax.f32 %v1888, %v2508
  %v2765 = vmax.f32 %v1891, %v2509
  %v2766 = vmax.f32 %v1896, %v2510
  %v2767 = vmax.f32 %v1899, %v2511
  %v2768 = vmax.f32 %v1904, %v2512
  %v2769 = vmax.f32 %v1907, %v2513
  %v2770 = vmax.f32 %v1912, %v2514
  %v2771 = vmax.f32 %v1915, %v2515
  %v2772 = vmax.f32 %v1920, %v2516
  %v2773 = vmax.f32 %v1923, %v2517
  %v2774 = vmax.f32 %v1928, %v2518
  %v2775 = vmax.f32 %v1931, %v2519
  %v2776 = vmax.f32 %v1936, %v2520
  %v2777 = vmax.f32 %v1939, %v2521
  %v2778 = vmax.f32 %v1944, %v2522
  %v2779 = vmax.f32 %v1947, %v2523
  %v2780 = vmax.f32 %v1952, %v2524
  %v2781 = vmax.f32 %v1955, %v2525
  %v2782 = vmax.f32 %v1960, %v2526
  %v2783 = vmax.f32 %v1963, %v2527
  %v2784 = vmax.f32 %v1968, %v2528
  %v2785 = vmax.f32 %v1971, %v2529
  %v2786 = vmax.f32 %v1976, %v2530
  %v2787 = vmax.f32 %v1979, %v2531
  %v2788 = vmax.f32 %v1984, %v2532
  %v2789 = vmax.f32 %v1987, %v2533
  %v2790 = vmax.f32 %v1992, %v2534
  %v2791 = vmax.f32 %v1995, %v2535
  %v2792 = vmax.f32 %v2000, %v2536
  %v2793 = vmax.f32 %v2003, %v2537
  %v2794 = vmax.f32 %v2008, %v2538
  %v2795 = vmax.f32 %v2011, %v2539
  %v2796 = vmax.f32 %v2016, %v2540
  %v2797 = vmax.f32 %v2019, %v2541
  %v2798 = vmax.f32 %v2024, %v2542
  %v2799 = vmax.f32 %v2027, %v2543
  %v2800 = vmax.f32 %v2032, %v2544
  %v2801 = vmax.f32 %v2035, %v2545
  %v2802 = vmax.f32 %v2040, %v2546
  %v2803 = vmax.f32 %v2043, %v2547
  %v2804 = vmax.f32 %v2048, %v2548
  %v2805 = vmax.f32 %v2051, %v2549
  %v2806 = vmax.f32 %v2056, %v2550
  %v2807 = vmax.f32 %v2059, %v2551
  %v2808 = vmax.f32 %v2064, %v2552
  %v2809 = vmax.f32 %v2067, %v2553
  %v2810 = vmax.f32 %v2072, %v2554
  %v2811 = vmax.f32 %v2075, %v2555
  %v2812 = vmax.f32 %v2080, %v2556
  %v2813 = vmax.f32 %v2083, %v2557
  %v2814 = vmax.f32 %v2088, %v2558
  %v2815 = vmax.f32 %v2091, %v2559
  %v2816 = vmax.f32 %v2096, %v2560
  %v2817 = vmax.f32 %v2099, %v2561
  %v2818 = vmax.f32 %v2104, %v2562
  %v2819 = vmax.f32 %v2107, %v2563
  %v2820 = vmax.f32 %v2112, %v2564
  %v2821 = vmax.f32 %v2115, %v2565
  %v2822 = vmax.f32 %v2120, %v2566
  %v2823 = vmax.f32 %v2123, %v2567
  %v2824 = vmax.f32 %v2128, %v2568
  %v2825 = vmax.f32 %v2131, %v2569
  %v2826 = vmax.f32 %v2136, %v2570
  %v2827 = vmax.f32 %v2139, %v2571
  %v2828 = vmax.f32 %v2144, %v2572
  %v2829 = vmax.f32 %v2147, %v2573
  %v2830 = vmax.f32 %v2152, %v2574
  %v2831 = vmax.f32 %v2155, %v2575
  %v2832 = vmax.f32 %v2160, %v2576
  %v2833 = vmax.f32 %v2163, %v2577
  %v2834 = vmax.f32 %v2168, %v2578
  %v2835 = vmax.f32 %v2171, %v2579
  %v2836 = vmax.f32 %v2176, %v2580
  %v2837 = vmax.f32 %v2179, %v2581
  %v2838 = vmax.f32 %v2184, %v2582
  %v2839 = vmax.f32 %v2187, %v2583
  %v2840 = vmax.f32 %v2192, %v2584
  %v2841 = vmax.f32 %v2195, %v2585
  %v2842 = vmax.f32 %v2200, %v2586
  %v2843 = vmax.f32 %v2203, %v2587
  %v2844 = vmax.f32 %v2208, %v2588
  %v2845 = vmax.f32 %v2211, %v2589
  %v2846 = vmax.f32 %v2216, %v2590
  %v2847 = vmax.f32 %v2219, %v2591
  %v2848 = vmax.f32 %v2224, %v2592
  %v2849 = vmax.f32 %v2227, %v2593
  %v2850 = vmax.f32 %v2232, %v2594
  %v2851 = vmax.f32 %v2235, %v2595
  %v2852 = vmax.f32 %v2240, %v2596
  %v2853 = vmax.f32 %v2243, %v2597
  %v2854 = vmax.f32 %v2248, %v2598
  %v2855 = vmax.f32 %v2251, %v2599
  %v2856 = vmax.f32 %v2256, %v2600
  %v2857 = vmax.f32 %v2259, %v2601
  %v2858 = vmax.f32 %v2264, %v2602
  %v2859 = vmax.f32 %v2267, %v2603
  %v2860 = vmax.f32 %v2272, %v2604
  %v2861 = vmax.f32 %v2275, %v2605
  %v2862 = vmax.f32 %v2280, %v2606
  %v2863 = vmax.f32 %v2283, %v2607
  %v2864 = vmax.f32 %v2288, %v2608
  %v2865 = vmax.f32 %v2291, %v2609
  %v2866 = vmax.f32 %v2296, %v2610
  %v2867 = vmax.f32 %v2299, %v2611
  %v2868 = vmax.f32 %v2304, %v2612
  %v2869 = vmax.f32 %v2307, %v2613
  %v2870 = vmax.f32 %v2312, %v2614
  %v2871 = vmax.f32 %v2315, %v2615
  %v2872 = vmax.f32 %v2320, %v2616
  %v2873 = vmax.f32 %v2323, %v2617
  %v2874 = vmax.f32 %v2328, %v2618
  %v2875 = vmax.f32 %v2331, %v2619
  %v2876 = vmax.f32 %v2336, %v2620
  %v2877 = vmax.f32 %v2339, %v2621
  %v2878 = vmax.f32 %v2344, %v2622
  %v2879 = vmax.f32 %v2347, %v2623
  %v2880 = vmax.f32 %v2352, %v2624
  %v2881 = vmax.f32 %v2355, %v2625
  %v2882 = vmax.f32 %v2360, %v2626
  %v2883 = vmax.f32 %v2363, %v2627
  %v2884 = vmax.f32 %v2368, %v2628
  %v2885 = vmax.f32 %v2371, %v2629
  %v2886 = vpack.c.bf16 %v2631, %v2630
  %v2887 = vpack.c.bf16 %v2633, %v2632
  %v2888 = vpack.c.bf16 %v2635, %v2634
  %v2889 = vpack.c.bf16 %v2637, %v2636
  %v2890 = vpack.c.bf16 %v2639, %v2638
  %v2891 = vpack.c.bf16 %v2641, %v2640
  %v2892 = vpack.c.bf16 %v2643, %v2642
  %v2893 = vpack.c.bf16 %v2645, %v2644
  %v2894 = vpack.c.bf16 %v2647, %v2646
  %v2895 = vpack.c.bf16 %v2649, %v2648
  %v2896 = vpack.c.bf16 %v2651, %v2650
  %v2897 = vpack.c.bf16 %v2653, %v2652
  %v2898 = vpack.c.bf16 %v2655, %v2654
  %v2899 = vpack.c.bf16 %v2657, %v2656
  %v2900 = vpack.c.bf16 %v2659, %v2658
  %v2901 = vpack.c.bf16 %v2661, %v2660
  %v2902 = vpack.c.bf16 %v2663, %v2662
  %v2903 = vpack.c.bf16 %v2665, %v2664
  %v2904 = vpack.c.bf16 %v2667, %v2666
  %v2905 = vpack.c.bf16 %v2669, %v2668
  %v2906 = vpack.c.bf16 %v2671, %v2670
  %v2907 = vpack.c.bf16 %v2673, %v2672
  %v2908 = vpack.c.bf16 %v2675, %v2674
  %v2909 = vpack.c.bf16 %v2677, %v2676
  %v2910 = vpack.c.bf16 %v2679, %v2678
  %v2911 = vpack.c.bf16 %v2681, %v2680
  %v2912 = vpack.c.bf16 %v2683, %v2682
  %v2913 = vpack.c.bf16 %v2685, %v2684
  %v2914 = vpack.c.bf16 %v2687, %v2686
  %v2915 = vpack.c.bf16 %v2689, %v2688
  %v2916 = vpack.c.bf16 %v2691, %v2690
  %v2917 = vpack.c.bf16 %v2693, %v2692
  %v2918 = vpack.c.bf16 %v2695, %v2694
  %v2919 = vpack.c.bf16 %v2697, %v2696
  %v2920 = vpack.c.bf16 %v2699, %v2698
  %v2921 = vpack.c.bf16 %v2701, %v2700
  %v2922 = vpack.c.bf16 %v2703, %v2702
  %v2923 = vpack.c.bf16 %v2705, %v2704
  %v2924 = vpack.c.bf16 %v2707, %v2706
  %v2925 = vpack.c.bf16 %v2709, %v2708
  %v2926 = vpack.c.bf16 %v2711, %v2710
  %v2927 = vpack.c.bf16 %v2713, %v2712
  %v2928 = vpack.c.bf16 %v2715, %v2714
  %v2929 = vpack.c.bf16 %v2717, %v2716
  %v2930 = vpack.c.bf16 %v2719, %v2718
  %v2931 = vpack.c.bf16 %v2721, %v2720
  %v2932 = vpack.c.bf16 %v2723, %v2722
  %v2933 = vpack.c.bf16 %v2725, %v2724
  %v2934 = vpack.c.bf16 %v2727, %v2726
  %v2935 = vpack.c.bf16 %v2729, %v2728
  %v2936 = vpack.c.bf16 %v2731, %v2730
  %v2937 = vpack.c.bf16 %v2733, %v2732
  %v2938 = vpack.c.bf16 %v2735, %v2734
  %v2939 = vpack.c.bf16 %v2737, %v2736
  %v2940 = vpack.c.bf16 %v2739, %v2738
  %v2941 = vpack.c.bf16 %v2741, %v2740
  %v2942 = vpack.c.bf16 %v2743, %v2742
  %v2943 = vpack.c.bf16 %v2745, %v2744
  %v2944 = vpack.c.bf16 %v2747, %v2746
  %v2945 = vpack.c.bf16 %v2749, %v2748
  %v2946 = vpack.c.bf16 %v2751, %v2750
  %v2947 = vpack.c.bf16 %v2753, %v2752
  %v2948 = vpack.c.bf16 %v2755, %v2754
  %v2949 = vpack.c.bf16 %v2757, %v2756
  %v2950 = vpack.c.bf16 %v2759, %v2758
  %v2951 = vpack.c.bf16 %v2761, %v2760
  %v2952 = vpack.c.bf16 %v2763, %v2762
  %v2953 = vpack.c.bf16 %v2765, %v2764
  %v2954 = vpack.c.bf16 %v2767, %v2766
  %v2955 = vpack.c.bf16 %v2769, %v2768
  %v2956 = vpack.c.bf16 %v2771, %v2770
  %v2957 = vpack.c.bf16 %v2773, %v2772
  %v2958 = vpack.c.bf16 %v2775, %v2774
  %v2959 = vpack.c.bf16 %v2777, %v2776
  %v2960 = vpack.c.bf16 %v2779, %v2778
  %v2961 = vpack.c.bf16 %v2781, %v2780
  %v2962 = vpack.c.bf16 %v2783, %v2782
  %v2963 = vpack.c.bf16 %v2785, %v2784
  %v2964 = vpack.c.bf16 %v2787, %v2786
  %v2965 = vpack.c.bf16 %v2789, %v2788
  %v2966 = vpack.c.bf16 %v2791, %v2790
  %v2967 = vpack.c.bf16 %v2793, %v2792
  %v2968 = vpack.c.bf16 %v2795, %v2794
  %v2969 = vpack.c.bf16 %v2797, %v2796
  %v2970 = vpack.c.bf16 %v2799, %v2798
  %v2971 = vpack.c.bf16 %v2801, %v2800
  %v2972 = vpack.c.bf16 %v2803, %v2802
  %v2973 = vpack.c.bf16 %v2805, %v2804
  %v2974 = vpack.c.bf16 %v2807, %v2806
  %v2975 = vpack.c.bf16 %v2809, %v2808
  %v2976 = vpack.c.bf16 %v2811, %v2810
  %v2977 = vpack.c.bf16 %v2813, %v2812
  %v2978 = vpack.c.bf16 %v2815, %v2814
  %v2979 = vpack.c.bf16 %v2817, %v2816
  %v2980 = vpack.c.bf16 %v2819, %v2818
  %v2981 = vpack.c.bf16 %v2821, %v2820
  %v2982 = vpack.c.bf16 %v2823, %v2822
  %v2983 = vpack.c.bf16 %v2825, %v2824
  %v2984 = vpack.c.bf16 %v2827, %v2826
  %v2985 = vpack.c.bf16 %v2829, %v2828
  %v2986 = vpack.c.bf16 %v2831, %v2830
  %v2987 = vpack.c.bf16 %v2833, %v2832
  %v2988 = vpack.c.bf16 %v2835, %v2834
  %v2989 = vpack.c.bf16 %v2837, %v2836
  %v2990 = vpack.c.bf16 %v2839, %v2838
  %v2991 = vpack.c.bf16 %v2841, %v2840
  %v2992 = vpack.c.bf16 %v2843, %v2842
  %v2993 = vpack.c.bf16 %v2845, %v2844
  %v2994 = vpack.c.bf16 %v2847, %v2846
  %v2995 = vpack.c.bf16 %v2849, %v2848
  %v2996 = vpack.c.bf16 %v2851, %v2850
  %v2997 = vpack.c.bf16 %v2853, %v2852
  %v2998 = vpack.c.bf16 %v2855, %v2854
  %v2999 = vpack.c.bf16 %v2857, %v2856
  %v3000 = vpack.c.bf16 %v2859, %v2858
  %v3001 = vpack.c.bf16 %v2861, %v2860
  %v3002 = vpack.c.bf16 %v2863, %v2862
  %v3003 = vpack.c.bf16 %v2865, %v2864
  %v3004 = vpack.c.bf16 %v2867, %v2866
  %v3005 = vpack.c.bf16 %v2869, %v2868
  %v3006 = vpack.c.bf16 %v2871, %v2870
  %v3007 = vpack.c.bf16 %v2873, %v2872
  %v3008 = vpack.c.bf16 %v2875, %v2874
  %v3009 = vpack.c.bf16 %v2877, %v2876
  %v3010 = vpack.c.bf16 %v2879, %v2878
  %v3011 = vpack.c.bf16 %v2881, %v2880
  %v3012 = vpack.c.bf16 %v2883, %v2882
  %v3013 = vpack.c.bf16 %v2885, %v2884
  %v3142 = vunpack.c.l.b16 %v2886
  %v3143 = vunpack.c.h.b16 %v2886
  %v3144 = vunpack.c.l.b16 %v2887
  %v3145 = vunpack.c.h.b16 %v2887
  %v3146 = vunpack.c.l.b16 %v2888
  %v3147 = vunpack.c.h.b16 %v2888
  %v3148 = vunpack.c.l.b16 %v2889
  %v3149 = vunpack.c.h.b16 %v2889
  %v3150 = vunpack.c.l.b16 %v2890
  %v3151 = vunpack.c.h.b16 %v2890
  %v3152 = vunpack.c.l.b16 %v2891
  %v3153 = vunpack.c.h.b16 %v2891
  %v3154 = vunpack.c.l.b16 %v2892
  %v3155 = vunpack.c.h.b16 %v2892
  %v3156 = vunpack.c.l.b16 %v2893
  %v3157 = vunpack.c.h.b16 %v2893
  %v3158 = vunpack.c.l.b16 %v2894
  %v3159 = vunpack.c.h.b16 %v2894
  %v3160 = vunpack.c.l.b16 %v2895
  %v3161 = vunpack.c.h.b16 %v2895
  %v3162 = vunpack.c.l.b16 %v2896
  %v3163 = vunpack.c.h.b16 %v2896
  %v3164 = vunpack.c.l.b16 %v2897
  %v3165 = vunpack.c.h.b16 %v2897
  %v3166 = vunpack.c.l.b16 %v2898
  %v3167 = vunpack.c.h.b16 %v2898
  %v3168 = vunpack.c.l.b16 %v2899
  %v3169 = vunpack.c.h.b16 %v2899
  %v3170 = vunpack.c.l.b16 %v2900
  %v3171 = vunpack.c.h.b16 %v2900
  %v3172 = vunpack.c.l.b16 %v2901
  %v3173 = vunpack.c.h.b16 %v2901
  %v3174 = vunpack.c.l.b16 %v2902
  %v3175 = vunpack.c.h.b16 %v2902
  %v3176 = vunpack.c.l.b16 %v2903
  %v3177 = vunpack.c.h.b16 %v2903
  %v3178 = vunpack.c.l.b16 %v2904
  %v3179 = vunpack.c.h.b16 %v2904
  %v3180 = vunpack.c.l.b16 %v2905
  %v3181 = vunpack.c.h.b16 %v2905
  %v3182 = vunpack.c.l.b16 %v2906
  %v3183 = vunpack.c.h.b16 %v2906
  %v3184 = vunpack.c.l.b16 %v2907
  %v3185 = vunpack.c.h.b16 %v2907
  %v3186 = vunpack.c.l.b16 %v2908
  %v3187 = vunpack.c.h.b16 %v2908
  %v3188 = vunpack.c.l.b16 %v2909
  %v3189 = vunpack.c.h.b16 %v2909
  %v3190 = vunpack.c.l.b16 %v2910
  %v3191 = vunpack.c.h.b16 %v2910
  %v3192 = vunpack.c.l.b16 %v2911
  %v3193 = vunpack.c.h.b16 %v2911
  %v3194 = vunpack.c.l.b16 %v2912
  %v3195 = vunpack.c.h.b16 %v2912
  %v3196 = vunpack.c.l.b16 %v2913
  %v3197 = vunpack.c.h.b16 %v2913
  %v3198 = vunpack.c.l.b16 %v2914
  %v3199 = vunpack.c.h.b16 %v2914
  %v3200 = vunpack.c.l.b16 %v2915
  %v3201 = vunpack.c.h.b16 %v2915
  %v3202 = vunpack.c.l.b16 %v2916
  %v3203 = vunpack.c.h.b16 %v2916
  %v3204 = vunpack.c.l.b16 %v2917
  %v3205 = vunpack.c.h.b16 %v2917
  %v3206 = vunpack.c.l.b16 %v2918
  %v3207 = vunpack.c.h.b16 %v2918
  %v3208 = vunpack.c.l.b16 %v2919
  %v3209 = vunpack.c.h.b16 %v2919
  %v3210 = vunpack.c.l.b16 %v2920
  %v3211 = vunpack.c.h.b16 %v2920
  %v3212 = vunpack.c.l.b16 %v2921
  %v3213 = vunpack.c.h.b16 %v2921
  %v3214 = vunpack.c.l.b16 %v2922
  %v3215 = vunpack.c.h.b16 %v2922
  %v3216 = vunpack.c.l.b16 %v2923
  %v3217 = vunpack.c.h.b16 %v2923
  %v3218 = vunpack.c.l.b16 %v2924
  %v3219 = vunpack.c.h.b16 %v2924
  %v3220 = vunpack.c.l.b16 %v2925
  %v3221 = vunpack.c.h.b16 %v2925
  %v3222 = vunpack.c.l.b16 %v2926
  %v3223 = vunpack.c.h.b16 %v2926
  %v3224 = vunpack.c.l.b16 %v2927
  %v3225 = vunpack.c.h.b16 %v2927
  %v3226 = vunpack.c.l.b16 %v2928
  %v3227 = vunpack.c.h.b16 %v2928
  %v3228 = vunpack.c.l.b16 %v2929
  %v3229 = vunpack.c.h.b16 %v2929
  %v3230 = vunpack.c.l.b16 %v2930
  %v3231 = vunpack.c.h.b16 %v2930
  %v3232 = vunpack.c.l.b16 %v2931
  %v3233 = vunpack.c.h.b16 %v2931
  %v3234 = vunpack.c.l.b16 %v2932
  %v3235 = vunpack.c.h.b16 %v2932
  %v3236 = vunpack.c.l.b16 %v2933
  %v3237 = vunpack.c.h.b16 %v2933
  %v3238 = vunpack.c.l.b16 %v2934
  %v3239 = vunpack.c.h.b16 %v2934
  %v3240 = vunpack.c.l.b16 %v2935
  %v3241 = vunpack.c.h.b16 %v2935
  %v3242 = vunpack.c.l.b16 %v2936
  %v3243 = vunpack.c.h.b16 %v2936
  %v3244 = vunpack.c.l.b16 %v2937
  %v3245 = vunpack.c.h.b16 %v2937
  %v3246 = vunpack.c.l.b16 %v2938
  %v3247 = vunpack.c.h.b16 %v2938
  %v3248 = vunpack.c.l.b16 %v2939
  %v3249 = vunpack.c.h.b16 %v2939
  %v3250 = vunpack.c.l.b16 %v2940
  %v3251 = vunpack.c.h.b16 %v2940
  %v3252 = vunpack.c.l.b16 %v2941
  %v3253 = vunpack.c.h.b16 %v2941
  %v3254 = vunpack.c.l.b16 %v2942
  %v3255 = vunpack.c.h.b16 %v2942
  %v3256 = vunpack.c.l.b16 %v2943
  %v3257 = vunpack.c.h.b16 %v2943
  %v3258 = vunpack.c.l.b16 %v2944
  %v3259 = vunpack.c.h.b16 %v2944
  %v3260 = vunpack.c.l.b16 %v2945
  %v3261 = vunpack.c.h.b16 %v2945
  %v3262 = vunpack.c.l.b16 %v2946
  %v3263 = vunpack.c.h.b16 %v2946
  %v3264 = vunpack.c.l.b16 %v2947
  %v3265 = vunpack.c.h.b16 %v2947
  %v3266 = vunpack.c.l.b16 %v2948
  %v3267 = vunpack.c.h.b16 %v2948
  %v3268 = vunpack.c.l.b16 %v2949
  %v3269 = vunpack.c.h.b16 %v2949
  %v3270 = vunpack.c.l.b16 %v2950
  %v3271 = vunpack.c.h.b16 %v2950
  %v3272 = vunpack.c.l.b16 %v2951
  %v3273 = vunpack.c.h.b16 %v2951
  %v3274 = vunpack.c.l.b16 %v2952
  %v3275 = vunpack.c.h.b16 %v2952
  %v3276 = vunpack.c.l.b16 %v2953
  %v3277 = vunpack.c.h.b16 %v2953
  %v3278 = vunpack.c.l.b16 %v2954
  %v3279 = vunpack.c.h.b16 %v2954
  %v3280 = vunpack.c.l.b16 %v2955
  %v3281 = vunpack.c.h.b16 %v2955
  %v3282 = vunpack.c.l.b16 %v2956
  %v3283 = vunpack.c.h.b16 %v2956
  %v3284 = vunpack.c.l.b16 %v2957
  %v3285 = vunpack.c.h.b16 %v2957
  %v3286 = vunpack.c.l.b16 %v2958
  %v3287 = vunpack.c.h.b16 %v2958
  %v3288 = vunpack.c.l.b16 %v2959
  %v3289 = vunpack.c.h.b16 %v2959
  %v3290 = vunpack.c.l.b16 %v2960
  %v3291 = vunpack.c.h.b16 %v2960
  %v3292 = vunpack.c.l.b16 %v2961
  %v3293 = vunpack.c.h.b16 %v2961
  %v3294 = vunpack.c.l.b16 %v2962
  %v3295 = vunpack.c.h.b16 %v2962
  %v3296 = vunpack.c.l.b16 %v2963
  %v3297 = vunpack.c.h.b16 %v2963
  %v3298 = vunpack.c.l.b16 %v2964
  %v3299 = vunpack.c.h.b16 %v2964
  %v3300 = vunpack.c.l.b16 %v2965
  %v3301 = vunpack.c.h.b16 %v2965
  %v3302 = vunpack.c.l.b16 %v2966
  %v3303 = vunpack.c.h.b16 %v2966
  %v3304 = vunpack.c.l.b16 %v2967
  %v3305 = vunpack.c.h.b16 %v2967
  %v3306 = vunpack.c.l.b16 %v2968
  %v3307 = vunpack.c.h.b16 %v2968
  %v3308 = vunpack.c.l.b16 %v2969
  %v3309 = vunpack.c.h.b16 %v2969
  %v3310 = vunpack.c.l.b16 %v2970
  %v3311 = vunpack.c.h.b16 %v2970
  %v3312 = vunpack.c.l.b16 %v2971
  %v3313 = vunpack.c.h.b16 %v2971
  %v3314 = vunpack.c.l.b16 %v2972
  %v3315 = vunpack.c.h.b16 %v2972
  %v3316 = vunpack.c.l.b16 %v2973
  %v3317 = vunpack.c.h.b16 %v2973
  %v3318 = vunpack.c.l.b16 %v2974
  %v3319 = vunpack.c.h.b16 %v2974
  %v3320 = vunpack.c.l.b16 %v2975
  %v3321 = vunpack.c.h.b16 %v2975
  %v3322 = vunpack.c.l.b16 %v2976
  %v3323 = vunpack.c.h.b16 %v2976
  %v3324 = vunpack.c.l.b16 %v2977
  %v3325 = vunpack.c.h.b16 %v2977
  %v3326 = vunpack.c.l.b16 %v2978
  %v3327 = vunpack.c.h.b16 %v2978
  %v3328 = vunpack.c.l.b16 %v2979
  %v3329 = vunpack.c.h.b16 %v2979
  %v3330 = vunpack.c.l.b16 %v2980
  %v3331 = vunpack.c.h.b16 %v2980
  %v3332 = vunpack.c.l.b16 %v2981
  %v3333 = vunpack.c.h.b16 %v2981
  %v3334 = vunpack.c.l.b16 %v2982
  %v3335 = vunpack.c.h.b16 %v2982
  %v3336 = vunpack.c.l.b16 %v2983
  %v3337 = vunpack.c.h.b16 %v2983
  %v3338 = vunpack.c.l.b16 %v2984
  %v3339 = vunpack.c.h.b16 %v2984
  %v3340 = vunpack.c.l.b16 %v2985
  %v3341 = vunpack.c.h.b16 %v2985
  %v3342 = vunpack.c.l.b16 %v2986
  %v3343 = vunpack.c.h.b16 %v2986
  %v3344 = vunpack.c.l.b16 %v2987
  %v3345 = vunpack.c.h.b16 %v2987
  %v3346 = vunpack.c.l.b16 %v2988
  %v3347 = vunpack.c.h.b16 %v2988
  %v3348 = vunpack.c.l.b16 %v2989
  %v3349 = vunpack.c.h.b16 %v2989
  %v3350 = vunpack.c.l.b16 %v2990
  %v3351 = vunpack.c.h.b16 %v2990
  %v3352 = vunpack.c.l.b16 %v2991
  %v3353 = vunpack.c.h.b16 %v2991
  %v3354 = vunpack.c.l.b16 %v2992
  %v3355 = vunpack.c.h.b16 %v2992
  %v3356 = vunpack.c.l.b16 %v2993
  %v3357 = vunpack.c.h.b16 %v2993
  %v3358 = vunpack.c.l.b16 %v2994
  %v3359 = vunpack.c.h.b16 %v2994
  %v3360 = vunpack.c.l.b16 %v2995
  %v3361 = vunpack.c.h.b16 %v2995
  %v3362 = vunpack.c.l.b16 %v2996
  %v3363 = vunpack.c.h.b16 %v2996
  %v3364 = vunpack.c.l.b16 %v2997
  %v3365 = vunpack.c.h.b16 %v2997
  %v3366 = vunpack.c.l.b16 %v2998
  %v3367 = vunpack.c.h.b16 %v2998
  %v3368 = vunpack.c.l.b16 %v2999
  %v3369 = vunpack.c.h.b16 %v2999
  %v3370 = vunpack.c.l.b16 %v3000
  %v3371 = vunpack.c.h.b16 %v3000
  %v3372 = vunpack.c.l.b16 %v3001
  %v3373 = vunpack.c.h.b16 %v3001
  %v3374 = vunpack.c.l.b16 %v3002
  %v3375 = vunpack.c.h.b16 %v3002
  %v3376 = vunpack.c.l.b16 %v3003
  %v3377 = vunpack.c.h.b16 %v3003
  %v3378 = vunpack.c.l.b16 %v3004
  %v3379 = vunpack.c.h.b16 %v3004
  %v3380 = vunpack.c.l.b16 %v3005
  %v3381 = vunpack.c.h.b16 %v3005
  %v3382 = vunpack.c.l.b16 %v3006
  %v3383 = vunpack.c.h.b16 %v3006
  %v3384 = vunpack.c.l.b16 %v3007
  %v3385 = vunpack.c.h.b16 %v3007
  %v3386 = vunpack.c.l.b16 %v3008
  %v3387 = vunpack.c.h.b16 %v3008
  %v3388 = vunpack.c.l.b16 %v3009
  %v3389 = vunpack.c.h.b16 %v3009
  %v3390 = vunpack.c.l.b16 %v3010
  %v3391 = vunpack.c.h.b16 %v3010
  %v3392 = vunpack.c.l.b16 %v3011
  %v3393 = vunpack.c.h.b16 %v3011
  %v3394 = vunpack.c.l.b16 %v3012
  %v3395 = vunpack.c.h.b16 %v3012
  %v3396 = vunpack.c.l.b16 %v3013
  %v3397 = vunpack.c.h.b16 %v3013
  %v3398 = vpack.c.b16 %v3142, %v3142
  %v3399 = vpack.c.b16 %v3143, %v3143
  %v3400 = vpack.c.b16 %v3144, %v3144
  %v3401 = vpack.c.b16 %v3145, %v3145
  %v3402 = vpack.c.b16 %v3146, %v3146
  %v3403 = vpack.c.b16 %v3147, %v3147
  %v3404 = vpack.c.b16 %v3148, %v3148
  %v3405 = vpack.c.b16 %v3149, %v3149
  %v3406 = vpack.c.b16 %v3150, %v3150
  %v3407 = vpack.c.b16 %v3151, %v3151
  %v3408 = vpack.c.b16 %v3152, %v3152
  %v3409 = vpack.c.b16 %v3153, %v3153
  %v3410 = vpack.c.b16 %v3154, %v3154
  %v3411 = vpack.c.b16 %v3155, %v3155
  %v3412 = vpack.c.b16 %v3156, %v3156
  %v3413 = vpack.c.b16 %v3157, %v3157
  %v3414 = vpack.c.b16 %v3158, %v3158
  %v3415 = vpack.c.b16 %v3159, %v3159
  %v3416 = vpack.c.b16 %v3160, %v3160
  %v3417 = vpack.c.b16 %v3161, %v3161
  %v3418 = vpack.c.b16 %v3162, %v3162
  %v3419 = vpack.c.b16 %v3163, %v3163
  %v3420 = vpack.c.b16 %v3164, %v3164
  %v3421 = vpack.c.b16 %v3165, %v3165
  %v3422 = vpack.c.b16 %v3166, %v3166
  %v3423 = vpack.c.b16 %v3167, %v3167
  %v3424 = vpack.c.b16 %v3168, %v3168
  %v3425 = vpack.c.b16 %v3169, %v3169
  %v3426 = vpack.c.b16 %v3170, %v3170
  %v3427 = vpack.c.b16 %v3171, %v3171
  %v3428 = vpack.c.b16 %v3172, %v3172
  %v3429 = vpack.c.b16 %v3173, %v3173
  %v3430 = vpack.c.b16 %v3174, %v3174
  %v3431 = vpack.c.b16 %v3175, %v3175
  %v3432 = vpack.c.b16 %v3176, %v3176
  %v3433 = vpack.c.b16 %v3177, %v3177
  %v3434 = vpack.c.b16 %v3178, %v3178
  %v3435 = vpack.c.b16 %v3179, %v3179
  %v3436 = vpack.c.b16 %v3180, %v3180
  %v3437 = vpack.c.b16 %v3181, %v3181
  %v3438 = vpack.c.b16 %v3182, %v3182
  %v3439 = vpack.c.b16 %v3183, %v3183
  %v3440 = vpack.c.b16 %v3184, %v3184
  %v3441 = vpack.c.b16 %v3185, %v3185
  %v3442 = vpack.c.b16 %v3186, %v3186
  %v3443 = vpack.c.b16 %v3187, %v3187
  %v3444 = vpack.c.b16 %v3188, %v3188
  %v3445 = vpack.c.b16 %v3189, %v3189
  %v3446 = vpack.c.b16 %v3190, %v3190
  %v3447 = vpack.c.b16 %v3191, %v3191
  %v3448 = vpack.c.b16 %v3192, %v3192
  %v3449 = vpack.c.b16 %v3193, %v3193
  %v3450 = vpack.c.b16 %v3194, %v3194
  %v3451 = vpack.c.b16 %v3195, %v3195
  %v3452 = vpack.c.b16 %v3196, %v3196
  %v3453 = vpack.c.b16 %v3197, %v3197
  %v3454 = vpack.c.b16 %v3198, %v3198
  %v3455 = vpack.c.b16 %v3199, %v3199
  %v3456 = vpack.c.b16 %v3200, %v3200
  %v3457 = vpack.c.b16 %v3201, %v3201
  %v3458 = vpack.c.b16 %v3202, %v3202
  %v3459 = vpack.c.b16 %v3203, %v3203
  %v3460 = vpack.c.b16 %v3204, %v3204
  %v3461 = vpack.c.b16 %v3205, %v3205
  %v3462 = vpack.c.b16 %v3206, %v3206
  %v3463 = vpack.c.b16 %v3207, %v3207
  %v3464 = vpack.c.b16 %v3208, %v3208
  %v3465 = vpack.c.b16 %v3209, %v3209
  %v3466 = vpack.c.b16 %v3210, %v3210
  %v3467 = vpack.c.b16 %v3211, %v3211
  %v3468 = vpack.c.b16 %v3212, %v3212
  %v3469 = vpack.c.b16 %v3213, %v3213
  %v3470 = vpack.c.b16 %v3214, %v3214
  %v3471 = vpack.c.b16 %v3215, %v3215
  %v3472 = vpack.c.b16 %v3216, %v3216
  %v3473 = vpack.c.b16 %v3217, %v3217
  %v3474 = vpack.c.b16 %v3218, %v3218
  %v3475 = vpack.c.b16 %v3219, %v3219
  %v3476 = vpack.c.b16 %v3220, %v3220
  %v3477 = vpack.c.b16 %v3221, %v3221
  %v3478 = vpack.c.b16 %v3222, %v3222
  %v3479 = vpack.c.b16 %v3223, %v3223
  %v3480 = vpack.c.b16 %v3224, %v3224
  %v3481 = vpack.c.b16 %v3225, %v3225
  %v3482 = vpack.c.b16 %v3226, %v3226
  %v3483 = vpack.c.b16 %v3227, %v3227
  %v3484 = vpack.c.b16 %v3228, %v3228
  %v3485 = vpack.c.b16 %v3229, %v3229
  %v3486 = vpack.c.b16 %v3230, %v3230
  %v3487 = vpack.c.b16 %v3231, %v3231
  %v3488 = vpack.c.b16 %v3232, %v3232
  %v3489 = vpack.c.b16 %v3233, %v3233
  %v3490 = vpack.c.b16 %v3234, %v3234
  %v3491 = vpack.c.b16 %v3235, %v3235
  %v3492 = vpack.c.b16 %v3236, %v3236
  %v3493 = vpack.c.b16 %v3237, %v3237
  %v3494 = vpack.c.b16 %v3238, %v3238
  %v3495 = vpack.c.b16 %v3239, %v3239
  %v3496 = vpack.c.b16 %v3240, %v3240
  %v3497 = vpack.c.b16 %v3241, %v3241
  %v3498 = vpack.c.b16 %v3242, %v3242
  %v3499 = vpack.c.b16 %v3243, %v3243
  %v3500 = vpack.c.b16 %v3244, %v3244
  %v3501 = vpack.c.b16 %v3245, %v3245
  %v3502 = vpack.c.b16 %v3246, %v3246
  %v3503 = vpack.c.b16 %v3247, %v3247
  %v3504 = vpack.c.b16 %v3248, %v3248
  %v3505 = vpack.c.b16 %v3249, %v3249
  %v3506 = vpack.c.b16 %v3250, %v3250
  %v3507 = vpack.c.b16 %v3251, %v3251
  %v3508 = vpack.c.b16 %v3252, %v3252
  %v3509 = vpack.c.b16 %v3253, %v3253
  %v3510 = vpack.c.b16 %v3254, %v3254
  %v3511 = vpack.c.b16 %v3255, %v3255
  %v3512 = vpack.c.b16 %v3256, %v3256
  %v3513 = vpack.c.b16 %v3257, %v3257
  %v3514 = vpack.c.b16 %v3258, %v3258
  %v3515 = vpack.c.b16 %v3259, %v3259
  %v3516 = vpack.c.b16 %v3260, %v3260
  %v3517 = vpack.c.b16 %v3261, %v3261
  %v3518 = vpack.c.b16 %v3262, %v3262
  %v3519 = vpack.c.b16 %v3263, %v3263
  %v3520 = vpack.c.b16 %v3264, %v3264
  %v3521 = vpack.c.b16 %v3265, %v3265
  %v3522 = vpack.c.b16 %v3266, %v3266
  %v3523 = vpack.c.b16 %v3267, %v3267
  %v3524 = vpack.c.b16 %v3268, %v3268
  %v3525 = vpack.c.b16 %v3269, %v3269
  %v3526 = vpack.c.b16 %v3270, %v3270
  %v3527 = vpack.c.b16 %v3271, %v3271
  %v3528 = vpack.c.b16 %v3272, %v3272
  %v3529 = vpack.c.b16 %v3273, %v3273
  %v3530 = vpack.c.b16 %v3274, %v3274
  %v3531 = vpack.c.b16 %v3275, %v3275
  %v3532 = vpack.c.b16 %v3276, %v3276
  %v3533 = vpack.c.b16 %v3277, %v3277
  %v3534 = vpack.c.b16 %v3278, %v3278
  %v3535 = vpack.c.b16 %v3279, %v3279
  %v3536 = vpack.c.b16 %v3280, %v3280
  %v3537 = vpack.c.b16 %v3281, %v3281
  %v3538 = vpack.c.b16 %v3282, %v3282
  %v3539 = vpack.c.b16 %v3283, %v3283
  %v3540 = vpack.c.b16 %v3284, %v3284
  %v3541 = vpack.c.b16 %v3285, %v3285
  %v3542 = vpack.c.b16 %v3286, %v3286
  %v3543 = vpack.c.b16 %v3287, %v3287
  %v3544 = vpack.c.b16 %v3288, %v3288
  %v3545 = vpack.c.b16 %v3289, %v3289
  %v3546 = vpack.c.b16 %v3290, %v3290
  %v3547 = vpack.c.b16 %v3291, %v3291
  %v3548 = vpack.c.b16 %v3292, %v3292
  %v3549 = vpack.c.b16 %v3293, %v3293
  %v3550 = vpack.c.b16 %v3294, %v3294
  %v3551 = vpack.c.b16 %v3295, %v3295
  %v3552 = vpack.c.b16 %v3296, %v3296
  %v3553 = vpack.c.b16 %v3297, %v3297
  %v3554 = vpack.c.b16 %v3298, %v3298
  %v3555 = vpack.c.b16 %v3299, %v3299
  %v3556 = vpack.c.b16 %v3300, %v3300
  %v3557 = vpack.c.b16 %v3301, %v3301
  %v3558 = vpack.c.b16 %v3302, %v3302
  %v3559 = vpack.c.b16 %v3303, %v3303
  %v3560 = vpack.c.b16 %v3304, %v3304
  %v3561 = vpack.c.b16 %v3305, %v3305
  %v3562 = vpack.c.b16 %v3306, %v3306
  %v3563 = vpack.c.b16 %v3307, %v3307
  %v3564 = vpack.c.b16 %v3308, %v3308
  %v3565 = vpack.c.b16 %v3309, %v3309
  %v3566 = vpack.c.b16 %v3310, %v3310
  %v3567 = vpack.c.b16 %v3311, %v3311
  %v3568 = vpack.c.b16 %v3312, %v3312
  %v3569 = vpack.c.b16 %v3313, %v3313
  %v3570 = vpack.c.b16 %v3314, %v3314
  %v3571 = vpack.c.b16 %v3315, %v3315
  %v3572 = vpack.c.b16 %v3316, %v3316
  %v3573 = vpack.c.b16 %v3317, %v3317
  %v3574 = vpack.c.b16 %v3318, %v3318
  %v3575 = vpack.c.b16 %v3319, %v3319
  %v3576 = vpack.c.b16 %v3320, %v3320
  %v3577 = vpack.c.b16 %v3321, %v3321
  %v3578 = vpack.c.b16 %v3322, %v3322
  %v3579 = vpack.c.b16 %v3323, %v3323
  %v3580 = vpack.c.b16 %v3324, %v3324
  %v3581 = vpack.c.b16 %v3325, %v3325
  %v3582 = vpack.c.b16 %v3326, %v3326
  %v3583 = vpack.c.b16 %v3327, %v3327
  %v3584 = vpack.c.b16 %v3328, %v3328
  %v3585 = vpack.c.b16 %v3329, %v3329
  %v3586 = vpack.c.b16 %v3330, %v3330
  %v3587 = vpack.c.b16 %v3331, %v3331
  %v3588 = vpack.c.b16 %v3332, %v3332
  %v3589 = vpack.c.b16 %v3333, %v3333
  %v3590 = vpack.c.b16 %v3334, %v3334
  %v3591 = vpack.c.b16 %v3335, %v3335
  %v3592 = vpack.c.b16 %v3336, %v3336
  %v3593 = vpack.c.b16 %v3337, %v3337
  %v3594 = vpack.c.b16 %v3338, %v3338
  %v3595 = vpack.c.b16 %v3339, %v3339
  %v3596 = vpack.c.b16 %v3340, %v3340
  %v3597 = vpack.c.b16 %v3341, %v3341
  %v3598 = vpack.c.b16 %v3342, %v3342
  %v3599 = vpack.c.b16 %v3343, %v3343
  %v3600 = vpack.c.b16 %v3344, %v3344
  %v3601 = vpack.c.b16 %v3345, %v3345
  %v3602 = vpack.c.b16 %v3346, %v3346
  %v3603 = vpack.c.b16 %v3347, %v3347
  %v3604 = vpack.c.b16 %v3348, %v3348
  %v3605 = vpack.c.b16 %v3349, %v3349
  %v3606 = vpack.c.b16 %v3350, %v3350
  %v3607 = vpack.c.b16 %v3351, %v3351
  %v3608 = vpack.c.b16 %v3352, %v3352
  %v3609 = vpack.c.b16 %v3353, %v3353
  %v3610 = vpack.c.b16 %v3354, %v3354
  %v3611 = vpack.c.b16 %v3355, %v3355
  %v3612 = vpack.c.b16 %v3356, %v3356
  %v3613 = vpack.c.b16 %v3357, %v3357
  %v3614 = vpack.c.b16 %v3358, %v3358
  %v3615 = vpack.c.b16 %v3359, %v3359
  %v3616 = vpack.c.b16 %v3360, %v3360
  %v3617 = vpack.c.b16 %v3361, %v3361
  %v3618 = vpack.c.b16 %v3362, %v3362
  %v3619 = vpack.c.b16 %v3363, %v3363
  %v3620 = vpack.c.b16 %v3364, %v3364
  %v3621 = vpack.c.b16 %v3365, %v3365
  %v3622 = vpack.c.b16 %v3366, %v3366
  %v3623 = vpack.c.b16 %v3367, %v3367
  %v3624 = vpack.c.b16 %v3368, %v3368
  %v3625 = vpack.c.b16 %v3369, %v3369
  %v3626 = vpack.c.b16 %v3370, %v3370
  %v3627 = vpack.c.b16 %v3371, %v3371
  %v3628 = vpack.c.b16 %v3372, %v3372
  %v3629 = vpack.c.b16 %v3373, %v3373
  %v3630 = vpack.c.b16 %v3374, %v3374
  %v3631 = vpack.c.b16 %v3375, %v3375
  %v3632 = vpack.c.b16 %v3376, %v3376
  %v3633 = vpack.c.b16 %v3377, %v3377
  %v3634 = vpack.c.b16 %v3378, %v3378
  %v3635 = vpack.c.b16 %v3379, %v3379
  %v3636 = vpack.c.b16 %v3380, %v3380
  %v3637 = vpack.c.b16 %v3381, %v3381
  %v3638 = vpack.c.b16 %v3382, %v3382
  %v3639 = vpack.c.b16 %v3383, %v3383
  %v3640 = vpack.c.b16 %v3384, %v3384
  %v3641 = vpack.c.b16 %v3385, %v3385
  %v3642 = vpack.c.b16 %v3386, %v3386
  %v3643 = vpack.c.b16 %v3387, %v3387
  %v3644 = vpack.c.b16 %v3388, %v3388
  %v3645 = vpack.c.b16 %v3389, %v3389
  %v3646 = vpack.c.b16 %v3390, %v3390
  %v3647 = vpack.c.b16 %v3391, %v3391
  %v3648 = vpack.c.b16 %v3392, %v3392
  %v3649 = vpack.c.b16 %v3393, %v3393
  %v3650 = vpack.c.b16 %v3394, %v3394
  %v3651 = vpack.c.b16 %v3395, %v3395
  %v3652 = vpack.c.b16 %v3396, %v3396
  %v3653 = vpack.c.b16 %v3397, %v3397
  %3910 = vst [vmem:[%s2] sm:$0xf] %v3398
  %3911 = vst [vmem:[%s2 + $0x4] sm:$0xf] %v3399
  %3912 = vst [vmem:[%s2 + $0x8] sm:$0xf] %v3400
  %3913 = vst [vmem:[%s2 + $0xc] sm:$0xf] %v3401
  %3914 = vst [vmem:[%s2 + $0x10] sm:$0xf] %v3402
  %3915 = vst [vmem:[%s2 + $0x14] sm:$0xf] %v3403
  %3916 = vst [vmem:[%s2 + $0x18] sm:$0xf] %v3404
  %3917 = vst [vmem:[%s2 + $0x1c] sm:$0xf] %v3405
  %3918 = vst [vmem:[%s2 + $0x20] sm:$0xf] %v3406
  %3919 = vst [vmem:[%s2 + $0x24] sm:$0xf] %v3407
  %3920 = vst [vmem:[%s2 + $0x28] sm:$0xf] %v3408
  %3921 = vst [vmem:[%s2 + $0x2c] sm:$0xf] %v3409
  %3922 = vst [vmem:[%s2 + $0x30] sm:$0xf] %v3410
  %3923 = vst [vmem:[%s2 + $0x34] sm:$0xf] %v3411
  %3924 = vst [vmem:[%s2 + $0x38] sm:$0xf] %v3412
  %3925 = vst [vmem:[%s2 + $0x3c] sm:$0xf] %v3413
  %3926 = vst [vmem:[%s2 + $0x40] sm:$0xf] %v3414
  %3927 = vst [vmem:[%s2 + $0x44] sm:$0xf] %v3415
  %3928 = vst [vmem:[%s2 + $0x48] sm:$0xf] %v3416
  %3929 = vst [vmem:[%s2 + $0x4c] sm:$0xf] %v3417
  %3930 = vst [vmem:[%s2 + $0x50] sm:$0xf] %v3418
  %3931 = vst [vmem:[%s2 + $0x54] sm:$0xf] %v3419
  %3932 = vst [vmem:[%s2 + $0x58] sm:$0xf] %v3420
  %3933 = vst [vmem:[%s2 + $0x5c] sm:$0xf] %v3421
  %3934 = vst [vmem:[%s2 + $0x60] sm:$0xf] %v3422
  %3935 = vst [vmem:[%s2 + $0x64] sm:$0xf] %v3423
  %3936 = vst [vmem:[%s2 + $0x68] sm:$0xf] %v3424
  %3937 = vst [vmem:[%s2 + $0x6c] sm:$0xf] %v3425
  %3938 = vst [vmem:[%s2 + $0x70] sm:$0xf] %v3426
  %3939 = vst [vmem:[%s2 + $0x74] sm:$0xf] %v3427
  %3940 = vst [vmem:[%s2 + $0x78] sm:$0xf] %v3428
  %3941 = vst [vmem:[%s2 + $0x7c] sm:$0xf] %v3429
  %3942 = vst [vmem:[%s2 + $0x80] sm:$0xf] %v3430
  %3943 = vst [vmem:[%s2 + $0x84] sm:$0xf] %v3431
  %3944 = vst [vmem:[%s2 + $0x88] sm:$0xf] %v3432
  %3945 = vst [vmem:[%s2 + $0x8c] sm:$0xf] %v3433
  %3946 = vst [vmem:[%s2 + $0x90] sm:$0xf] %v3434
  %3947 = vst [vmem:[%s2 + $0x94] sm:$0xf] %v3435
  %3948 = vst [vmem:[%s2 + $0x98] sm:$0xf] %v3436
  %3949 = vst [vmem:[%s2 + $0x9c] sm:$0xf] %v3437
  %3950 = vst [vmem:[%s2 + $0xa0] sm:$0xf] %v3438
  %3951 = vst [vmem:[%s2 + $0xa4] sm:$0xf] %v3439
  %3952 = vst [vmem:[%s2 + $0xa8] sm:$0xf] %v3440
  %3953 = vst [vmem:[%s2 + $0xac] sm:$0xf] %v3441
  %3954 = vst [vmem:[%s2 + $0xb0] sm:$0xf] %v3442
  %3955 = vst [vmem:[%s2 + $0xb4] sm:$0xf] %v3443
  %3956 = vst [vmem:[%s2 + $0xb8] sm:$0xf] %v3444
  %3957 = vst [vmem:[%s2 + $0xbc] sm:$0xf] %v3445
  %3958 = vst [vmem:[%s2 + $0xc0] sm:$0xf] %v3446
  %3959 = vst [vmem:[%s2 + $0xc4] sm:$0xf] %v3447
  %3960 = vst [vmem:[%s2 + $0xc8] sm:$0xf] %v3448
  %3961 = vst [vmem:[%s2 + $0xcc] sm:$0xf] %v3449
  %3962 = vst [vmem:[%s2 + $0xd0] sm:$0xf] %v3450
  %3963 = vst [vmem:[%s2 + $0xd4] sm:$0xf] %v3451
  %3964 = vst [vmem:[%s2 + $0xd8] sm:$0xf] %v3452
  %3965 = vst [vmem:[%s2 + $0xdc] sm:$0xf] %v3453
  %3966 = vst [vmem:[%s2 + $0xe0] sm:$0xf] %v3454
  %3967 = vst [vmem:[%s2 + $0xe4] sm:$0xf] %v3455
  %3968 = vst [vmem:[%s2 + $0xe8] sm:$0xf] %v3456
  %3969 = vst [vmem:[%s2 + $0xec] sm:$0xf] %v3457
  %3970 = vst [vmem:[%s2 + $0xf0] sm:$0xf] %v3458
  %3971 = vst [vmem:[%s2 + $0xf4] sm:$0xf] %v3459
  %3972 = vst [vmem:[%s2 + $0xf8] sm:$0xf] %v3460
  %3973 = vst [vmem:[%s2 + $0xfc] sm:$0xf] %v3461
  %3974 = vst [vmem:[%s2 + $0x100] sm:$0xf] %v3462
  %3975 = vst [vmem:[%s2 + $0x104] sm:$0xf] %v3463
  %3976 = vst [vmem:[%s2 + $0x108] sm:$0xf] %v3464
  %3977 = vst [vmem:[%s2 + $0x10c] sm:$0xf] %v3465
  %3978 = vst [vmem:[%s2 + $0x110] sm:$0xf] %v3466
  %3979 = vst [vmem:[%s2 + $0x114] sm:$0xf] %v3467
  %3980 = vst [vmem:[%s2 + $0x118] sm:$0xf] %v3468
  %3981 = vst [vmem:[%s2 + $0x11c] sm:$0xf] %v3469
  %3982 = vst [vmem:[%s2 + $0x120] sm:$0xf] %v3470
  %3983 = vst [vmem:[%s2 + $0x124] sm:$0xf] %v3471
  %3984 = vst [vmem:[%s2 + $0x128] sm:$0xf] %v3472
  %3985 = vst [vmem:[%s2 + $0x12c] sm:$0xf] %v3473
  %3986 = vst [vmem:[%s2 + $0x130] sm:$0xf] %v3474
  %3987 = vst [vmem:[%s2 + $0x134] sm:$0xf] %v3475
  %3988 = vst [vmem:[%s2 + $0x138] sm:$0xf] %v3476
  %3989 = vst [vmem:[%s2 + $0x13c] sm:$0xf] %v3477
  %3990 = vst [vmem:[%s2 + $0x140] sm:$0xf] %v3478
  %3991 = vst [vmem:[%s2 + $0x144] sm:$0xf] %v3479
  %3992 = vst [vmem:[%s2 + $0x148] sm:$0xf] %v3480
  %3993 = vst [vmem:[%s2 + $0x14c] sm:$0xf] %v3481
  %3994 = vst [vmem:[%s2 + $0x150] sm:$0xf] %v3482
  %3995 = vst [vmem:[%s2 + $0x154] sm:$0xf] %v3483
  %3996 = vst [vmem:[%s2 + $0x158] sm:$0xf] %v3484
  %3997 = vst [vmem:[%s2 + $0x15c] sm:$0xf] %v3485
  %3998 = vst [vmem:[%s2 + $0x160] sm:$0xf] %v3486
  %3999 = vst [vmem:[%s2 + $0x164] sm:$0xf] %v3487
  %4000 = vst [vmem:[%s2 + $0x168] sm:$0xf] %v3488
  %4001 = vst [vmem:[%s2 + $0x16c] sm:$0xf] %v3489
  %4002 = vst [vmem:[%s2 + $0x170] sm:$0xf] %v3490
  %4003 = vst [vmem:[%s2 + $0x174] sm:$0xf] %v3491
  %4004 = vst [vmem:[%s2 + $0x178] sm:$0xf] %v3492
  %4005 = vst [vmem:[%s2 + $0x17c] sm:$0xf] %v3493
  %4006 = vst [vmem:[%s2 + $0x180] sm:$0xf] %v3494
  %4007 = vst [vmem:[%s2 + $0x184] sm:$0xf] %v3495
  %4008 = vst [vmem:[%s2 + $0x188] sm:$0xf] %v3496
  %4009 = vst [vmem:[%s2 + $0x18c] sm:$0xf] %v3497
  %4010 = vst [vmem:[%s2 + $0x190] sm:$0xf] %v3498
  %4011 = vst [vmem:[%s2 + $0x194] sm:$0xf] %v3499
  %4012 = vst [vmem:[%s2 + $0x198] sm:$0xf] %v3500
  %4013 = vst [vmem:[%s2 + $0x19c] sm:$0xf] %v3501
  %4014 = vst [vmem:[%s2 + $0x1a0] sm:$0xf] %v3502
  %4015 = vst [vmem:[%s2 + $0x1a4] sm:$0xf] %v3503
  %4016 = vst [vmem:[%s2 + $0x1a8] sm:$0xf] %v3504
  %4017 = vst [vmem:[%s2 + $0x1ac] sm:$0xf] %v3505
  %4018 = vst [vmem:[%s2 + $0x1b0] sm:$0xf] %v3506
  %4019 = vst [vmem:[%s2 + $0x1b4] sm:$0xf] %v3507
  %4020 = vst [vmem:[%s2 + $0x1b8] sm:$0xf] %v3508
  %4021 = vst [vmem:[%s2 + $0x1bc] sm:$0xf] %v3509
  %4022 = vst [vmem:[%s2 + $0x1c0] sm:$0xf] %v3510
  %4023 = vst [vmem:[%s2 + $0x1c4] sm:$0xf] %v3511
  %4024 = vst [vmem:[%s2 + $0x1c8] sm:$0xf] %v3512
  %4025 = vst [vmem:[%s2 + $0x1cc] sm:$0xf] %v3513
  %4026 = vst [vmem:[%s2 + $0x1d0] sm:$0xf] %v3514
  %4027 = vst [vmem:[%s2 + $0x1d4] sm:$0xf] %v3515
  %4028 = vst [vmem:[%s2 + $0x1d8] sm:$0xf] %v3516
  %4029 = vst [vmem:[%s2 + $0x1dc] sm:$0xf] %v3517
  %4030 = vst [vmem:[%s2 + $0x1e0] sm:$0xf] %v3518
  %4031 = vst [vmem:[%s2 + $0x1e4] sm:$0xf] %v3519
  %4032 = vst [vmem:[%s2 + $0x1e8] sm:$0xf] %v3520
  %4033 = vst [vmem:[%s2 + $0x1ec] sm:$0xf] %v3521
  %4034 = vst [vmem:[%s2 + $0x1f0] sm:$0xf] %v3522
  %4035 = vst [vmem:[%s2 + $0x1f4] sm:$0xf] %v3523
  %4036 = vst [vmem:[%s2 + $0x1f8] sm:$0xf] %v3524
  %4037 = vst [vmem:[%s2 + $0x1fc] sm:$0xf] %v3525
  %4038 = vst [vmem:[%s2 + $0x200] sm:$0xf] %v3526
  %4039 = vst [vmem:[%s2 + $0x204] sm:$0xf] %v3527
  %4040 = vst [vmem:[%s2 + $0x208] sm:$0xf] %v3528
  %4041 = vst [vmem:[%s2 + $0x20c] sm:$0xf] %v3529
  %4042 = vst [vmem:[%s2 + $0x210] sm:$0xf] %v3530
  %4043 = vst [vmem:[%s2 + $0x214] sm:$0xf] %v3531
  %4044 = vst [vmem:[%s2 + $0x218] sm:$0xf] %v3532
  %4045 = vst [vmem:[%s2 + $0x21c] sm:$0xf] %v3533
  %4046 = vst [vmem:[%s2 + $0x220] sm:$0xf] %v3534
  %4047 = vst [vmem:[%s2 + $0x224] sm:$0xf] %v3535
  %4048 = vst [vmem:[%s2 + $0x228] sm:$0xf] %v3536
  %4049 = vst [vmem:[%s2 + $0x22c] sm:$0xf] %v3537
  %4050 = vst [vmem:[%s2 + $0x230] sm:$0xf] %v3538
  %4051 = vst [vmem:[%s2 + $0x234] sm:$0xf] %v3539
  %4052 = vst [vmem:[%s2 + $0x238] sm:$0xf] %v3540
  %4053 = vst [vmem:[%s2 + $0x23c] sm:$0xf] %v3541
  %4054 = vst [vmem:[%s2 + $0x240] sm:$0xf] %v3542
  %4055 = vst [vmem:[%s2 + $0x244] sm:$0xf] %v3543
  %4056 = vst [vmem:[%s2 + $0x248] sm:$0xf] %v3544
  %4057 = vst [vmem:[%s2 + $0x24c] sm:$0xf] %v3545
  %4058 = vst [vmem:[%s2 + $0x250] sm:$0xf] %v3546
  %4059 = vst [vmem:[%s2 + $0x254] sm:$0xf] %v3547
  %4060 = vst [vmem:[%s2 + $0x258] sm:$0xf] %v3548
  %4061 = vst [vmem:[%s2 + $0x25c] sm:$0xf] %v3549
  %4062 = vst [vmem:[%s2 + $0x260] sm:$0xf] %v3550
  %4063 = vst [vmem:[%s2 + $0x264] sm:$0xf] %v3551
  %4064 = vst [vmem:[%s2 + $0x268] sm:$0xf] %v3552
  %4065 = vst [vmem:[%s2 + $0x26c] sm:$0xf] %v3553
  %4066 = vst [vmem:[%s2 + $0x270] sm:$0xf] %v3554
  %4067 = vst [vmem:[%s2 + $0x274] sm:$0xf] %v3555
  %4068 = vst [vmem:[%s2 + $0x278] sm:$0xf] %v3556
  %4069 = vst [vmem:[%s2 + $0x27c] sm:$0xf] %v3557
  %4070 = vst [vmem:[%s2 + $0x280] sm:$0xf] %v3558
  %4071 = vst [vmem:[%s2 + $0x284] sm:$0xf] %v3559
  %4072 = vst [vmem:[%s2 + $0x288] sm:$0xf] %v3560
  %4073 = vst [vmem:[%s2 + $0x28c] sm:$0xf] %v3561
  %4074 = vst [vmem:[%s2 + $0x290] sm:$0xf] %v3562
  %4075 = vst [vmem:[%s2 + $0x294] sm:$0xf] %v3563
  %4076 = vst [vmem:[%s2 + $0x298] sm:$0xf] %v3564
  %4077 = vst [vmem:[%s2 + $0x29c] sm:$0xf] %v3565
  %4078 = vst [vmem:[%s2 + $0x2a0] sm:$0xf] %v3566
  %4079 = vst [vmem:[%s2 + $0x2a4] sm:$0xf] %v3567
  %4080 = vst [vmem:[%s2 + $0x2a8] sm:$0xf] %v3568
  %4081 = vst [vmem:[%s2 + $0x2ac] sm:$0xf] %v3569
  %4082 = vst [vmem:[%s2 + $0x2b0] sm:$0xf] %v3570
  %4083 = vst [vmem:[%s2 + $0x2b4] sm:$0xf] %v3571
  %4084 = vst [vmem:[%s2 + $0x2b8] sm:$0xf] %v3572
  %4085 = vst [vmem:[%s2 + $0x2bc] sm:$0xf] %v3573
  %4086 = vst [vmem:[%s2 + $0x2c0] sm:$0xf] %v3574
  %4087 = vst [vmem:[%s2 + $0x2c4] sm:$0xf] %v3575
  %4088 = vst [vmem:[%s2 + $0x2c8] sm:$0xf] %v3576
  %4089 = vst [vmem:[%s2 + $0x2cc] sm:$0xf] %v3577
  %4090 = vst [vmem:[%s2 + $0x2d0] sm:$0xf] %v3578
  %4091 = vst [vmem:[%s2 + $0x2d4] sm:$0xf] %v3579
  %4092 = vst [vmem:[%s2 + $0x2d8] sm:$0xf] %v3580
  %4093 = vst [vmem:[%s2 + $0x2dc] sm:$0xf] %v3581
  %4094 = vst [vmem:[%s2 + $0x2e0] sm:$0xf] %v3582
  %4095 = vst [vmem:[%s2 + $0x2e4] sm:$0xf] %v3583
  %4096 = vst [vmem:[%s2 + $0x2e8] sm:$0xf] %v3584
  %4097 = vst [vmem:[%s2 + $0x2ec] sm:$0xf] %v3585
  %4098 = vst [vmem:[%s2 + $0x2f0] sm:$0xf] %v3586
  %4099 = vst [vmem:[%s2 + $0x2f4] sm:$0xf] %v3587
  %4100 = vst [vmem:[%s2 + $0x2f8] sm:$0xf] %v3588
  %4101 = vst [vmem:[%s2 + $0x2fc] sm:$0xf] %v3589
  %4102 = vst [vmem:[%s2 + $0x300] sm:$0xf] %v3590
  %4103 = vst [vmem:[%s2 + $0x304] sm:$0xf] %v3591
  %4104 = vst [vmem:[%s2 + $0x308] sm:$0xf] %v3592
  %4105 = vst [vmem:[%s2 + $0x30c] sm:$0xf] %v3593
  %4106 = vst [vmem:[%s2 + $0x310] sm:$0xf] %v3594
  %4107 = vst [vmem:[%s2 + $0x314] sm:$0xf] %v3595
  %4108 = vst [vmem:[%s2 + $0x318] sm:$0xf] %v3596
  %4109 = vst [vmem:[%s2 + $0x31c] sm:$0xf] %v3597
  %4110 = vst [vmem:[%s2 + $0x320] sm:$0xf] %v3598
  %4111 = vst [vmem:[%s2 + $0x324] sm:$0xf] %v3599
  %4112 = vst [vmem:[%s2 + $0x328] sm:$0xf] %v3600
  %4113 = vst [vmem:[%s2 + $0x32c] sm:$0xf] %v3601
  %4114 = vst [vmem:[%s2 + $0x330] sm:$0xf] %v3602
  %4115 = vst [vmem:[%s2 + $0x334] sm:$0xf] %v3603
  %4116 = vst [vmem:[%s2 + $0x338] sm:$0xf] %v3604
  %4117 = vst [vmem:[%s2 + $0x33c] sm:$0xf] %v3605
  %4118 = vst [vmem:[%s2 + $0x340] sm:$0xf] %v3606
  %4119 = vst [vmem:[%s2 + $0x344] sm:$0xf] %v3607
  %4120 = vst [vmem:[%s2 + $0x348] sm:$0xf] %v3608
  %4121 = vst [vmem:[%s2 + $0x34c] sm:$0xf] %v3609
  %4122 = vst [vmem:[%s2 + $0x350] sm:$0xf] %v3610
  %4123 = vst [vmem:[%s2 + $0x354] sm:$0xf] %v3611
  %4124 = vst [vmem:[%s2 + $0x358] sm:$0xf] %v3612
  %4125 = vst [vmem:[%s2 + $0x35c] sm:$0xf] %v3613
  %4126 = vst [vmem:[%s2 + $0x360] sm:$0xf] %v3614
  %4127 = vst [vmem:[%s2 + $0x364] sm:$0xf] %v3615
  %4128 = vst [vmem:[%s2 + $0x368] sm:$0xf] %v3616
  %4129 = vst [vmem:[%s2 + $0x36c] sm:$0xf] %v3617
  %4130 = vst [vmem:[%s2 + $0x370] sm:$0xf] %v3618
  %4131 = vst [vmem:[%s2 + $0x374] sm:$0xf] %v3619
  %4132 = vst [vmem:[%s2 + $0x378] sm:$0xf] %v3620
  %4133 = vst [vmem:[%s2 + $0x37c] sm:$0xf] %v3621
  %4134 = vst [vmem:[%s2 + $0x380] sm:$0xf] %v3622
  %4135 = vst [vmem:[%s2 + $0x384] sm:$0xf] %v3623
  %4136 = vst [vmem:[%s2 + $0x388] sm:$0xf] %v3624
  %4137 = vst [vmem:[%s2 + $0x38c] sm:$0xf] %v3625
  %4138 = vst [vmem:[%s2 + $0x390] sm:$0xf] %v3626
  %4139 = vst [vmem:[%s2 + $0x394] sm:$0xf] %v3627
  %4140 = vst [vmem:[%s2 + $0x398] sm:$0xf] %v3628
  %4141 = vst [vmem:[%s2 + $0x39c] sm:$0xf] %v3629
  %4142 = vst [vmem:[%s2 + $0x3a0] sm:$0xf] %v3630
  %4143 = vst [vmem:[%s2 + $0x3a4] sm:$0xf] %v3631
  %4144 = vst [vmem:[%s2 + $0x3a8] sm:$0xf] %v3632
  %4145 = vst [vmem:[%s2 + $0x3ac] sm:$0xf] %v3633
  %4146 = vst [vmem:[%s2 + $0x3b0] sm:$0xf] %v3634
  %4147 = vst [vmem:[%s2 + $0x3b4] sm:$0xf] %v3635
  %4148 = vst [vmem:[%s2 + $0x3b8] sm:$0xf] %v3636
  %4149 = vst [vmem:[%s2 + $0x3bc] sm:$0xf] %v3637
  %4150 = vst [vmem:[%s2 + $0x3c0] sm:$0xf] %v3638
  %4151 = vst [vmem:[%s2 + $0x3c4] sm:$0xf] %v3639
  %4152 = vst [vmem:[%s2 + $0x3c8] sm:$0xf] %v3640
  %4153 = vst [vmem:[%s2 + $0x3cc] sm:$0xf] %v3641
  %4154 = vst [vmem:[%s2 + $0x3d0] sm:$0xf] %v3642
  %4155 = vst [vmem:[%s2 + $0x3d4] sm:$0xf] %v3643
  %4156 = vst [vmem:[%s2 + $0x3d8] sm:$0xf] %v3644
  %4157 = vst [vmem:[%s2 + $0x3dc] sm:$0xf] %v3645
  %4158 = vst [vmem:[%s2 + $0x3e0] sm:$0xf] %v3646
  %4159 = vst [vmem:[%s2 + $0x3e4] sm:$0xf] %v3647
  %4160 = vst [vmem:[%s2 + $0x3e8] sm:$0xf] %v3648
  %4161 = vst [vmem:[%s2 + $0x3ec] sm:$0xf] %v3649
  %4162 = vst [vmem:[%s2 + $0x3f0] sm:$0xf] %v3650
  %4163 = vst [vmem:[%s2 + $0x3f4] sm:$0xf] %v3651
  %4164 = vst [vmem:[%s2 + $0x3f8] sm:$0xf] %v3652
  %4165 = vst [vmem:[%s2 + $0x3fc] sm:$0xf] %v3653
  // Predicated region
  $region10: #{discriminator_forward.5} parent=0 // pred_check
    _
  $region11: #{discriminator_forward.5} parent=0 // pred_check_branch
    %4167 = sbr.rel (0) target = $region13
  $region12: #{discriminator_forward.5} parent=0 // pred_region
    _
  $region13: #{discriminator_forward.5} parent=0 // pred_fallthru
    _
  // Predicated region
  $region14: #{discriminator_forward.5} parent=0 // pred_check
    _
  $region15: #{discriminator_forward.5} parent=0 // pred_check_branch
    %4169 = sbr.rel (0) target = $region17
  $region16: #{discriminator_forward.5} parent=0 // pred_region
    _
  $region17: #{discriminator_forward.5} parent=0 // pred_fallthru
    _

// kernel: discriminator_forward.6
$region0: #{discriminator_forward.6}
  #allocation0 [shape = 'u32[]', space=smem, size = 0x4, offset = 0x4, fixed_abs, tag = 'smem constant byte address 0x4 - core index']
  #allocation1 [shape = 'u32[144,128]{1,0:T(1,128)}', space=vmem, size = 0x12000, scoped, tag = 'internal scratch']
  %s0 = inlined_call_operand.vmem [shape: bf16[512,64], index: 0, kind: input, shape index: {}]
  %s1 = inlined_call_operand.vmem [shape: bf16[64,128], index: 1, kind: input, shape index: {}]
  %s2 = inlined_call_operand.vmem [shape: f32[1,128], index: 2, kind: input, shape index: {}]
  %s3 = inlined_call_operand.vmem [shape: f32[1,128], index: 3, kind: input, shape index: {}]
  %s4 = inlined_call_operand.vmem [shape: bf16[512,128], index: 4, kind: output, shape index: {}]
  %s5 = sld [smem:[#allocation0]]
  $region26: #{discriminator_forward.6} parent=0
    _
  %s7 = ssub.s32 1, %s5
  %s8 = scalar_select 0, %s7, %s5
  // Predicated region
  $region2: #{discriminator_forward.6} parent=0 // pred_check
    _
  $region3: #{discriminator_forward.6} parent=0 // pred_check_branch
    %10 = sbr.rel (0) target = $region5
  $region4: #{discriminator_forward.6} parent=0 // pred_region
    _
  $region5: #{discriminator_forward.6} parent=0 // pred_fallthru
    _
  // Predicated region
  $region6: #{discriminator_forward.6} parent=0 // pred_check
    _
  $region7: #{discriminator_forward.6} parent=0 // pred_check_branch
    %12 = sbr.rel (0) target = $region9
  $region8: #{discriminator_forward.6} parent=0 // pred_region
    _
  $region9: #{discriminator_forward.6} parent=0 // pred_fallthru
    _
  // Predicated region
  $region10: #{discriminator_forward.6} parent=0 // pred_check
    _
  $region11: #{discriminator_forward.6} parent=0 // pred_check_branch
    %14 = sbr.rel (0) target = $region13
  $region12: #{discriminator_forward.6} parent=0 // pred_region
    _
  $region13: #{discriminator_forward.6} parent=0 // pred_fallthru
    _
  // Predicated region
  $region14: #{discriminator_forward.6} parent=0 // pred_check
    _
  $region15: #{discriminator_forward.6} parent=0 // pred_check_branch
    %16 = sbr.rel (0) target = $region17
  $region16: #{discriminator_forward.6} parent=0 // pred_region
    _
  $region17: #{discriminator_forward.6} parent=0 // pred_fallthru
    _
  %v18 = vld [vmem:[%s0] sm:$0xf]
  %v19 = vld [vmem:[%s0 + $0x4] sm:$0xf]
  %v20 = vld [vmem:[%s0 + $0x8] sm:$0xf]
  %v21 = vld [vmem:[%s0 + $0xc] sm:$0xf]
  %v22 = vld [vmem:[%s0 + $0x10] sm:$0xf]
  %v23 = vld [vmem:[%s0 + $0x14] sm:$0xf]
  %v24 = vld [vmem:[%s0 + $0x18] sm:$0xf]
  %v25 = vld [vmem:[%s0 + $0x1c] sm:$0xf]
  %v26 = vld [vmem:[%s0 + $0x20] sm:$0xf]
  %v27 = vld [vmem:[%s0 + $0x24] sm:$0xf]
  %v28 = vld [vmem:[%s0 + $0x28] sm:$0xf]
  %v29 = vld [vmem:[%s0 + $0x2c] sm:$0xf]
  %v30 = vld [vmem:[%s0 + $0x30] sm:$0xf]
  %v31 = vld [vmem:[%s0 + $0x34] sm:$0xf]
  %v32 = vld [vmem:[%s0 + $0x38] sm:$0xf]
  %v33 = vld [vmem:[%s0 + $0x3c] sm:$0xf]
  %v34 = vld [vmem:[%s0 + $0x40] sm:$0xf]
  %v35 = vld [vmem:[%s0 + $0x44] sm:$0xf]
  %v36 = vld [vmem:[%s0 + $0x48] sm:$0xf]
  %v37 = vld [vmem:[%s0 + $0x4c] sm:$0xf]
  %v38 = vld [vmem:[%s0 + $0x50] sm:$0xf]
  %v39 = vld [vmem:[%s0 + $0x54] sm:$0xf]
  %v40 = vld [vmem:[%s0 + $0x58] sm:$0xf]
  %v41 = vld [vmem:[%s0 + $0x5c] sm:$0xf]
  %v42 = vld [vmem:[%s0 + $0x60] sm:$0xf]
  %v43 = vld [vmem:[%s0 + $0x64] sm:$0xf]
  %v44 = vld [vmem:[%s0 + $0x68] sm:$0xf]
  %v45 = vld [vmem:[%s0 + $0x6c] sm:$0xf]
  %v46 = vld [vmem:[%s0 + $0x70] sm:$0xf]
  %v47 = vld [vmem:[%s0 + $0x74] sm:$0xf]
  %v48 = vld [vmem:[%s0 + $0x78] sm:$0xf]
  %v49 = vld [vmem:[%s0 + $0x7c] sm:$0xf]
  %v50 = vld [vmem:[%s0 + $0x80] sm:$0xf]
  %v51 = vld [vmem:[%s0 + $0x84] sm:$0xf]
  %v52 = vld [vmem:[%s0 + $0x88] sm:$0xf]
  %v53 = vld [vmem:[%s0 + $0x8c] sm:$0xf]
  %v54 = vld [vmem:[%s0 + $0x90] sm:$0xf]
  %v55 = vld [vmem:[%s0 + $0x94] sm:$0xf]
  %v56 = vld [vmem:[%s0 + $0x98] sm:$0xf]
  %v57 = vld [vmem:[%s0 + $0x9c] sm:$0xf]
  %v58 = vld [vmem:[%s0 + $0xa0] sm:$0xf]
  %v59 = vld [vmem:[%s0 + $0xa4] sm:$0xf]
  %v60 = vld [vmem:[%s0 + $0xa8] sm:$0xf]
  %v61 = vld [vmem:[%s0 + $0xac] sm:$0xf]
  %v62 = vld [vmem:[%s0 + $0xb0] sm:$0xf]
  %v63 = vld [vmem:[%s0 + $0xb4] sm:$0xf]
  %v64 = vld [vmem:[%s0 + $0xb8] sm:$0xf]
  %v65 = vld [vmem:[%s0 + $0xbc] sm:$0xf]
  %v66 = vld [vmem:[%s0 + $0xc0] sm:$0xf]
  %v67 = vld [vmem:[%s0 + $0xc4] sm:$0xf]
  %v68 = vld [vmem:[%s0 + $0xc8] sm:$0xf]
  %v69 = vld [vmem:[%s0 + $0xcc] sm:$0xf]
  %v70 = vld [vmem:[%s0 + $0xd0] sm:$0xf]
  %v71 = vld [vmem:[%s0 + $0xd4] sm:$0xf]
  %v72 = vld [vmem:[%s0 + $0xd8] sm:$0xf]
  %v73 = vld [vmem:[%s0 + $0xdc] sm:$0xf]
  %v74 = vld [vmem:[%s0 + $0xe0] sm:$0xf]
  %v75 = vld [vmem:[%s0 + $0xe4] sm:$0xf]
  %v76 = vld [vmem:[%s0 + $0xe8] sm:$0xf]
  %v77 = vld [vmem:[%s0 + $0xec] sm:$0xf]
  %v78 = vld [vmem:[%s0 + $0xf0] sm:$0xf]
  %v79 = vld [vmem:[%s0 + $0xf4] sm:$0xf]
  %v80 = vld [vmem:[%s0 + $0xf8] sm:$0xf]
  %v81 = vld [vmem:[%s0 + $0xfc] sm:$0xf]
  %v82 = vld [vmem:[%s1] sm:$0xf]
  %v83 = vld [vmem:[%s1 + $0x4] sm:$0xf]
  %v84 = vld [vmem:[%s1 + $0x8] sm:$0xf]
  %v85 = vld [vmem:[%s1 + $0xc] sm:$0xf]
  %v86 = vld [vmem:[%s1 + $0x10] sm:$0xf]
  %v87 = vld [vmem:[%s1 + $0x14] sm:$0xf]
  %v88 = vld [vmem:[%s1 + $0x18] sm:$0xf]
  %v89 = vld [vmem:[%s1 + $0x1c] sm:$0xf]
  %v154 = vunpack.c.l.b16 %v18
  %v155 = vunpack.c.l.b16 %v19
  %v156 = vunpack.c.l.b16 %v20
  %v157 = vunpack.c.l.b16 %v21
  %v158 = vunpack.c.l.b16 %v22
  %v159 = vunpack.c.l.b16 %v23
  %v160 = vunpack.c.l.b16 %v24
  %v161 = vunpack.c.l.b16 %v25
  %v162 = vunpack.c.l.b16 %v26
  %v163 = vunpack.c.l.b16 %v27
  %v164 = vunpack.c.l.b16 %v28
  %v165 = vunpack.c.l.b16 %v29
  %v166 = vunpack.c.l.b16 %v30
  %v167 = vunpack.c.l.b16 %v31
  %v168 = vunpack.c.l.b16 %v32
  %v169 = vunpack.c.l.b16 %v33
  %v170 = vunpack.c.l.b16 %v34
  %v171 = vunpack.c.l.b16 %v35
  %v172 = vunpack.c.l.b16 %v36
  %v173 = vunpack.c.l.b16 %v37
  %v174 = vunpack.c.l.b16 %v38
  %v175 = vunpack.c.l.b16 %v39
  %v176 = vunpack.c.l.b16 %v40
  %v177 = vunpack.c.l.b16 %v41
  %v178 = vunpack.c.l.b16 %v42
  %v179 = vunpack.c.l.b16 %v43
  %v180 = vunpack.c.l.b16 %v44
  %v181 = vunpack.c.l.b16 %v45
  %v182 = vunpack.c.l.b16 %v46
  %v183 = vunpack.c.l.b16 %v47
  %v184 = vunpack.c.l.b16 %v48
  %v185 = vunpack.c.l.b16 %v49
  %v186 = vunpack.c.l.b16 %v50
  %v187 = vunpack.c.l.b16 %v51
  %v188 = vunpack.c.l.b16 %v52
  %v189 = vunpack.c.l.b16 %v53
  %v190 = vunpack.c.l.b16 %v54
  %v191 = vunpack.c.l.b16 %v55
  %v192 = vunpack.c.l.b16 %v56
  %v193 = vunpack.c.l.b16 %v57
  %v194 = vunpack.c.l.b16 %v58
  %v195 = vunpack.c.l.b16 %v59
  %v196 = vunpack.c.l.b16 %v60
  %v197 = vunpack.c.l.b16 %v61
  %v198 = vunpack.c.l.b16 %v62
  %v199 = vunpack.c.l.b16 %v63
  %v200 = vunpack.c.l.b16 %v64
  %v201 = vunpack.c.l.b16 %v65
  %v202 = vunpack.c.l.b16 %v66
  %v203 = vunpack.c.l.b16 %v67
  %v204 = vunpack.c.l.b16 %v68
  %v205 = vunpack.c.l.b16 %v69
  %v206 = vunpack.c.l.b16 %v70
  %v207 = vunpack.c.l.b16 %v71
  %v208 = vunpack.c.l.b16 %v72
  %v209 = vunpack.c.l.b16 %v73
  %v210 = vunpack.c.l.b16 %v74
  %v211 = vunpack.c.l.b16 %v75
  %v212 = vunpack.c.l.b16 %v76
  %v213 = vunpack.c.l.b16 %v77
  %v214 = vunpack.c.l.b16 %v78
  %v215 = vunpack.c.l.b16 %v79
  %v216 = vunpack.c.l.b16 %v80
  %v217 = vunpack.c.l.b16 %v81
  %v218 = vpack.c.b16 %v155, %v154
  %v219 = vpack.c.b16 %v157, %v156
  %v220 = vpack.c.b16 %v159, %v158
  %v221 = vpack.c.b16 %v161, %v160
  %v222 = vpack.c.b16 %v163, %v162
  %v223 = vpack.c.b16 %v165, %v164
  %v224 = vpack.c.b16 %v167, %v166
  %v225 = vpack.c.b16 %v169, %v168
  %v226 = vpack.c.b16 %v171, %v170
  %v227 = vpack.c.b16 %v173, %v172
  %v228 = vpack.c.b16 %v175, %v174
  %v229 = vpack.c.b16 %v177, %v176
  %v230 = vpack.c.b16 %v179, %v178
  %v231 = vpack.c.b16 %v181, %v180
  %v232 = vpack.c.b16 %v183, %v182
  %v233 = vpack.c.b16 %v185, %v184
  %v234 = vpack.c.b16 %v187, %v186
  %v235 = vpack.c.b16 %v189, %v188
  %v236 = vpack.c.b16 %v191, %v190
  %v237 = vpack.c.b16 %v193, %v192
  %v238 = vpack.c.b16 %v195, %v194
  %v239 = vpack.c.b16 %v197, %v196
  %v240 = vpack.c.b16 %v199, %v198
  %v241 = vpack.c.b16 %v201, %v200
  %v242 = vpack.c.b16 %v203, %v202
  %v243 = vpack.c.b16 %v205, %v204
  %v244 = vpack.c.b16 %v207, %v206
  %v245 = vpack.c.b16 %v209, %v208
  %v246 = vpack.c.b16 %v211, %v210
  %v247 = vpack.c.b16 %v213, %v212
  %v248 = vpack.c.b16 %v215, %v214
  %v249 = vpack.c.b16 %v217, %v216
  %v258 = vunpack.c.l.b16 %v82
  %v259 = vunpack.c.l.b16 %v83
  %v260 = vunpack.c.l.b16 %v84
  %v261 = vunpack.c.l.b16 %v85
  %v262 = vunpack.c.l.b16 %v86
  %v263 = vunpack.c.l.b16 %v87
  %v264 = vunpack.c.l.b16 %v88
  %v265 = vunpack.c.l.b16 %v89
  %v266 = vpack.c.b16 %v259, %v258
  %v267 = vpack.c.b16 %v261, %v260
  %v268 = vpack.c.b16 %v263, %v262
  %v269 = vpack.c.b16 %v265, %v264
  %vm274 = vcmask 523264
  %v276 = vsel %vm274, %v218, 0
  %v279 = vsel %vm274, %v219, 0
  %v282 = vsel %vm274, %v220, 0
  %v285 = vsel %vm274, %v221, 0
  %v288 = vsel %vm274, %v222, 0
  %v291 = vsel %vm274, %v223, 0
  %v294 = vsel %vm274, %v224, 0
  %v297 = vsel %vm274, %v225, 0
  %v300 = vsel %vm274, %v226, 0
  %v303 = vsel %vm274, %v227, 0
  %v306 = vsel %vm274, %v228, 0
  %v309 = vsel %vm274, %v229, 0
  %v312 = vsel %vm274, %v230, 0
  %v315 = vsel %vm274, %v231, 0
  %v318 = vsel %vm274, %v232, 0
  %v321 = vsel %vm274, %v233, 0
  %v324 = vsel %vm274, %v234, 0
  %v327 = vsel %vm274, %v235, 0
  %v330 = vsel %vm274, %v236, 0
  %v333 = vsel %vm274, %v237, 0
  %v336 = vsel %vm274, %v238, 0
  %v339 = vsel %vm274, %v239, 0
  %v342 = vsel %vm274, %v240, 0
  %v345 = vsel %vm274, %v241, 0
  %v348 = vsel %vm274, %v242, 0
  %v351 = vsel %vm274, %v243, 0
  %v354 = vsel %vm274, %v244, 0
  %v357 = vsel %vm274, %v245, 0
  %v360 = vsel %vm274, %v246, 0
  %v363 = vsel %vm274, %v247, 0
  %v366 = vsel %vm274, %v248, 0
  %v369 = vsel %vm274, %v249, 0
  %371 = vmatprep.subr.bf16.mxu0 0
  %372 = vmatpush1.bf16.msra.mxu0 %v266
  %373 = vmatprep.subr.bf16.mxu0 0
  %374 = vmatpush1.bf16.msra.mxu0 %v267
  %375 = vmatprep.subr.bf16.mxu0 0
  %376 = vmatpush1.bf16.msra.mxu0 %v268
  %377 = vmatprep.subr.bf16.mxu0 0
  %378 = vmatpush1.bf16.msra.mxu0 %v269
  %379 = vmatprep.subr.bf16.mxu0 0
  %380 = vmatpush1.bf16.msra.mxu0 0
  %381 = vmatprep.subr.bf16.mxu0 0
  %382 = vmatpush1.bf16.msra.mxu0 0
  %383 = vmatprep.subr.bf16.mxu0 0
  %384 = vmatpush1.bf16.msra.mxu0 0
  %385 = vmatprep.subr.bf16.mxu0 0
  %386 = vmatpush1.bf16.msra.mxu0 0
  %387 = vmatprep.subr.bf16.mxu0 0
  %388 = vmatpush1.bf16.msra.mxu0 0
  %389 = vmatprep.subr.bf16.mxu0 0
  %390 = vmatpush1.bf16.msra.mxu0 0
  %391 = vmatprep.subr.bf16.mxu0 0
  %392 = vmatpush1.bf16.msra.mxu0 0
  %393 = vmatprep.subr.bf16.mxu0 0
  %394 = vmatpush1.bf16.msra.mxu0 0
  %395 = vmatprep.subr.bf16.mxu0 0
  %396 = vmatpush1.bf16.msra.mxu0 0
  %397 = vmatprep.subr.bf16.mxu0 0
  %398 = vmatpush1.bf16.msra.mxu0 0
  %399 = vmatprep.subr.bf16.mxu0 0
  %400 = vmatpush1.bf16.msra.mxu0 0
  %401 = vmatprep.subr.bf16.mxu0 0
  %402 = vmatpush1.bf16.msra.mxu0 0
  %403 = vmatprep.mubr.bf16.mxu0 0
  %404 = vmatmul.mubr.bf16.gmra.mrb[0].mxu0 %v276
  %v405 = vpop.f32.mrb[0].mxu0
  %v406 = vadd.f32 0.0, %v405
  %v407 = vpop.f32.mrb[0].mxu0
  %v408 = vpop.f32.mrb[0].mxu0
  %v409 = vadd.f32 0.0, %v408
  %v410 = vpop.f32.mrb[0].mxu0
  %411 = vmatprep.mubr.bf16.mxu0 0
  %412 = vmatmul.mubr.bf16.gmra.mrb[0].mxu0 %v279
  %v413 = vpop.f32.mrb[0].mxu0
  %v414 = vadd.f32 0.0, %v413
  %v415 = vpop.f32.mrb[0].mxu0
  %v416 = vpop.f32.mrb[0].mxu0
  %v417 = vadd.f32 0.0, %v416
  %v418 = vpop.f32.mrb[0].mxu0
  %419 = vmatprep.mubr.bf16.mxu0 0
  %420 = vmatmul.mubr.bf16.gmra.mrb[0].mxu0 %v282
  %v421 = vpop.f32.mrb[0].mxu0
  %v422 = vadd.f32 0.0, %v421
  %v423 = vpop.f32.mrb[0].mxu0
  %v424 = vpop.f32.mrb[0].mxu0
  %v425 = vadd.f32 0.0, %v424
  %v426 = vpop.f32.mrb[0].mxu0
  %427 = vmatprep.mubr.bf16.mxu0 0
  %428 = vmatmul.mubr.bf16.gmra.mrb[0].mxu0 %v285
  %v429 = vpop.f32.mrb[0].mxu0
  %v430 = vadd.f32 0.0, %v429
  %v431 = vpop.f32.mrb[0].mxu0
  %v432 = vpop.f32.mrb[0].mxu0
  %v433 = vadd.f32 0.0, %v432
  %v434 = vpop.f32.mrb[0].mxu0
  %435 = vmatprep.mubr.bf16.mxu0 0
  %436 = vmatmul.mubr.bf16.gmra.mrb[0].mxu0 %v288
  %v437 = vpop.f32.mrb[0].mxu0
  %v438 = vadd.f32 0.0, %v437
  %v439 = vpop.f32.mrb[0].mxu0
  %v440 = vpop.f32.mrb[0].mxu0
  %v441 = vadd.f32 0.0, %v440
  %v442 = vpop.f32.mrb[0].mxu0
  %443 = vmatprep.mubr.bf16.mxu0 0
  %444 = vmatmul.mubr.bf16.gmra.mrb[0].mxu0 %v291
  %v445 = vpop.f32.mrb[0].mxu0
  %v446 = vadd.f32 0.0, %v445
  %v447 = vpop.f32.mrb[0].mxu0
  %v448 = vpop.f32.mrb[0].mxu0
  %v449 = vadd.f32 0.0, %v448
  %v450 = vpop.f32.mrb[0].mxu0
  %451 = vmatprep.mubr.bf16.mxu0 0
  %452 = vmatmul.mubr.bf16.gmra.mrb[0].mxu0 %v294
  %v453 = vpop.f32.mrb[0].mxu0
  %v454 = vadd.f32 0.0, %v453
  %v455 = vpop.f32.mrb[0].mxu0
  %v456 = vpop.f32.mrb[0].mxu0
  %v457 = vadd.f32 0.0, %v456
  %v458 = vpop.f32.mrb[0].mxu0
  %459 = vmatprep.mubr.bf16.mxu0 0
  %460 = vmatmul.mubr.bf16.gmra.mrb[0].mxu0 %v297
  %v461 = vpop.f32.mrb[0].mxu0
  %v462 = vadd.f32 0.0, %v461
  %v463 = vpop.f32.mrb[0].mxu0
  %v464 = vpop.f32.mrb[0].mxu0
  %v465 = vadd.f32 0.0, %v464
  %v466 = vpop.f32.mrb[0].mxu0
  %467 = vmatprep.mubr.bf16.mxu0 0
  %468 = vmatmul.mubr.bf16.gmra.mrb[0].mxu0 %v300
  %v469 = vpop.f32.mrb[0].mxu0
  %v470 = vadd.f32 0.0, %v469
  %v471 = vpop.f32.mrb[0].mxu0
  %v472 = vpop.f32.mrb[0].mxu0
  %v473 = vadd.f32 0.0, %v472
  %v474 = vpop.f32.mrb[0].mxu0
  %475 = vmatprep.mubr.bf16.mxu0 0
  %476 = vmatmul.mubr.bf16.gmra.mrb[0].mxu0 %v303
  %v477 = vpop.f32.mrb[0].mxu0
  %v478 = vadd.f32 0.0, %v477
  %v479 = vpop.f32.mrb[0].mxu0
  %v480 = vpop.f32.mrb[0].mxu0
  %v481 = vadd.f32 0.0, %v480
  %v482 = vpop.f32.mrb[0].mxu0
  %483 = vmatprep.mubr.bf16.mxu0 0
  %484 = vmatmul.mubr.bf16.gmra.mrb[0].mxu0 %v306
  %v485 = vpop.f32.mrb[0].mxu0
  %v486 = vadd.f32 0.0, %v485
  %v487 = vpop.f32.mrb[0].mxu0
  %v488 = vpop.f32.mrb[0].mxu0
  %v489 = vadd.f32 0.0, %v488
  %v490 = vpop.f32.mrb[0].mxu0
  %491 = vmatprep.mubr.bf16.mxu0 0
  %492 = vmatmul.mubr.bf16.gmra.mrb[0].mxu0 %v309
  %v493 = vpop.f32.mrb[0].mxu0
  %v494 = vadd.f32 0.0, %v493
  %v495 = vpop.f32.mrb[0].mxu0
  %v496 = vpop.f32.mrb[0].mxu0
  %v497 = vadd.f32 0.0, %v496
  %v498 = vpop.f32.mrb[0].mxu0
  %499 = vmatprep.mubr.bf16.mxu0 0
  %500 = vmatmul.mubr.bf16.gmra.mrb[0].mxu0 %v312
  %v501 = vpop.f32.mrb[0].mxu0
  %v502 = vadd.f32 0.0, %v501
  %v503 = vpop.f32.mrb[0].mxu0
  %v504 = vpop.f32.mrb[0].mxu0
  %v505 = vadd.f32 0.0, %v504
  %v506 = vpop.f32.mrb[0].mxu0
  %507 = vmatprep.mubr.bf16.mxu0 0
  %508 = vmatmul.mubr.bf16.gmra.mrb[0].mxu0 %v315
  %v509 = vpop.f32.mrb[0].mxu0
  %v510 = vadd.f32 0.0, %v509
  %v511 = vpop.f32.mrb[0].mxu0
  %v512 = vpop.f32.mrb[0].mxu0
  %v513 = vadd.f32 0.0, %v512
  %v514 = vpop.f32.mrb[0].mxu0
  %515 = vmatprep.mubr.bf16.mxu0 0
  %516 = vmatmul.mubr.bf16.gmra.mrb[0].mxu0 %v318
  %v517 = vpop.f32.mrb[0].mxu0
  %v518 = vadd.f32 0.0, %v517
  %v519 = vpop.f32.mrb[0].mxu0
  %v520 = vpop.f32.mrb[0].mxu0
  %v521 = vadd.f32 0.0, %v520
  %v522 = vpop.f32.mrb[0].mxu0
  %523 = vmatprep.mubr.bf16.mxu0 0
  %524 = vmatmul.mubr.bf16.gmra.mrb[0].mxu0 %v321
  %v525 = vpop.f32.mrb[0].mxu0
  %v526 = vadd.f32 0.0, %v525
  %v527 = vpop.f32.mrb[0].mxu0
  %v528 = vpop.f32.mrb[0].mxu0
  %v529 = vadd.f32 0.0, %v528
  %v530 = vpop.f32.mrb[0].mxu0
  %531 = vmatprep.mubr.bf16.mxu0 0
  %532 = vmatmul.mubr.bf16.gmra.mrb[0].mxu0 %v324
  %v533 = vpop.f32.mrb[0].mxu0
  %v534 = vadd.f32 0.0, %v533
  %v535 = vpop.f32.mrb[0].mxu0
  %v536 = vpop.f32.mrb[0].mxu0
  %v537 = vadd.f32 0.0, %v536
  %v538 = vpop.f32.mrb[0].mxu0
  %539 = vmatprep.mubr.bf16.mxu0 0
  %540 = vmatmul.mubr.bf16.gmra.mrb[0].mxu0 %v327
  %v541 = vpop.f32.mrb[0].mxu0
  %v542 = vadd.f32 0.0, %v541
  %v543 = vpop.f32.mrb[0].mxu0
  %v544 = vpop.f32.mrb[0].mxu0
  %v545 = vadd.f32 0.0, %v544
  %v546 = vpop.f32.mrb[0].mxu0
  %547 = vmatprep.mubr.bf16.mxu0 0
  %548 = vmatmul.mubr.bf16.gmra.mrb[0].mxu0 %v330
  %v549 = vpop.f32.mrb[0].mxu0
  %v550 = vadd.f32 0.0, %v549
  %v551 = vpop.f32.mrb[0].mxu0
  %v552 = vpop.f32.mrb[0].mxu0
  %v553 = vadd.f32 0.0, %v552
  %v554 = vpop.f32.mrb[0].mxu0
  %555 = vmatprep.mubr.bf16.mxu0 0
  %556 = vmatmul.mubr.bf16.gmra.mrb[0].mxu0 %v333
  %v557 = vpop.f32.mrb[0].mxu0
  %v558 = vadd.f32 0.0, %v557
  %v559 = vpop.f32.mrb[0].mxu0
  %v560 = vpop.f32.mrb[0].mxu0
  %v561 = vadd.f32 0.0, %v560
  %v562 = vpop.f32.mrb[0].mxu0
  %563 = vmatprep.mubr.bf16.mxu0 0
  %564 = vmatmul.mubr.bf16.gmra.mrb[0].mxu0 %v336
  %v565 = vpop.f32.mrb[0].mxu0
  %v566 = vadd.f32 0.0, %v565
  %v567 = vpop.f32.mrb[0].mxu0
  %v568 = vpop.f32.mrb[0].mxu0
  %v569 = vadd.f32 0.0, %v568
  %v570 = vpop.f32.mrb[0].mxu0
  %571 = vmatprep.mubr.bf16.mxu0 0
  %572 = vmatmul.mubr.bf16.gmra.mrb[0].mxu0 %v339
  %v573 = vpop.f32.mrb[0].mxu0
  %v574 = vadd.f32 0.0, %v573
  %v575 = vpop.f32.mrb[0].mxu0
  %v576 = vpop.f32.mrb[0].mxu0
  %v577 = vadd.f32 0.0, %v576
  %v578 = vpop.f32.mrb[0].mxu0
  %579 = vmatprep.mubr.bf16.mxu0 0
  %580 = vmatmul.mubr.bf16.gmra.mrb[0].mxu0 %v342
  %v581 = vpop.f32.mrb[0].mxu0
  %v582 = vadd.f32 0.0, %v581
  %v583 = vpop.f32.mrb[0].mxu0
  %v584 = vpop.f32.mrb[0].mxu0
  %v585 = vadd.f32 0.0, %v584
  %v586 = vpop.f32.mrb[0].mxu0
  %587 = vmatprep.mubr.bf16.mxu0 0
  %588 = vmatmul.mubr.bf16.gmra.mrb[0].mxu0 %v345
  %v589 = vpop.f32.mrb[0].mxu0
  %v590 = vadd.f32 0.0, %v589
  %v591 = vpop.f32.mrb[0].mxu0
  %v592 = vpop.f32.mrb[0].mxu0
  %v593 = vadd.f32 0.0, %v592
  %v594 = vpop.f32.mrb[0].mxu0
  %595 = vmatprep.mubr.bf16.mxu0 0
  %596 = vmatmul.mubr.bf16.gmra.mrb[0].mxu0 %v348
  %v597 = vpop.f32.mrb[0].mxu0
  %v598 = vadd.f32 0.0, %v597
  %v599 = vpop.f32.mrb[0].mxu0
  %v600 = vpop.f32.mrb[0].mxu0
  %v601 = vadd.f32 0.0, %v600
  %v602 = vpop.f32.mrb[0].mxu0
  %603 = vmatprep.mubr.bf16.mxu0 0
  %604 = vmatmul.mubr.bf16.gmra.mrb[0].mxu0 %v351
  %v605 = vpop.f32.mrb[0].mxu0
  %v606 = vadd.f32 0.0, %v605
  %v607 = vpop.f32.mrb[0].mxu0
  %v608 = vpop.f32.mrb[0].mxu0
  %v609 = vadd.f32 0.0, %v608
  %v610 = vpop.f32.mrb[0].mxu0
  %611 = vmatprep.mubr.bf16.mxu0 0
  %612 = vmatmul.mubr.bf16.gmra.mrb[0].mxu0 %v354
  %v613 = vpop.f32.mrb[0].mxu0
  %v614 = vadd.f32 0.0, %v613
  %v615 = vpop.f32.mrb[0].mxu0
  %v616 = vpop.f32.mrb[0].mxu0
  %v617 = vadd.f32 0.0, %v616
  %v618 = vpop.f32.mrb[0].mxu0
  %619 = vmatprep.mubr.bf16.mxu0 0
  %620 = vmatmul.mubr.bf16.gmra.mrb[0].mxu0 %v357
  %v621 = vpop.f32.mrb[0].mxu0
  %v622 = vadd.f32 0.0, %v621
  %v623 = vpop.f32.mrb[0].mxu0
  %v624 = vpop.f32.mrb[0].mxu0
  %v625 = vadd.f32 0.0, %v624
  %v626 = vpop.f32.mrb[0].mxu0
  %627 = vmatprep.mubr.bf16.mxu0 0
  %628 = vmatmul.mubr.bf16.gmra.mrb[0].mxu0 %v360
  %v629 = vpop.f32.mrb[0].mxu0
  %v630 = vadd.f32 0.0, %v629
  %v631 = vpop.f32.mrb[0].mxu0
  %v632 = vpop.f32.mrb[0].mxu0
  %v633 = vadd.f32 0.0, %v632
  %v634 = vpop.f32.mrb[0].mxu0
  %635 = vmatprep.mubr.bf16.mxu0 0
  %636 = vmatmul.mubr.bf16.gmra.mrb[0].mxu0 %v363
  %v637 = vpop.f32.mrb[0].mxu0
  %v638 = vadd.f32 0.0, %v637
  %v639 = vpop.f32.mrb[0].mxu0
  %v640 = vpop.f32.mrb[0].mxu0
  %v641 = vadd.f32 0.0, %v640
  %v642 = vpop.f32.mrb[0].mxu0
  %643 = vmatprep.mubr.bf16.mxu0 0
  %644 = vmatmul.mubr.bf16.gmra.mrb[0].mxu0 %v366
  %v645 = vpop.f32.mrb[0].mxu0
  %v646 = vadd.f32 0.0, %v645
  %v647 = vpop.f32.mrb[0].mxu0
  %v648 = vpop.f32.mrb[0].mxu0
  %v649 = vadd.f32 0.0, %v648
  %v650 = vpop.f32.mrb[0].mxu0
  %651 = vmatprep.mubr.bf16.mxu0 0
  %652 = vmatmul.mubr.bf16.gmra.mrb[0].mxu0 %v369
  %v653 = vpop.f32.mrb[0].mxu0
  %v654 = vadd.f32 0.0, %v653
  %v655 = vpop.f32.mrb[0].mxu0
  %v656 = vpop.f32.mrb[0].mxu0
  %v657 = vadd.f32 0.0, %v656
  %v658 = vpop.f32.mrb[0].mxu0
  %659 = vdwg.mxu0
  %660 = vmatprep.subr.mxu0 0.0
  %661 = vmatpush1.msra.mxu0 %v406
  %662 = vmatprep.subr.mxu0 0.0
  %663 = vmatpush1.msra.mxu0 %v409
  %664 = vmatprep.subr.mxu0 0.0
  %665 = vmatpush1.msra.mxu0 %v414
  %666 = vmatprep.subr.mxu0 0.0
  %667 = vmatpush1.msra.mxu0 %v417
  %668 = vmatprep.subr.mxu0 0.0
  %669 = vmatpush1.msra.mxu0 %v422
  %670 = vmatprep.subr.mxu0 0.0
  %671 = vmatpush1.msra.mxu0 %v425
  %672 = vmatprep.subr.mxu0 0.0
  %673 = vmatpush1.msra.mxu0 %v430
  %674 = vmatprep.subr.mxu0 0.0
  %675 = vmatpush1.msra.mxu0 %v433
  %676 = vmatprep.subr.mxu0 0.0
  %677 = vmatpush1.msra.mxu0 %v438
  %678 = vmatprep.subr.mxu0 0.0
  %679 = vmatpush1.msra.mxu0 %v441
  %680 = vmatprep.subr.mxu0 0.0
  %681 = vmatpush1.msra.mxu0 %v446
  %682 = vmatprep.subr.mxu0 0.0
  %683 = vmatpush1.msra.mxu0 %v449
  %684 = vmatprep.subr.mxu0 0.0
  %685 = vmatpush1.msra.mxu0 %v454
  %686 = vmatprep.subr.mxu0 0.0
  %687 = vmatpush1.msra.mxu0 %v457
  %688 = vmatprep.subr.mxu0 0.0
  %689 = vmatpush1.msra.mxu0 %v462
  %690 = vmatprep.subr.mxu0 0.0
  %691 = vmatpush1.msra.mxu0 %v465
  %692 = vmatprep.subr.mxu0 0.0
  %693 = vmatpush1.msra.mxu0 %v470
  %694 = vmatprep.subr.mxu0 0.0
  %695 = vmatpush1.msra.mxu0 %v473
  %696 = vmatprep.subr.mxu0 0.0
  %697 = vmatpush1.msra.mxu0 %v478
  %698 = vmatprep.subr.mxu0 0.0
  %699 = vmatpush1.msra.mxu0 %v481
  %700 = vmatprep.subr.mxu0 0.0
  %701 = vmatpush1.msra.mxu0 %v486
  %702 = vmatprep.subr.mxu0 0.0
  %703 = vmatpush1.msra.mxu0 %v489
  %704 = vmatprep.subr.mxu0 0.0
  %705 = vmatpush1.msra.mxu0 %v494
  %706 = vmatprep.subr.mxu0 0.0
  %707 = vmatpush1.msra.mxu0 %v497
  %708 = vmatprep.subr.mxu0 0.0
  %709 = vmatpush1.msra.mxu0 %v502
  %710 = vmatprep.subr.mxu0 0.0
  %711 = vmatpush1.msra.mxu0 %v505
  %712 = vmatprep.subr.mxu0 0.0
  %713 = vmatpush1.msra.mxu0 %v510
  %714 = vmatprep.subr.mxu0 0.0
  %715 = vmatpush1.msra.mxu0 %v513
  %716 = vmatprep.subr.mxu0 0.0
  %717 = vmatpush1.msra.mxu0 %v518
  %718 = vmatprep.subr.mxu0 0.0
  %719 = vmatpush1.msra.mxu0 %v521
  %720 = vmatprep.subr.mxu0 0.0
  %721 = vmatpush1.msra.mxu0 %v526
  %722 = vmatprep.subr.mxu0 0.0
  %723 = vmatpush1.msra.mxu0 %v529
  %724 = vmatprep.mubr.f32.mxu0 1.0
  %725 = vmatmul.mubr.f32.gmra.mrb[0].mxu0 1.0
  %v726 = vpop.f32.mrb[0].mxu0
  %v727 = vadd.f32 0.0, %v726
  %v728 = vpop.f32.mrb[0].mxu0
  %729 = vdwg.mxu0
  %730 = vmatprep.subr.mxu0 0.0
  %731 = vmatpush1.msra.mxu0 %v534
  %732 = vmatprep.subr.mxu0 0.0
  %733 = vmatpush1.msra.mxu0 %v537
  %734 = vmatprep.subr.mxu0 0.0
  %735 = vmatpush1.msra.mxu0 %v542
  %736 = vmatprep.subr.mxu0 0.0
  %737 = vmatpush1.msra.mxu0 %v545
  %738 = vmatprep.subr.mxu0 0.0
  %739 = vmatpush1.msra.mxu0 %v550
  %740 = vmatprep.subr.mxu0 0.0
  %741 = vmatpush1.msra.mxu0 %v553
  %742 = vmatprep.subr.mxu0 0.0
  %743 = vmatpush1.msra.mxu0 %v558
  %744 = vmatprep.subr.mxu0 0.0
  %745 = vmatpush1.msra.mxu0 %v561
  %746 = vmatprep.subr.mxu0 0.0
  %747 = vmatpush1.msra.mxu0 %v566
  %748 = vmatprep.subr.mxu0 0.0
  %749 = vmatpush1.msra.mxu0 %v569
  %750 = vmatprep.subr.mxu0 0.0
  %751 = vmatpush1.msra.mxu0 %v574
  %752 = vmatprep.subr.mxu0 0.0
  %753 = vmatpush1.msra.mxu0 %v577
  %754 = vmatprep.subr.mxu0 0.0
  %755 = vmatpush1.msra.mxu0 %v582
  %756 = vmatprep.subr.mxu0 0.0
  %757 = vmatpush1.msra.mxu0 %v585
  %758 = vmatprep.subr.mxu0 0.0
  %759 = vmatpush1.msra.mxu0 %v590
  %760 = vmatprep.subr.mxu0 0.0
  %761 = vmatpush1.msra.mxu0 %v593
  %762 = vmatprep.subr.mxu0 0.0
  %763 = vmatpush1.msra.mxu0 %v598
  %764 = vmatprep.subr.mxu0 0.0
  %765 = vmatpush1.msra.mxu0 %v601
  %766 = vmatprep.subr.mxu0 0.0
  %767 = vmatpush1.msra.mxu0 %v606
  %768 = vmatprep.subr.mxu0 0.0
  %769 = vmatpush1.msra.mxu0 %v609
  %770 = vmatprep.subr.mxu0 0.0
  %771 = vmatpush1.msra.mxu0 %v614
  %772 = vmatprep.subr.mxu0 0.0
  %773 = vmatpush1.msra.mxu0 %v617
  %774 = vmatprep.subr.mxu0 0.0
  %775 = vmatpush1.msra.mxu0 %v622
  %776 = vmatprep.subr.mxu0 0.0
  %777 = vmatpush1.msra.mxu0 %v625
  %778 = vmatprep.subr.mxu0 0.0
  %779 = vmatpush1.msra.mxu0 %v630
  %780 = vmatprep.subr.mxu0 0.0
  %781 = vmatpush1.msra.mxu0 %v633
  %782 = vmatprep.subr.mxu0 0.0
  %783 = vmatpush1.msra.mxu0 %v638
  %784 = vmatprep.subr.mxu0 0.0
  %785 = vmatpush1.msra.mxu0 %v641
  %786 = vmatprep.subr.mxu0 0.0
  %787 = vmatpush1.msra.mxu0 %v646
  %788 = vmatprep.subr.mxu0 0.0
  %789 = vmatpush1.msra.mxu0 %v649
  %790 = vmatprep.subr.mxu0 0.0
  %791 = vmatpush1.msra.mxu0 %v654
  %792 = vmatprep.subr.mxu0 0.0
  %793 = vmatpush1.msra.mxu0 %v657
  %794 = vmatprep.mubr.f32.mxu0 1.0
  %795 = vmatmul.mubr.f32.gmra.mrb[0].mxu0 1.0
  %v796 = vpop.f32.mrb[0].mxu0
  %v797 = vadd.f32 %v727, %v796
  %v798 = vpop.f32.mrb[0].mxu0
  %799 = vdwg.mxu0
  %v800 = vmul.f32 %v406, %v406
  %v801 = vmul.f32 %v409, %v409
  %v802 = vmul.f32 %v414, %v414
  %v803 = vmul.f32 %v417, %v417
  %v804 = vmul.f32 %v422, %v422
  %v805 = vmul.f32 %v425, %v425
  %v806 = vmul.f32 %v430, %v430
  %v807 = vmul.f32 %v433, %v433
  %v808 = vmul.f32 %v438, %v438
  %v809 = vmul.f32 %v441, %v441
  %v810 = vmul.f32 %v446, %v446
  %v811 = vmul.f32 %v449, %v449
  %v812 = vmul.f32 %v454, %v454
  %v813 = vmul.f32 %v457, %v457
  %v814 = vmul.f32 %v462, %v462
  %v815 = vmul.f32 %v465, %v465
  %v816 = vmul.f32 %v470, %v470
  %v817 = vmul.f32 %v473, %v473
  %v818 = vmul.f32 %v478, %v478
  %v819 = vmul.f32 %v481, %v481
  %v820 = vmul.f32 %v486, %v486
  %v821 = vmul.f32 %v489, %v489
  %v822 = vmul.f32 %v494, %v494
  %v823 = vmul.f32 %v497, %v497
  %v824 = vmul.f32 %v502, %v502
  %v825 = vmul.f32 %v505, %v505
  %v826 = vmul.f32 %v510, %v510
  %v827 = vmul.f32 %v513, %v513
  %v828 = vmul.f32 %v518, %v518
  %v829 = vmul.f32 %v521, %v521
  %v830 = vmul.f32 %v526, %v526
  %v831 = vmul.f32 %v529, %v529
  %v832 = vmul.f32 %v534, %v534
  %v833 = vmul.f32 %v537, %v537
  %v834 = vmul.f32 %v542, %v542
  %v835 = vmul.f32 %v545, %v545
  %v836 = vmul.f32 %v550, %v550
  %v837 = vmul.f32 %v553, %v553
  %v838 = vmul.f32 %v558, %v558
  %v839 = vmul.f32 %v561, %v561
  %v840 = vmul.f32 %v566, %v566
  %v841 = vmul.f32 %v569, %v569
  %v842 = vmul.f32 %v574, %v574
  %v843 = vmul.f32 %v577, %v577
  %v844 = vmul.f32 %v582, %v582
  %v845 = vmul.f32 %v585, %v585
  %v846 = vmul.f32 %v590, %v590
  %v847 = vmul.f32 %v593, %v593
  %v848 = vmul.f32 %v598, %v598
  %v849 = vmul.f32 %v601, %v601
  %v850 = vmul.f32 %v606, %v606
  %v851 = vmul.f32 %v609, %v609
  %v852 = vmul.f32 %v614, %v614
  %v853 = vmul.f32 %v617, %v617
  %v854 = vmul.f32 %v622, %v622
  %v855 = vmul.f32 %v625, %v625
  %v856 = vmul.f32 %v630, %v630
  %v857 = vmul.f32 %v633, %v633
  %v858 = vmul.f32 %v638, %v638
  %v859 = vmul.f32 %v641, %v641
  %v860 = vmul.f32 %v646, %v646
  %v861 = vmul.f32 %v649, %v649
  %v862 = vmul.f32 %v654, %v654
  %v863 = vmul.f32 %v657, %v657
  %v864 = vadd.f32 %v800, %v801
  %v865 = vadd.f32 %v864, %v802
  %v866 = vadd.f32 %v865, %v803
  %v867 = vadd.f32 %v866, %v804
  %v868 = vadd.f32 %v867, %v805
  %v869 = vadd.f32 %v868, %v806
  %v870 = vadd.f32 %v869, %v807
  %v871 = vadd.f32 %v870, %v808
  %v872 = vadd.f32 %v871, %v809
  %v873 = vadd.f32 %v872, %v810
  %v874 = vadd.f32 %v873, %v811
  %v875 = vadd.f32 %v874, %v812
  %v876 = vadd.f32 %v875, %v813
  %v877 = vadd.f32 %v876, %v814
  %v878 = vadd.f32 %v877, %v815
  %v879 = vadd.f32 %v878, %v816
  %v880 = vadd.f32 %v879, %v817
  %v881 = vadd.f32 %v880, %v818
  %v882 = vadd.f32 %v881, %v819
  %v883 = vadd.f32 %v882, %v820
  %v884 = vadd.f32 %v883, %v821
  %v885 = vadd.f32 %v884, %v822
  %v886 = vadd.f32 %v885, %v823
  %v887 = vadd.f32 %v886, %v824
  %v888 = vadd.f32 %v887, %v825
  %v889 = vadd.f32 %v888, %v826
  %v890 = vadd.f32 %v889, %v827
  %v891 = vadd.f32 %v890, %v828
  %v892 = vadd.f32 %v891, %v829
  %v893 = vadd.f32 %v892, %v830
  %v894 = vadd.f32 %v893, %v831
  %v895 = vadd.f32 %v894, %v832
  %v896 = vadd.f32 %v895, %v833
  %v897 = vadd.f32 %v896, %v834
  %v898 = vadd.f32 %v897, %v835
  %v899 = vadd.f32 %v898, %v836
  %v900 = vadd.f32 %v899, %v837
  %v901 = vadd.f32 %v900, %v838
  %v902 = vadd.f32 %v901, %v839
  %v903 = vadd.f32 %v902, %v840
  %v904 = vadd.f32 %v903, %v841
  %v905 = vadd.f32 %v904, %v842
  %v906 = vadd.f32 %v905, %v843
  %v907 = vadd.f32 %v906, %v844
  %v908 = vadd.f32 %v907, %v845
  %v909 = vadd.f32 %v908, %v846
  %v910 = vadd.f32 %v909, %v847
  %v911 = vadd.f32 %v910, %v848
  %v912 = vadd.f32 %v911, %v849
  %v913 = vadd.f32 %v912, %v850
  %v914 = vadd.f32 %v913, %v851
  %v915 = vadd.f32 %v914, %v852
  %v916 = vadd.f32 %v915, %v853
  %v917 = vadd.f32 %v916, %v854
  %v918 = vadd.f32 %v917, %v855
  %v919 = vadd.f32 %v918, %v856
  %v920 = vadd.f32 %v919, %v857
  %v921 = vadd.f32 %v920, %v858
  %v922 = vadd.f32 %v921, %v859
  %v923 = vadd.f32 %v922, %v860
  %v924 = vadd.f32 %v923, %v861
  %v925 = vadd.f32 %v924, %v862
  %v926 = vadd.f32 %v925, %v863
  %v927 = vrot.slane %v926, 4
  %v928 = vadd.f32 %v926, %v927
  %v929 = vrot.slane %v928, 2
  %v930 = vadd.f32 %v928, %v929
  %v931 = vrot.slane %v930, 1
  %v932 = vadd.f32 %v930, %v931
  %v933 = vmul.f32 %v797, 0.001953125
  %v934 = vmul.f32 %v932, 0.001953125
  %v935 = vmul.f32 %v933, %v933
  %v936 = vsub.f32 %v934, %v935
  %v937 = vmax.f32 %v936, 0.0
  %v938 = vld [vmem:[%s2] sm:$0x1]
  %v939 = vadd.f32 %v937, 1e-05
  %v940 = vrsqrt.pop %v939
  %v941 = vmul.f32 %v938, %v940
  %v942 = vld [vmem:[%s3] sm:$0x1]
  %v943 = vmul.f32 %v933, %v941
  %v944 = vsub.f32 %v942, %v943
  %v946 = vlaneseq
  %v947 = vshrl.u32 %v946, 7
  %v948 = vsub.s32 0, %v947
  %v949 = vrot.slane %v941, %v948
  %v951 = vmul.f32 %v406, %v949
  %v952 = vmul.f32 %v409, %v949
  %v953 = vmul.f32 %v414, %v949
  %v954 = vmul.f32 %v417, %v949
  %v955 = vmul.f32 %v422, %v949
  %v956 = vmul.f32 %v425, %v949
  %v957 = vmul.f32 %v430, %v949
  %v958 = vmul.f32 %v433, %v949
  %v959 = vmul.f32 %v438, %v949
  %v960 = vmul.f32 %v441, %v949
  %v961 = vmul.f32 %v446, %v949
  %v962 = vmul.f32 %v449, %v949
  %v963 = vmul.f32 %v454, %v949
  %v964 = vmul.f32 %v457, %v949
  %v965 = vmul.f32 %v462, %v949
  %v966 = vmul.f32 %v465, %v949
  %v967 = vmul.f32 %v470, %v949
  %v968 = vmul.f32 %v473, %v949
  %v969 = vmul.f32 %v478, %v949
  %v970 = vmul.f32 %v481, %v949
  %v971 = vmul.f32 %v486, %v949
  %v972 = vmul.f32 %v489, %v949
  %v973 = vmul.f32 %v494, %v949
  %v974 = vmul.f32 %v497, %v949
  %v975 = vmul.f32 %v502, %v949
  %v976 = vmul.f32 %v505, %v949
  %v977 = vmul.f32 %v510, %v949
  %v978 = vmul.f32 %v513, %v949
  %v979 = vmul.f32 %v518, %v949
  %v980 = vmul.f32 %v521, %v949
  %v981 = vmul.f32 %v526, %v949
  %v982 = vmul.f32 %v529, %v949
  %v983 = vmul.f32 %v534, %v949
  %v984 = vmul.f32 %v537, %v949
  %v985 = vmul.f32 %v542, %v949
  %v986 = vmul.f32 %v545, %v949
  %v987 = vmul.f32 %v550, %v949
  %v988 = vmul.f32 %v553, %v949
  %v989 = vmul.f32 %v558, %v949
  %v990 = vmul.f32 %v561, %v949
  %v991 = vmul.f32 %v566, %v949
  %v992 = vmul.f32 %v569, %v949
  %v993 = vmul.f32 %v574, %v949
  %v994 = vmul.f32 %v577, %v949
  %v995 = vmul.f32 %v582, %v949
  %v996 = vmul.f32 %v585, %v949
  %v997 = vmul.f32 %v590, %v949
  %v998 = vmul.f32 %v593, %v949
  %v999 = vmul.f32 %v598, %v949
  %v1000 = vmul.f32 %v601, %v949
  %v1001 = vmul.f32 %v606, %v949
  %v1002 = vmul.f32 %v609, %v949
  %v1003 = vmul.f32 %v614, %v949
  %v1004 = vmul.f32 %v617, %v949
  %v1005 = vmul.f32 %v622, %v949
  %v1006 = vmul.f32 %v625, %v949
  %v1007 = vmul.f32 %v630, %v949
  %v1008 = vmul.f32 %v633, %v949
  %v1009 = vmul.f32 %v638, %v949
  %v1010 = vmul.f32 %v641, %v949
  %v1011 = vmul.f32 %v646, %v949
  %v1012 = vmul.f32 %v649, %v949
  %v1013 = vmul.f32 %v654, %v949
  %v1014 = vmul.f32 %v657, %v949
  %v1016 = vlaneseq
  %v1017 = vshrl.u32 %v1016, 7
  %v1018 = vsub.s32 0, %v1017
  %v1019 = vrot.slane %v944, %v1018
  %v1021 = vadd.f32 %v951, %v1019
  %v1022 = vadd.f32 %v952, %v1019
  %v1023 = vadd.f32 %v953, %v1019
  %v1024 = vadd.f32 %v954, %v1019
  %v1025 = vadd.f32 %v955, %v1019
  %v1026 = vadd.f32 %v956, %v1019
  %v1027 = vadd.f32 %v957, %v1019
  %v1028 = vadd.f32 %v958, %v1019
  %v1029 = vadd.f32 %v959, %v1019
  %v1030 = vadd.f32 %v960, %v1019
  %v1031 = vadd.f32 %v961, %v1019
  %v1032 = vadd.f32 %v962, %v1019
  %v1033 = vadd.f32 %v963, %v1019
  %v1034 = vadd.f32 %v964, %v1019
  %v1035 = vadd.f32 %v965, %v1019
  %v1036 = vadd.f32 %v966, %v1019
  %v1037 = vadd.f32 %v967, %v1019
  %v1038 = vadd.f32 %v968, %v1019
  %v1039 = vadd.f32 %v969, %v1019
  %v1040 = vadd.f32 %v970, %v1019
  %v1041 = vadd.f32 %v971, %v1019
  %v1042 = vadd.f32 %v972, %v1019
  %v1043 = vadd.f32 %v973, %v1019
  %v1044 = vadd.f32 %v974, %v1019
  %v1045 = vadd.f32 %v975, %v1019
  %v1046 = vadd.f32 %v976, %v1019
  %v1047 = vadd.f32 %v977, %v1019
  %v1048 = vadd.f32 %v978, %v1019
  %v1049 = vadd.f32 %v979, %v1019
  %v1050 = vadd.f32 %v980, %v1019
  %v1051 = vadd.f32 %v981, %v1019
  %v1052 = vadd.f32 %v982, %v1019
  %v1053 = vadd.f32 %v983, %v1019
  %v1054 = vadd.f32 %v984, %v1019
  %v1055 = vadd.f32 %v985, %v1019
  %v1056 = vadd.f32 %v986, %v1019
  %v1057 = vadd.f32 %v987, %v1019
  %v1058 = vadd.f32 %v988, %v1019
  %v1059 = vadd.f32 %v989, %v1019
  %v1060 = vadd.f32 %v990, %v1019
  %v1061 = vadd.f32 %v991, %v1019
  %v1062 = vadd.f32 %v992, %v1019
  %v1063 = vadd.f32 %v993, %v1019
  %v1064 = vadd.f32 %v994, %v1019
  %v1065 = vadd.f32 %v995, %v1019
  %v1066 = vadd.f32 %v996, %v1019
  %v1067 = vadd.f32 %v997, %v1019
  %v1068 = vadd.f32 %v998, %v1019
  %v1069 = vadd.f32 %v999, %v1019
  %v1070 = vadd.f32 %v1000, %v1019
  %v1071 = vadd.f32 %v1001, %v1019
  %v1072 = vadd.f32 %v1002, %v1019
  %v1073 = vadd.f32 %v1003, %v1019
  %v1074 = vadd.f32 %v1004, %v1019
  %v1075 = vadd.f32 %v1005, %v1019
  %v1076 = vadd.f32 %v1006, %v1019
  %v1077 = vadd.f32 %v1007, %v1019
  %v1078 = vadd.f32 %v1008, %v1019
  %v1079 = vadd.f32 %v1009, %v1019
  %v1080 = vadd.f32 %v1010, %v1019
  %v1081 = vadd.f32 %v1011, %v1019
  %v1082 = vadd.f32 %v1012, %v1019
  %v1083 = vadd.f32 %v1013, %v1019
  %v1084 = vadd.f32 %v1014, %v1019
  %v1085 = vmul.f32 %v1021, 0.2
  %v1086 = vmul.f32 %v1022, 0.2
  %v1087 = vmul.f32 %v1023, 0.2
  %v1088 = vmul.f32 %v1024, 0.2
  %v1089 = vmul.f32 %v1025, 0.2
  %v1090 = vmul.f32 %v1026, 0.2
  %v1091 = vmul.f32 %v1027, 0.2
  %v1092 = vmul.f32 %v1028, 0.2
  %v1093 = vmul.f32 %v1029, 0.2
  %v1094 = vmul.f32 %v1030, 0.2
  %v1095 = vmul.f32 %v1031, 0.2
  %v1096 = vmul.f32 %v1032, 0.2
  %v1097 = vmul.f32 %v1033, 0.2
  %v1098 = vmul.f32 %v1034, 0.2
  %v1099 = vmul.f32 %v1035, 0.2
  %v1100 = vmul.f32 %v1036, 0.2
  %v1101 = vmul.f32 %v1037, 0.2
  %v1102 = vmul.f32 %v1038, 0.2
  %v1103 = vmul.f32 %v1039, 0.2
  %v1104 = vmul.f32 %v1040, 0.2
  %v1105 = vmul.f32 %v1041, 0.2
  %v1106 = vmul.f32 %v1042, 0.2
  %v1107 = vmul.f32 %v1043, 0.2
  %v1108 = vmul.f32 %v1044, 0.2
  %v1109 = vmul.f32 %v1045, 0.2
  %v1110 = vmul.f32 %v1046, 0.2
  %v1111 = vmul.f32 %v1047, 0.2
  %v1112 = vmul.f32 %v1048, 0.2
  %v1113 = vmul.f32 %v1049, 0.2
  %v1114 = vmul.f32 %v1050, 0.2
  %v1115 = vmul.f32 %v1051, 0.2
  %v1116 = vmul.f32 %v1052, 0.2
  %v1117 = vmul.f32 %v1053, 0.2
  %v1118 = vmul.f32 %v1054, 0.2
  %v1119 = vmul.f32 %v1055, 0.2
  %v1120 = vmul.f32 %v1056, 0.2
  %v1121 = vmul.f32 %v1057, 0.2
  %v1122 = vmul.f32 %v1058, 0.2
  %v1123 = vmul.f32 %v1059, 0.2
  %v1124 = vmul.f32 %v1060, 0.2
  %v1125 = vmul.f32 %v1061, 0.2
  %v1126 = vmul.f32 %v1062, 0.2
  %v1127 = vmul.f32 %v1063, 0.2
  %v1128 = vmul.f32 %v1064, 0.2
  %v1129 = vmul.f32 %v1065, 0.2
  %v1130 = vmul.f32 %v1066, 0.2
  %v1131 = vmul.f32 %v1067, 0.2
  %v1132 = vmul.f32 %v1068, 0.2
  %v1133 = vmul.f32 %v1069, 0.2
  %v1134 = vmul.f32 %v1070, 0.2
  %v1135 = vmul.f32 %v1071, 0.2
  %v1136 = vmul.f32 %v1072, 0.2
  %v1137 = vmul.f32 %v1073, 0.2
  %v1138 = vmul.f32 %v1074, 0.2
  %v1139 = vmul.f32 %v1075, 0.2
  %v1140 = vmul.f32 %v1076, 0.2
  %v1141 = vmul.f32 %v1077, 0.2
  %v1142 = vmul.f32 %v1078, 0.2
  %v1143 = vmul.f32 %v1079, 0.2
  %v1144 = vmul.f32 %v1080, 0.2
  %v1145 = vmul.f32 %v1081, 0.2
  %v1146 = vmul.f32 %v1082, 0.2
  %v1147 = vmul.f32 %v1083, 0.2
  %v1148 = vmul.f32 %v1084, 0.2
  %v1149 = vmax.f32 %v1021, %v1085
  %v1150 = vmax.f32 %v1022, %v1086
  %v1151 = vmax.f32 %v1023, %v1087
  %v1152 = vmax.f32 %v1024, %v1088
  %v1153 = vmax.f32 %v1025, %v1089
  %v1154 = vmax.f32 %v1026, %v1090
  %v1155 = vmax.f32 %v1027, %v1091
  %v1156 = vmax.f32 %v1028, %v1092
  %v1157 = vmax.f32 %v1029, %v1093
  %v1158 = vmax.f32 %v1030, %v1094
  %v1159 = vmax.f32 %v1031, %v1095
  %v1160 = vmax.f32 %v1032, %v1096
  %v1161 = vmax.f32 %v1033, %v1097
  %v1162 = vmax.f32 %v1034, %v1098
  %v1163 = vmax.f32 %v1035, %v1099
  %v1164 = vmax.f32 %v1036, %v1100
  %v1165 = vmax.f32 %v1037, %v1101
  %v1166 = vmax.f32 %v1038, %v1102
  %v1167 = vmax.f32 %v1039, %v1103
  %v1168 = vmax.f32 %v1040, %v1104
  %v1169 = vmax.f32 %v1041, %v1105
  %v1170 = vmax.f32 %v1042, %v1106
  %v1171 = vmax.f32 %v1043, %v1107
  %v1172 = vmax.f32 %v1044, %v1108
  %v1173 = vmax.f32 %v1045, %v1109
  %v1174 = vmax.f32 %v1046, %v1110
  %v1175 = vmax.f32 %v1047, %v1111
  %v1176 = vmax.f32 %v1048, %v1112
  %v1177 = vmax.f32 %v1049, %v1113
  %v1178 = vmax.f32 %v1050, %v1114
  %v1179 = vmax.f32 %v1051, %v1115
  %v1180 = vmax.f32 %v1052, %v1116
  %v1181 = vmax.f32 %v1053, %v1117
  %v1182 = vmax.f32 %v1054, %v1118
  %v1183 = vmax.f32 %v1055, %v1119
  %v1184 = vmax.f32 %v1056, %v1120
  %v1185 = vmax.f32 %v1057, %v1121
  %v1186 = vmax.f32 %v1058, %v1122
  %v1187 = vmax.f32 %v1059, %v1123
  %v1188 = vmax.f32 %v1060, %v1124
  %v1189 = vmax.f32 %v1061, %v1125
  %v1190 = vmax.f32 %v1062, %v1126
  %v1191 = vmax.f32 %v1063, %v1127
  %v1192 = vmax.f32 %v1064, %v1128
  %v1193 = vmax.f32 %v1065, %v1129
  %v1194 = vmax.f32 %v1066, %v1130
  %v1195 = vmax.f32 %v1067, %v1131
  %v1196 = vmax.f32 %v1068, %v1132
  %v1197 = vmax.f32 %v1069, %v1133
  %v1198 = vmax.f32 %v1070, %v1134
  %v1199 = vmax.f32 %v1071, %v1135
  %v1200 = vmax.f32 %v1072, %v1136
  %v1201 = vmax.f32 %v1073, %v1137
  %v1202 = vmax.f32 %v1074, %v1138
  %v1203 = vmax.f32 %v1075, %v1139
  %v1204 = vmax.f32 %v1076, %v1140
  %v1205 = vmax.f32 %v1077, %v1141
  %v1206 = vmax.f32 %v1078, %v1142
  %v1207 = vmax.f32 %v1079, %v1143
  %v1208 = vmax.f32 %v1080, %v1144
  %v1209 = vmax.f32 %v1081, %v1145
  %v1210 = vmax.f32 %v1082, %v1146
  %v1211 = vmax.f32 %v1083, %v1147
  %v1212 = vmax.f32 %v1084, %v1148
  %v1213 = vpack.c.bf16 %v1150, %v1149
  %v1214 = vpack.c.bf16 %v1152, %v1151
  %v1215 = vpack.c.bf16 %v1154, %v1153
  %v1216 = vpack.c.bf16 %v1156, %v1155
  %v1217 = vpack.c.bf16 %v1158, %v1157
  %v1218 = vpack.c.bf16 %v1160, %v1159
  %v1219 = vpack.c.bf16 %v1162, %v1161
  %v1220 = vpack.c.bf16 %v1164, %v1163
  %v1221 = vpack.c.bf16 %v1166, %v1165
  %v1222 = vpack.c.bf16 %v1168, %v1167
  %v1223 = vpack.c.bf16 %v1170, %v1169
  %v1224 = vpack.c.bf16 %v1172, %v1171
  %v1225 = vpack.c.bf16 %v1174, %v1173
  %v1226 = vpack.c.bf16 %v1176, %v1175
  %v1227 = vpack.c.bf16 %v1178, %v1177
  %v1228 = vpack.c.bf16 %v1180, %v1179
  %v1229 = vpack.c.bf16 %v1182, %v1181
  %v1230 = vpack.c.bf16 %v1184, %v1183
  %v1231 = vpack.c.bf16 %v1186, %v1185
  %v1232 = vpack.c.bf16 %v1188, %v1187
  %v1233 = vpack.c.bf16 %v1190, %v1189
  %v1234 = vpack.c.bf16 %v1192, %v1191
  %v1235 = vpack.c.bf16 %v1194, %v1193
  %v1236 = vpack.c.bf16 %v1196, %v1195
  %v1237 = vpack.c.bf16 %v1198, %v1197
  %v1238 = vpack.c.bf16 %v1200, %v1199
  %v1239 = vpack.c.bf16 %v1202, %v1201
  %v1240 = vpack.c.bf16 %v1204, %v1203
  %v1241 = vpack.c.bf16 %v1206, %v1205
  %v1242 = vpack.c.bf16 %v1208, %v1207
  %v1243 = vpack.c.bf16 %v1210, %v1209
  %v1244 = vpack.c.bf16 %v1212, %v1211
  %v1277 = vunpack.c.l.b16 %v1213
  %v1278 = vunpack.c.h.b16 %v1213
  %v1279 = vunpack.c.l.b16 %v1214
  %v1280 = vunpack.c.h.b16 %v1214
  %v1281 = vunpack.c.l.b16 %v1215
  %v1282 = vunpack.c.h.b16 %v1215
  %v1283 = vunpack.c.l.b16 %v1216
  %v1284 = vunpack.c.h.b16 %v1216
  %v1285 = vunpack.c.l.b16 %v1217
  %v1286 = vunpack.c.h.b16 %v1217
  %v1287 = vunpack.c.l.b16 %v1218
  %v1288 = vunpack.c.h.b16 %v1218
  %v1289 = vunpack.c.l.b16 %v1219
  %v1290 = vunpack.c.h.b16 %v1219
  %v1291 = vunpack.c.l.b16 %v1220
  %v1292 = vunpack.c.h.b16 %v1220
  %v1293 = vunpack.c.l.b16 %v1221
  %v1294 = vunpack.c.h.b16 %v1221
  %v1295 = vunpack.c.l.b16 %v1222
  %v1296 = vunpack.c.h.b16 %v1222
  %v1297 = vunpack.c.l.b16 %v1223
  %v1298 = vunpack.c.h.b16 %v1223
  %v1299 = vunpack.c.l.b16 %v1224
  %v1300 = vunpack.c.h.b16 %v1224
  %v1301 = vunpack.c.l.b16 %v1225
  %v1302 = vunpack.c.h.b16 %v1225
  %v1303 = vunpack.c.l.b16 %v1226
  %v1304 = vunpack.c.h.b16 %v1226
  %v1305 = vunpack.c.l.b16 %v1227
  %v1306 = vunpack.c.h.b16 %v1227
  %v1307 = vunpack.c.l.b16 %v1228
  %v1308 = vunpack.c.h.b16 %v1228
  %v1309 = vunpack.c.l.b16 %v1229
  %v1310 = vunpack.c.h.b16 %v1229
  %v1311 = vunpack.c.l.b16 %v1230
  %v1312 = vunpack.c.h.b16 %v1230
  %v1313 = vunpack.c.l.b16 %v1231
  %v1314 = vunpack.c.h.b16 %v1231
  %v1315 = vunpack.c.l.b16 %v1232
  %v1316 = vunpack.c.h.b16 %v1232
  %v1317 = vunpack.c.l.b16 %v1233
  %v1318 = vunpack.c.h.b16 %v1233
  %v1319 = vunpack.c.l.b16 %v1234
  %v1320 = vunpack.c.h.b16 %v1234
  %v1321 = vunpack.c.l.b16 %v1235
  %v1322 = vunpack.c.h.b16 %v1235
  %v1323 = vunpack.c.l.b16 %v1236
  %v1324 = vunpack.c.h.b16 %v1236
  %v1325 = vunpack.c.l.b16 %v1237
  %v1326 = vunpack.c.h.b16 %v1237
  %v1327 = vunpack.c.l.b16 %v1238
  %v1328 = vunpack.c.h.b16 %v1238
  %v1329 = vunpack.c.l.b16 %v1239
  %v1330 = vunpack.c.h.b16 %v1239
  %v1331 = vunpack.c.l.b16 %v1240
  %v1332 = vunpack.c.h.b16 %v1240
  %v1333 = vunpack.c.l.b16 %v1241
  %v1334 = vunpack.c.h.b16 %v1241
  %v1335 = vunpack.c.l.b16 %v1242
  %v1336 = vunpack.c.h.b16 %v1242
  %v1337 = vunpack.c.l.b16 %v1243
  %v1338 = vunpack.c.h.b16 %v1243
  %v1339 = vunpack.c.l.b16 %v1244
  %v1340 = vunpack.c.h.b16 %v1244
  %v1341 = vpack.c.b16 %v1277, %v1277
  %v1342 = vpack.c.b16 %v1278, %v1278
  %v1343 = vpack.c.b16 %v1279, %v1279
  %v1344 = vpack.c.b16 %v1280, %v1280
  %v1345 = vpack.c.b16 %v1281, %v1281
  %v1346 = vpack.c.b16 %v1282, %v1282
  %v1347 = vpack.c.b16 %v1283, %v1283
  %v1348 = vpack.c.b16 %v1284, %v1284
  %v1349 = vpack.c.b16 %v1285, %v1285
  %v1350 = vpack.c.b16 %v1286, %v1286
  %v1351 = vpack.c.b16 %v1287, %v1287
  %v1352 = vpack.c.b16 %v1288, %v1288
  %v1353 = vpack.c.b16 %v1289, %v1289
  %v1354 = vpack.c.b16 %v1290, %v1290
  %v1355 = vpack.c.b16 %v1291, %v1291
  %v1356 = vpack.c.b16 %v1292, %v1292
  %v1357 = vpack.c.b16 %v1293, %v1293
  %v1358 = vpack.c.b16 %v1294, %v1294
  %v1359 = vpack.c.b16 %v1295, %v1295
  %v1360 = vpack.c.b16 %v1296, %v1296
  %v1361 = vpack.c.b16 %v1297, %v1297
  %v1362 = vpack.c.b16 %v1298, %v1298
  %v1363 = vpack.c.b16 %v1299, %v1299
  %v1364 = vpack.c.b16 %v1300, %v1300
  %v1365 = vpack.c.b16 %v1301, %v1301
  %v1366 = vpack.c.b16 %v1302, %v1302
  %v1367 = vpack.c.b16 %v1303, %v1303
  %v1368 = vpack.c.b16 %v1304, %v1304
  %v1369 = vpack.c.b16 %v1305, %v1305
  %v1370 = vpack.c.b16 %v1306, %v1306
  %v1371 = vpack.c.b16 %v1307, %v1307
  %v1372 = vpack.c.b16 %v1308, %v1308
  %v1373 = vpack.c.b16 %v1309, %v1309
  %v1374 = vpack.c.b16 %v1310, %v1310
  %v1375 = vpack.c.b16 %v1311, %v1311
  %v1376 = vpack.c.b16 %v1312, %v1312
  %v1377 = vpack.c.b16 %v1313, %v1313
  %v1378 = vpack.c.b16 %v1314, %v1314
  %v1379 = vpack.c.b16 %v1315, %v1315
  %v1380 = vpack.c.b16 %v1316, %v1316
  %v1381 = vpack.c.b16 %v1317, %v1317
  %v1382 = vpack.c.b16 %v1318, %v1318
  %v1383 = vpack.c.b16 %v1319, %v1319
  %v1384 = vpack.c.b16 %v1320, %v1320
  %v1385 = vpack.c.b16 %v1321, %v1321
  %v1386 = vpack.c.b16 %v1322, %v1322
  %v1387 = vpack.c.b16 %v1323, %v1323
  %v1388 = vpack.c.b16 %v1324, %v1324
  %v1389 = vpack.c.b16 %v1325, %v1325
  %v1390 = vpack.c.b16 %v1326, %v1326
  %v1391 = vpack.c.b16 %v1327, %v1327
  %v1392 = vpack.c.b16 %v1328, %v1328
  %v1393 = vpack.c.b16 %v1329, %v1329
  %v1394 = vpack.c.b16 %v1330, %v1330
  %v1395 = vpack.c.b16 %v1331, %v1331
  %v1396 = vpack.c.b16 %v1332, %v1332
  %v1397 = vpack.c.b16 %v1333, %v1333
  %v1398 = vpack.c.b16 %v1334, %v1334
  %v1399 = vpack.c.b16 %v1335, %v1335
  %v1400 = vpack.c.b16 %v1336, %v1336
  %v1401 = vpack.c.b16 %v1337, %v1337
  %v1402 = vpack.c.b16 %v1338, %v1338
  %v1403 = vpack.c.b16 %v1339, %v1339
  %v1404 = vpack.c.b16 %v1340, %v1340
  %1469 = vst [vmem:[%s4] sm:$0xf] %v1341
  %1470 = vst [vmem:[%s4 + $0x4] sm:$0xf] %v1342
  %1471 = vst [vmem:[%s4 + $0x8] sm:$0xf] %v1343
  %1472 = vst [vmem:[%s4 + $0xc] sm:$0xf] %v1344
  %1473 = vst [vmem:[%s4 + $0x10] sm:$0xf] %v1345
  %1474 = vst [vmem:[%s4 + $0x14] sm:$0xf] %v1346
  %1475 = vst [vmem:[%s4 + $0x18] sm:$0xf] %v1347
  %1476 = vst [vmem:[%s4 + $0x1c] sm:$0xf] %v1348
  %1477 = vst [vmem:[%s4 + $0x20] sm:$0xf] %v1349
  %1478 = vst [vmem:[%s4 + $0x24] sm:$0xf] %v1350
  %1479 = vst [vmem:[%s4 + $0x28] sm:$0xf] %v1351
  %1480 = vst [vmem:[%s4 + $0x2c] sm:$0xf] %v1352
  %1481 = vst [vmem:[%s4 + $0x30] sm:$0xf] %v1353
  %1482 = vst [vmem:[%s4 + $0x34] sm:$0xf] %v1354
  %1483 = vst [vmem:[%s4 + $0x38] sm:$0xf] %v1355
  %1484 = vst [vmem:[%s4 + $0x3c] sm:$0xf] %v1356
  %1485 = vst [vmem:[%s4 + $0x40] sm:$0xf] %v1357
  %1486 = vst [vmem:[%s4 + $0x44] sm:$0xf] %v1358
  %1487 = vst [vmem:[%s4 + $0x48] sm:$0xf] %v1359
  %1488 = vst [vmem:[%s4 + $0x4c] sm:$0xf] %v1360
  %1489 = vst [vmem:[%s4 + $0x50] sm:$0xf] %v1361
  %1490 = vst [vmem:[%s4 + $0x54] sm:$0xf] %v1362
  %1491 = vst [vmem:[%s4 + $0x58] sm:$0xf] %v1363
  %1492 = vst [vmem:[%s4 + $0x5c] sm:$0xf] %v1364
  %1493 = vst [vmem:[%s4 + $0x60] sm:$0xf] %v1365
  %1494 = vst [vmem:[%s4 + $0x64] sm:$0xf] %v1366
  %1495 = vst [vmem:[%s4 + $0x68] sm:$0xf] %v1367
  %1496 = vst [vmem:[%s4 + $0x6c] sm:$0xf] %v1368
  %1497 = vst [vmem:[%s4 + $0x70] sm:$0xf] %v1369
  %1498 = vst [vmem:[%s4 + $0x74] sm:$0xf] %v1370
  %1499 = vst [vmem:[%s4 + $0x78] sm:$0xf] %v1371
  %1500 = vst [vmem:[%s4 + $0x7c] sm:$0xf] %v1372
  %1501 = vst [vmem:[%s4 + $0x80] sm:$0xf] %v1373
  %1502 = vst [vmem:[%s4 + $0x84] sm:$0xf] %v1374
  %1503 = vst [vmem:[%s4 + $0x88] sm:$0xf] %v1375
  %1504 = vst [vmem:[%s4 + $0x8c] sm:$0xf] %v1376
  %1505 = vst [vmem:[%s4 + $0x90] sm:$0xf] %v1377
  %1506 = vst [vmem:[%s4 + $0x94] sm:$0xf] %v1378
  %1507 = vst [vmem:[%s4 + $0x98] sm:$0xf] %v1379
  %1508 = vst [vmem:[%s4 + $0x9c] sm:$0xf] %v1380
  %1509 = vst [vmem:[%s4 + $0xa0] sm:$0xf] %v1381
  %1510 = vst [vmem:[%s4 + $0xa4] sm:$0xf] %v1382
  %1511 = vst [vmem:[%s4 + $0xa8] sm:$0xf] %v1383
  %1512 = vst [vmem:[%s4 + $0xac] sm:$0xf] %v1384
  %1513 = vst [vmem:[%s4 + $0xb0] sm:$0xf] %v1385
  %1514 = vst [vmem:[%s4 + $0xb4] sm:$0xf] %v1386
  %1515 = vst [vmem:[%s4 + $0xb8] sm:$0xf] %v1387
  %1516 = vst [vmem:[%s4 + $0xbc] sm:$0xf] %v1388
  %1517 = vst [vmem:[%s4 + $0xc0] sm:$0xf] %v1389
  %1518 = vst [vmem:[%s4 + $0xc4] sm:$0xf] %v1390
  %1519 = vst [vmem:[%s4 + $0xc8] sm:$0xf] %v1391
  %1520 = vst [vmem:[%s4 + $0xcc] sm:$0xf] %v1392
  %1521 = vst [vmem:[%s4 + $0xd0] sm:$0xf] %v1393
  %1522 = vst [vmem:[%s4 + $0xd4] sm:$0xf] %v1394
  %1523 = vst [vmem:[%s4 + $0xd8] sm:$0xf] %v1395
  %1524 = vst [vmem:[%s4 + $0xdc] sm:$0xf] %v1396
  %1525 = vst [vmem:[%s4 + $0xe0] sm:$0xf] %v1397
  %1526 = vst [vmem:[%s4 + $0xe4] sm:$0xf] %v1398
  %1527 = vst [vmem:[%s4 + $0xe8] sm:$0xf] %v1399
  %1528 = vst [vmem:[%s4 + $0xec] sm:$0xf] %v1400
  %1529 = vst [vmem:[%s4 + $0xf0] sm:$0xf] %v1401
  %1530 = vst [vmem:[%s4 + $0xf4] sm:$0xf] %v1402
  %1531 = vst [vmem:[%s4 + $0xf8] sm:$0xf] %v1403
  %1532 = vst [vmem:[%s4 + $0xfc] sm:$0xf] %v1404
  // Predicated region
  $region18: #{discriminator_forward.6} parent=0 // pred_check
    _
  $region19: #{discriminator_forward.6} parent=0 // pred_check_branch
    %1534 = sbr.rel (0) target = $region21
  $region20: #{discriminator_forward.6} parent=0 // pred_region
    _
  $region21: #{discriminator_forward.6} parent=0 // pred_fallthru
    _
  // Predicated region
  $region22: #{discriminator_forward.6} parent=0 // pred_check
    _
  $region23: #{discriminator_forward.6} parent=0 // pred_check_branch
    %1536 = sbr.rel (0) target = $region25
  $region24: #{discriminator_forward.6} parent=0 // pred_region
    _
  $region25: #{discriminator_forward.6} parent=0 // pred_fallthru
    _

// kernel: discriminator_forward.7
$region0: #{discriminator_forward.7}
  #allocation0 [shape = 'u32[]', space=smem, size = 0x4, offset = 0x4, fixed_abs, tag = 'smem constant byte address 0x4 - core index']
  #allocation1 [shape = 'u32[144,128]{1,0:T(1,128)}', space=vmem, size = 0x12000, scoped, tag = 'internal scratch']
  %s0 = inlined_call_operand.vmem [shape: bf16[128,128], index: 0, kind: input, shape index: {}]
  %s1 = inlined_call_operand.vmem [shape: bf16[128,128], index: 1, kind: input, shape index: {}]
  %s2 = inlined_call_operand.vmem [shape: f32[1,128], index: 2, kind: input, shape index: {}]
  %s3 = inlined_call_operand.vmem [shape: f32[1,128], index: 3, kind: input, shape index: {}]
  %s4 = inlined_call_operand.vmem [shape: bf16[128,128], index: 4, kind: output, shape index: {}]
  %s5 = sld [smem:[#allocation0]]
  $region26: #{discriminator_forward.7} parent=0
    _
  %s7 = ssub.s32 1, %s5
  %s8 = scalar_select 0, %s7, %s5
  // Predicated region
  $region2: #{discriminator_forward.7} parent=0 // pred_check
    _
  $region3: #{discriminator_forward.7} parent=0 // pred_check_branch
    %10 = sbr.rel (0) target = $region5
  $region4: #{discriminator_forward.7} parent=0 // pred_region
    _
  $region5: #{discriminator_forward.7} parent=0 // pred_fallthru
    _
  // Predicated region
  $region6: #{discriminator_forward.7} parent=0 // pred_check
    _
  $region7: #{discriminator_forward.7} parent=0 // pred_check_branch
    %12 = sbr.rel (0) target = $region9
  $region8: #{discriminator_forward.7} parent=0 // pred_region
    _
  $region9: #{discriminator_forward.7} parent=0 // pred_fallthru
    _
  // Predicated region
  $region10: #{discriminator_forward.7} parent=0 // pred_check
    _
  $region11: #{discriminator_forward.7} parent=0 // pred_check_branch
    %14 = sbr.rel (0) target = $region13
  $region12: #{discriminator_forward.7} parent=0 // pred_region
    _
  $region13: #{discriminator_forward.7} parent=0 // pred_fallthru
    _
  // Predicated region
  $region14: #{discriminator_forward.7} parent=0 // pred_check
    _
  $region15: #{discriminator_forward.7} parent=0 // pred_check_branch
    %16 = sbr.rel (0) target = $region17
  $region16: #{discriminator_forward.7} parent=0 // pred_region
    _
  $region17: #{discriminator_forward.7} parent=0 // pred_fallthru
    _
  %v18 = vld [vmem:[%s0] sm:$0xf]
  %v19 = vld [vmem:[%s0 + $0x4] sm:$0xf]
  %v20 = vld [vmem:[%s0 + $0x8] sm:$0xf]
  %v21 = vld [vmem:[%s0 + $0xc] sm:$0xf]
  %v22 = vld [vmem:[%s0 + $0x10] sm:$0xf]
  %v23 = vld [vmem:[%s0 + $0x14] sm:$0xf]
  %v24 = vld [vmem:[%s0 + $0x18] sm:$0xf]
  %v25 = vld [vmem:[%s0 + $0x1c] sm:$0xf]
  %v26 = vld [vmem:[%s0 + $0x20] sm:$0xf]
  %v27 = vld [vmem:[%s0 + $0x24] sm:$0xf]
  %v28 = vld [vmem:[%s0 + $0x28] sm:$0xf]
  %v29 = vld [vmem:[%s0 + $0x2c] sm:$0xf]
  %v30 = vld [vmem:[%s0 + $0x30] sm:$0xf]
  %v31 = vld [vmem:[%s0 + $0x34] sm:$0xf]
  %v32 = vld [vmem:[%s0 + $0x38] sm:$0xf]
  %v33 = vld [vmem:[%s0 + $0x3c] sm:$0xf]
  %v34 = vld [vmem:[%s1] sm:$0xf]
  %v35 = vld [vmem:[%s1 + $0x4] sm:$0xf]
  %v36 = vld [vmem:[%s1 + $0x8] sm:$0xf]
  %v37 = vld [vmem:[%s1 + $0xc] sm:$0xf]
  %v38 = vld [vmem:[%s1 + $0x10] sm:$0xf]
  %v39 = vld [vmem:[%s1 + $0x14] sm:$0xf]
  %v40 = vld [vmem:[%s1 + $0x18] sm:$0xf]
  %v41 = vld [vmem:[%s1 + $0x1c] sm:$0xf]
  %v42 = vld [vmem:[%s1 + $0x20] sm:$0xf]
  %v43 = vld [vmem:[%s1 + $0x24] sm:$0xf]
  %v44 = vld [vmem:[%s1 + $0x28] sm:$0xf]
  %v45 = vld [vmem:[%s1 + $0x2c] sm:$0xf]
  %v46 = vld [vmem:[%s1 + $0x30] sm:$0xf]
  %v47 = vld [vmem:[%s1 + $0x34] sm:$0xf]
  %v48 = vld [vmem:[%s1 + $0x38] sm:$0xf]
  %v49 = vld [vmem:[%s1 + $0x3c] sm:$0xf]
  %v66 = vunpack.c.l.b16 %v18
  %v67 = vunpack.c.l.b16 %v19
  %v68 = vunpack.c.l.b16 %v20
  %v69 = vunpack.c.l.b16 %v21
  %v70 = vunpack.c.l.b16 %v22
  %v71 = vunpack.c.l.b16 %v23
  %v72 = vunpack.c.l.b16 %v24
  %v73 = vunpack.c.l.b16 %v25
  %v74 = vunpack.c.l.b16 %v26
  %v75 = vunpack.c.l.b16 %v27
  %v76 = vunpack.c.l.b16 %v28
  %v77 = vunpack.c.l.b16 %v29
  %v78 = vunpack.c.l.b16 %v30
  %v79 = vunpack.c.l.b16 %v31
  %v80 = vunpack.c.l.b16 %v32
  %v81 = vunpack.c.l.b16 %v33
  %v82 = vpack.c.b16 %v67, %v66
  %v83 = vpack.c.b16 %v69, %v68
  %v84 = vpack.c.b16 %v71, %v70
  %v85 = vpack.c.b16 %v73, %v72
  %v86 = vpack.c.b16 %v75, %v74
  %v87 = vpack.c.b16 %v77, %v76
  %v88 = vpack.c.b16 %v79, %v78
  %v89 = vpack.c.b16 %v81, %v80
  %v114 = vunpack.c.l.b16 %v34
  %v115 = vunpack.c.l.b16 %v35
  %v116 = vunpack.c.l.b16 %v36
  %v117 = vunpack.c.l.b16 %v37
  %v118 = vunpack.c.l.b16 %v38
  %v119 = vunpack.c.l.b16 %v39
  %v120 = vunpack.c.l.b16 %v40
  %v121 = vunpack.c.l.b16 %v41
  %v122 = vunpack.c.l.b16 %v42
  %v123 = vunpack.c.l.b16 %v43
  %v124 = vunpack.c.l.b16 %v44
  %v125 = vunpack.c.l.b16 %v45
  %v126 = vunpack.c.l.b16 %v46
  %v127 = vunpack.c.l.b16 %v47
  %v128 = vunpack.c.l.b16 %v48
  %v129 = vunpack.c.l.b16 %v49
  %v130 = vpack.c.b16 %v115, %v114
  %v131 = vpack.c.b16 %v117, %v116
  %v132 = vpack.c.b16 %v119, %v118
  %v133 = vpack.c.b16 %v121, %v120
  %v134 = vpack.c.b16 %v123, %v122
  %v135 = vpack.c.b16 %v125, %v124
  %v136 = vpack.c.b16 %v127, %v126
  %v137 = vpack.c.b16 %v129, %v128
  %146 = vmatprep.subr.bf16.mxu0 0
  %147 = vmatpush1.bf16.msra.mxu0 %v130
  %148 = vmatprep.subr.bf16.mxu0 0
  %149 = vmatpush1.bf16.msra.mxu0 %v131
  %150 = vmatprep.subr.bf16.mxu0 0
  %151 = vmatpush1.bf16.msra.mxu0 %v132
  %152 = vmatprep.subr.bf16.mxu0 0
  %153 = vmatpush1.bf16.msra.mxu0 %v133
  %154 = vmatprep.subr.bf16.mxu0 0
  %155 = vmatpush1.bf16.msra.mxu0 %v134
  %156 = vmatprep.subr.bf16.mxu0 0
  %157 = vmatpush1.bf16.msra.mxu0 %v135
  %158 = vmatprep.subr.bf16.mxu0 0
  %159 = vmatpush1.bf16.msra.mxu0 %v136
  %160 = vmatprep.subr.bf16.mxu0 0
  %161 = vmatpush1.bf16.msra.mxu0 %v137
  %162 = vmatprep.subr.bf16.mxu0 0
  %163 = vmatpush1.bf16.msra.mxu0 0
  %164 = vmatprep.subr.bf16.mxu0 0
  %165 = vmatpush1.bf16.msra.mxu0 0
  %166 = vmatprep.subr.bf16.mxu0 0
  %167 = vmatpush1.bf16.msra.mxu0 0
  %168 = vmatprep.subr.bf16.mxu0 0
  %169 = vmatpush1.bf16.msra.mxu0 0
  %170 = vmatprep.subr.bf16.mxu0 0
  %171 = vmatpush1.bf16.msra.mxu0 0
  %172 = vmatprep.subr.bf16.mxu0 0
  %173 = vmatpush1.bf16.msra.mxu0 0
  %174 = vmatprep.subr.bf16.mxu0 0
  %175 = vmatpush1.bf16.msra.mxu0 0
  %176 = vmatprep.subr.bf16.mxu0 0
  %177 = vmatpush1.bf16.msra.mxu0 0
  %178 = vmatprep.mubr.bf16.mxu0 0
  %179 = vmatmul.mubr.bf16.gmra.mrb[0].mxu0 %v82
  %v180 = vpop.f32.mrb[0].mxu0
  %v181 = vadd.f32 0.0, %v180
  %v182 = vpop.f32.mrb[0].mxu0
  %v183 = vpop.f32.mrb[0].mxu0
  %v184 = vadd.f32 0.0, %v183
  %v185 = vpop.f32.mrb[0].mxu0
  %186 = vmatprep.mubr.bf16.mxu0 0
  %187 = vmatmul.mubr.bf16.gmra.mrb[0].mxu0 %v83
  %v188 = vpop.f32.mrb[0].mxu0
  %v189 = vadd.f32 0.0, %v188
  %v190 = vpop.f32.mrb[0].mxu0
  %v191 = vpop.f32.mrb[0].mxu0
  %v192 = vadd.f32 0.0, %v191
  %v193 = vpop.f32.mrb[0].mxu0
  %194 = vmatprep.mubr.bf16.mxu0 0
  %195 = vmatmul.mubr.bf16.gmra.mrb[0].mxu0 %v84
  %v196 = vpop.f32.mrb[0].mxu0
  %v197 = vadd.f32 0.0, %v196
  %v198 = vpop.f32.mrb[0].mxu0
  %v199 = vpop.f32.mrb[0].mxu0
  %v200 = vadd.f32 0.0, %v199
  %v201 = vpop.f32.mrb[0].mxu0
  %202 = vmatprep.mubr.bf16.mxu0 0
  %203 = vmatmul.mubr.bf16.gmra.mrb[0].mxu0 %v85
  %v204 = vpop.f32.mrb[0].mxu0
  %v205 = vadd.f32 0.0, %v204
  %v206 = vpop.f32.mrb[0].mxu0
  %v207 = vpop.f32.mrb[0].mxu0
  %v208 = vadd.f32 0.0, %v207
  %v209 = vpop.f32.mrb[0].mxu0
  %210 = vmatprep.mubr.bf16.mxu0 0
  %211 = vmatmul.mubr.bf16.gmra.mrb[0].mxu0 %v86
  %v212 = vpop.f32.mrb[0].mxu0
  %v213 = vadd.f32 0.0, %v212
  %v214 = vpop.f32.mrb[0].mxu0
  %v215 = vpop.f32.mrb[0].mxu0
  %v216 = vadd.f32 0.0, %v215
  %v217 = vpop.f32.mrb[0].mxu0
  %218 = vmatprep.mubr.bf16.mxu0 0
  %219 = vmatmul.mubr.bf16.gmra.mrb[0].mxu0 %v87
  %v220 = vpop.f32.mrb[0].mxu0
  %v221 = vadd.f32 0.0, %v220
  %v222 = vpop.f32.mrb[0].mxu0
  %v223 = vpop.f32.mrb[0].mxu0
  %v224 = vadd.f32 0.0, %v223
  %v225 = vpop.f32.mrb[0].mxu0
  %226 = vmatprep.mubr.bf16.mxu0 0
  %227 = vmatmul.mubr.bf16.gmra.mrb[0].mxu0 %v88
  %v228 = vpop.f32.mrb[0].mxu0
  %v229 = vadd.f32 0.0, %v228
  %v230 = vpop.f32.mrb[0].mxu0
  %v231 = vpop.f32.mrb[0].mxu0
  %v232 = vadd.f32 0.0, %v231
  %v233 = vpop.f32.mrb[0].mxu0
  %234 = vmatprep.mubr.bf16.mxu0 0
  %235 = vmatmul.mubr.bf16.gmra.mrb[0].mxu0 %v89
  %v236 = vpop.f32.mrb[0].mxu0
  %v237 = vadd.f32 0.0, %v236
  %v238 = vpop.f32.mrb[0].mxu0
  %v239 = vpop.f32.mrb[0].mxu0
  %v240 = vadd.f32 0.0, %v239
  %v241 = vpop.f32.mrb[0].mxu0
  %242 = vdwg.mxu0
  %243 = vmatprep.subr.mxu0 0.0
  %244 = vmatpush1.msra.mxu0 %v181
  %245 = vmatprep.subr.mxu0 0.0
  %246 = vmatpush1.msra.mxu0 %v184
  %247 = vmatprep.subr.mxu0 0.0
  %248 = vmatpush1.msra.mxu0 %v189
  %249 = vmatprep.subr.mxu0 0.0
  %250 = vmatpush1.msra.mxu0 %v192
  %251 = vmatprep.subr.mxu0 0.0
  %252 = vmatpush1.msra.mxu0 %v197
  %253 = vmatprep.subr.mxu0 0.0
  %254 = vmatpush1.msra.mxu0 %v200
  %255 = vmatprep.subr.mxu0 0.0
  %256 = vmatpush1.msra.mxu0 %v205
  %257 = vmatprep.subr.mxu0 0.0
  %258 = vmatpush1.msra.mxu0 %v208
  %259 = vmatprep.subr.mxu0 0.0
  %260 = vmatpush1.msra.mxu0 %v213
  %261 = vmatprep.subr.mxu0 0.0
  %262 = vmatpush1.msra.mxu0 %v216
  %263 = vmatprep.subr.mxu0 0.0
  %264 = vmatpush1.msra.mxu0 %v221
  %265 = vmatprep.subr.mxu0 0.0
  %266 = vmatpush1.msra.mxu0 %v224
  %267 = vmatprep.subr.mxu0 0.0
  %268 = vmatpush1.msra.mxu0 %v229
  %269 = vmatprep.subr.mxu0 0.0
  %270 = vmatpush1.msra.mxu0 %v232
  %271 = vmatprep.subr.mxu0 0.0
  %272 = vmatpush1.msra.mxu0 %v237
  %273 = vmatprep.subr.mxu0 0.0
  %274 = vmatpush1.msra.mxu0 %v240
  %275 = vmatprep.subr.mxu0 0.0
  %276 = vmatpush1.msra.mxu0 0.0
  %277 = vmatprep.subr.mxu0 0.0
  %278 = vmatpush1.msra.mxu0 0.0
  %279 = vmatprep.subr.mxu0 0.0
  %280 = vmatpush1.msra.mxu0 0.0
  %281 = vmatprep.subr.mxu0 0.0
  %282 = vmatpush1.msra.mxu0 0.0
  %283 = vmatprep.subr.mxu0 0.0
  %284 = vmatpush1.msra.mxu0 0.0
  %285 = vmatprep.subr.mxu0 0.0
  %286 = vmatpush1.msra.mxu0 0.0
  %287 = vmatprep.subr.mxu0 0.0
  %288 = vmatpush1.msra.mxu0 0.0
  %289 = vmatprep.subr.mxu0 0.0
  %290 = vmatpush1.msra.mxu0 0.0
  %291 = vmatprep.subr.mxu0 0.0
  %292 = vmatpush1.msra.mxu0 0.0
  %293 = vmatprep.subr.mxu0 0.0
  %294 = vmatpush1.msra.mxu0 0.0
  %295 = vmatprep.subr.mxu0 0.0
  %296 = vmatpush1.msra.mxu0 0.0
  %297 = vmatprep.subr.mxu0 0.0
  %298 = vmatpush1.msra.mxu0 0.0
  %299 = vmatprep.subr.mxu0 0.0
  %300 = vmatpush1.msra.mxu0 0.0
  %301 = vmatprep.subr.mxu0 0.0
  %302 = vmatpush1.msra.mxu0 0.0
  %303 = vmatprep.subr.mxu0 0.0
  %304 = vmatpush1.msra.mxu0 0.0
  %305 = vmatprep.subr.mxu0 0.0
  %306 = vmatpush1.msra.mxu0 0.0
  %307 = vmatprep.mubr.f32.mxu0 0.0
  %308 = vmatmul.mubr.f32.gmra.mrb[0].mxu0 1.0
  %v309 = vpop.f32.mrb[0].mxu0
  %v310 = vadd.f32 0.0, %v309
  %v311 = vpop.f32.mrb[0].mxu0
  %312 = vdwg.mxu0
  %v313 = vmul.f32 %v181, %v181
  %v314 = vmul.f32 %v184, %v184
  %v315 = vmul.f32 %v189, %v189
  %v316 = vmul.f32 %v192, %v192
  %v317 = vmul.f32 %v197, %v197
  %v318 = vmul.f32 %v200, %v200
  %v319 = vmul.f32 %v205, %v205
  %v320 = vmul.f32 %v208, %v208
  %v321 = vmul.f32 %v213, %v213
  %v322 = vmul.f32 %v216, %v216
  %v323 = vmul.f32 %v221, %v221
  %v324 = vmul.f32 %v224, %v224
  %v325 = vmul.f32 %v229, %v229
  %v326 = vmul.f32 %v232, %v232
  %v327 = vmul.f32 %v237, %v237
  %v328 = vmul.f32 %v240, %v240
  %v329 = vadd.f32 %v313, %v314
  %v330 = vadd.f32 %v329, %v315
  %v331 = vadd.f32 %v330, %v316
  %v332 = vadd.f32 %v331, %v317
  %v333 = vadd.f32 %v332, %v318
  %v334 = vadd.f32 %v333, %v319
  %v335 = vadd.f32 %v334, %v320
  %v336 = vadd.f32 %v335, %v321
  %v337 = vadd.f32 %v336, %v322
  %v338 = vadd.f32 %v337, %v323
  %v339 = vadd.f32 %v338, %v324
  %v340 = vadd.f32 %v339, %v325
  %v341 = vadd.f32 %v340, %v326
  %v342 = vadd.f32 %v341, %v327
  %v343 = vadd.f32 %v342, %v328
  %v344 = vrot.slane %v343, 4
  %v345 = vadd.f32 %v343, %v344
  %v346 = vrot.slane %v345, 2
  %v347 = vadd.f32 %v345, %v346
  %v348 = vrot.slane %v347, 1
  %v349 = vadd.f32 %v347, %v348
  %v350 = vmul.f32 %v310, 0.0078125
  %v351 = vmul.f32 %v349, 0.0078125
  %v352 = vmul.f32 %v350, %v350
  %v353 = vsub.f32 %v351, %v352
  %v354 = vmax.f32 %v353, 0.0
  %v355 = vld [vmem:[%s2] sm:$0x1]
  %v356 = vadd.f32 %v354, 1e-05
  %v357 = vrsqrt.pop %v356
  %v358 = vmul.f32 %v355, %v357
  %v359 = vld [vmem:[%s3] sm:$0x1]
  %v360 = vmul.f32 %v350, %v358
  %v361 = vsub.f32 %v359, %v360
  %v363 = vlaneseq
  %v364 = vshrl.u32 %v363, 7
  %v365 = vsub.s32 0, %v364
  %v366 = vrot.slane %v358, %v365
  %v368 = vmul.f32 %v181, %v366
  %v369 = vmul.f32 %v184, %v366
  %v370 = vmul.f32 %v189, %v366
  %v371 = vmul.f32 %v192, %v366
  %v372 = vmul.f32 %v197, %v366
  %v373 = vmul.f32 %v200, %v366
  %v374 = vmul.f32 %v205, %v366
  %v375 = vmul.f32 %v208, %v366
  %v376 = vmul.f32 %v213, %v366
  %v377 = vmul.f32 %v216, %v366
  %v378 = vmul.f32 %v221, %v366
  %v379 = vmul.f32 %v224, %v366
  %v380 = vmul.f32 %v229, %v366
  %v381 = vmul.f32 %v232, %v366
  %v382 = vmul.f32 %v237, %v366
  %v383 = vmul.f32 %v240, %v366
  %v385 = vlaneseq
  %v386 = vshrl.u32 %v385, 7
  %v387 = vsub.s32 0, %v386
  %v388 = vrot.slane %v361, %v387
  %v390 = vadd.f32 %v368, %v388
  %v391 = vadd.f32 %v369, %v388
  %v392 = vadd.f32 %v370, %v388
  %v393 = vadd.f32 %v371, %v388
  %v394 = vadd.f32 %v372, %v388
  %v395 = vadd.f32 %v373, %v388
  %v396 = vadd.f32 %v374, %v388
  %v397 = vadd.f32 %v375, %v388
  %v398 = vadd.f32 %v376, %v388
  %v399 = vadd.f32 %v377, %v388
  %v400 = vadd.f32 %v378, %v388
  %v401 = vadd.f32 %v379, %v388
  %v402 = vadd.f32 %v380, %v388
  %v403 = vadd.f32 %v381, %v388
  %v404 = vadd.f32 %v382, %v388
  %v405 = vadd.f32 %v383, %v388
  %v406 = vmul.f32 %v390, 0.2
  %v407 = vmul.f32 %v391, 0.2
  %v408 = vmul.f32 %v392, 0.2
  %v409 = vmul.f32 %v393, 0.2
  %v410 = vmul.f32 %v394, 0.2
  %v411 = vmul.f32 %v395, 0.2
  %v412 = vmul.f32 %v396, 0.2
  %v413 = vmul.f32 %v397, 0.2
  %v414 = vmul.f32 %v398, 0.2
  %v415 = vmul.f32 %v399, 0.2
  %v416 = vmul.f32 %v400, 0.2
  %v417 = vmul.f32 %v401, 0.2
  %v418 = vmul.f32 %v402, 0.2
  %v419 = vmul.f32 %v403, 0.2
  %v420 = vmul.f32 %v404, 0.2
  %v421 = vmul.f32 %v405, 0.2
  %v422 = vmax.f32 %v390, %v406
  %v423 = vmax.f32 %v391, %v407
  %v424 = vmax.f32 %v392, %v408
  %v425 = vmax.f32 %v393, %v409
  %v426 = vmax.f32 %v394, %v410
  %v427 = vmax.f32 %v395, %v411
  %v428 = vmax.f32 %v396, %v412
  %v429 = vmax.f32 %v397, %v413
  %v430 = vmax.f32 %v398, %v414
  %v431 = vmax.f32 %v399, %v415
  %v432 = vmax.f32 %v400, %v416
  %v433 = vmax.f32 %v401, %v417
  %v434 = vmax.f32 %v402, %v418
  %v435 = vmax.f32 %v403, %v419
  %v436 = vmax.f32 %v404, %v420
  %v437 = vmax.f32 %v405, %v421
  %v438 = vpack.c.bf16 %v423, %v422
  %v439 = vpack.c.bf16 %v425, %v424
  %v440 = vpack.c.bf16 %v427, %v426
  %v441 = vpack.c.bf16 %v429, %v428
  %v442 = vpack.c.bf16 %v431, %v430
  %v443 = vpack.c.bf16 %v433, %v432
  %v444 = vpack.c.bf16 %v435, %v434
  %v445 = vpack.c.bf16 %v437, %v436
  %v454 = vunpack.c.l.b16 %v438
  %v455 = vunpack.c.h.b16 %v438
  %v456 = vunpack.c.l.b16 %v439
  %v457 = vunpack.c.h.b16 %v439
  %v458 = vunpack.c.l.b16 %v440
  %v459 = vunpack.c.h.b16 %v440
  %v460 = vunpack.c.l.b16 %v441
  %v461 = vunpack.c.h.b16 %v441
  %v462 = vunpack.c.l.b16 %v442
  %v463 = vunpack.c.h.b16 %v442
  %v464 = vunpack.c.l.b16 %v443
  %v465 = vunpack.c.h.b16 %v443
  %v466 = vunpack.c.l.b16 %v444
  %v467 = vunpack.c.h.b16 %v444
  %v468 = vunpack.c.l.b16 %v445
  %v469 = vunpack.c.h.b16 %v445
  %v470 = vpack.c.b16 %v454, %v454
  %v471 = vpack.c.b16 %v455, %v455
  %v472 = vpack.c.b16 %v456, %v456
  %v473 = vpack.c.b16 %v457, %v457
  %v474 = vpack.c.b16 %v458, %v458
  %v475 = vpack.c.b16 %v459, %v459
  %v476 = vpack.c.b16 %v460, %v460
  %v477 = vpack.c.b16 %v461, %v461
  %v478 = vpack.c.b16 %v462, %v462
  %v479 = vpack.c.b16 %v463, %v463
  %v480 = vpack.c.b16 %v464, %v464
  %v481 = vpack.c.b16 %v465, %v465
  %v482 = vpack.c.b16 %v466, %v466
  %v483 = vpack.c.b16 %v467, %v467
  %v484 = vpack.c.b16 %v468, %v468
  %v485 = vpack.c.b16 %v469, %v469
  %502 = vst [vmem:[%s4] sm:$0xf] %v470
  %503 = vst [vmem:[%s4 + $0x4] sm:$0xf] %v471
  %504 = vst [vmem:[%s4 + $0x8] sm:$0xf] %v472
  %505 = vst [vmem:[%s4 + $0xc] sm:$0xf] %v473
  %506 = vst [vmem:[%s4 + $0x10] sm:$0xf] %v474
  %507 = vst [vmem:[%s4 + $0x14] sm:$0xf] %v475
  %508 = vst [vmem:[%s4 + $0x18] sm:$0xf] %v476
  %509 = vst [vmem:[%s4 + $0x1c] sm:$0xf] %v477
  %510 = vst [vmem:[%s4 + $0x20] sm:$0xf] %v478
  %511 = vst [vmem:[%s4 + $0x24] sm:$0xf] %v479
  %512 = vst [vmem:[%s4 + $0x28] sm:$0xf] %v480
  %513 = vst [vmem:[%s4 + $0x2c] sm:$0xf] %v481
  %514 = vst [vmem:[%s4 + $0x30] sm:$0xf] %v482
  %515 = vst [vmem:[%s4 + $0x34] sm:$0xf] %v483
  %516 = vst [vmem:[%s4 + $0x38] sm:$0xf] %v484
  %517 = vst [vmem:[%s4 + $0x3c] sm:$0xf] %v485
  // Predicated region
  $region18: #{discriminator_forward.7} parent=0 // pred_check
    _
  $region19: #{discriminator_forward.7} parent=0 // pred_check_branch
    %519 = sbr.rel (0) target = $region21
  $region20: #{discriminator_forward.7} parent=0 // pred_region
    _
  $region21: #{discriminator_forward.7} parent=0 // pred_fallthru
    _
  // Predicated region
  $region22: #{discriminator_forward.7} parent=0 // pred_check
    _
  $region23: #{discriminator_forward.7} parent=0 // pred_check_branch
    %521 = sbr.rel (0) target = $region25
  $region24: #{discriminator_forward.7} parent=0 // pred_region
    _
  $region25: #{discriminator_forward.7} parent=0 // pred_fallthru
    _

// kernel: discriminator_forward.8
$region0: #{discriminator_forward.8}
  #allocation0 [shape = 'u32[]', space=smem, size = 0x4, offset = 0x4, fixed_abs, tag = 'smem constant byte address 0x4 - core index']
  #allocation1 [shape = 'u32[144,128]{1,0:T(1,128)}', space=vmem, size = 0x12000, scoped, tag = 'internal scratch']
  %s0 = inlined_call_operand.vmem [shape: bf16[32,256], index: 0, kind: input, shape index: {}]
  %s1 = inlined_call_operand.vmem [shape: bf16[256,128], index: 1, kind: input, shape index: {}]
  %s2 = inlined_call_operand.vmem [shape: f32[1,128], index: 2, kind: input, shape index: {}]
  %s3 = inlined_call_operand.vmem [shape: f32[1,128], index: 3, kind: input, shape index: {}]
  %s4 = inlined_call_operand.vmem [shape: bf16[32,128], index: 4, kind: output, shape index: {}]
  %s5 = sld [smem:[#allocation0]]
  $region26: #{discriminator_forward.8} parent=0
    _
  %s7 = ssub.s32 1, %s5
  %s8 = scalar_select 0, %s7, %s5
  // Predicated region
  $region2: #{discriminator_forward.8} parent=0 // pred_check
    _
  $region3: #{discriminator_forward.8} parent=0 // pred_check_branch
    %10 = sbr.rel (0) target = $region5
  $region4: #{discriminator_forward.8} parent=0 // pred_region
    _
  $region5: #{discriminator_forward.8} parent=0 // pred_fallthru
    _
  // Predicated region
  $region6: #{discriminator_forward.8} parent=0 // pred_check
    _
  $region7: #{discriminator_forward.8} parent=0 // pred_check_branch
    %12 = sbr.rel (0) target = $region9
  $region8: #{discriminator_forward.8} parent=0 // pred_region
    _
  $region9: #{discriminator_forward.8} parent=0 // pred_fallthru
    _
  // Predicated region
  $region10: #{discriminator_forward.8} parent=0 // pred_check
    _
  $region11: #{discriminator_forward.8} parent=0 // pred_check_branch
    %14 = sbr.rel (0) target = $region13
  $region12: #{discriminator_forward.8} parent=0 // pred_region
    _
  $region13: #{discriminator_forward.8} parent=0 // pred_fallthru
    _
  // Predicated region
  $region14: #{discriminator_forward.8} parent=0 // pred_check
    _
  $region15: #{discriminator_forward.8} parent=0 // pred_check_branch
    %16 = sbr.rel (0) target = $region17
  $region16: #{discriminator_forward.8} parent=0 // pred_region
    _
  $region17: #{discriminator_forward.8} parent=0 // pred_fallthru
    _
  %v18 = vld [vmem:[%s0] sm:$0xff]
  %v19 = vld [vmem:[%s0 + $0x8] sm:$0xff]
  %v20 = vld [vmem:[%s0 + $0x10] sm:$0xff]
  %v21 = vld [vmem:[%s0 + $0x18] sm:$0xff]
  %v22 = vld [vmem:[%s1] sm:$0xf]
  %v23 = vld [vmem:[%s1 + $0x4] sm:$0xf]
  %v24 = vld [vmem:[%s1 + $0x8] sm:$0xf]
  %v25 = vld [vmem:[%s1 + $0xc] sm:$0xf]
  %v26 = vld [vmem:[%s1 + $0x10] sm:$0xf]
  %v27 = vld [vmem:[%s1 + $0x14] sm:$0xf]
  %v28 = vld [vmem:[%s1 + $0x18] sm:$0xf]
  %v29 = vld [vmem:[%s1 + $0x1c] sm:$0xf]
  %v30 = vld [vmem:[%s1 + $0x20] sm:$0xf]
  %v31 = vld [vmem:[%s1 + $0x24] sm:$0xf]
  %v32 = vld [vmem:[%s1 + $0x28] sm:$0xf]
  %v33 = vld [vmem:[%s1 + $0x2c] sm:$0xf]
  %v34 = vld [vmem:[%s1 + $0x30] sm:$0xf]
  %v35 = vld [vmem:[%s1 + $0x34] sm:$0xf]
  %v36 = vld [vmem:[%s1 + $0x38] sm:$0xf]
  %v37 = vld [vmem:[%s1 + $0x3c] sm:$0xf]
  %v38 = vld [vmem:[%s1 + $0x40] sm:$0xf]
  %v39 = vld [vmem:[%s1 + $0x44] sm:$0xf]
  %v40 = vld [vmem:[%s1 + $0x48] sm:$0xf]
  %v41 = vld [vmem:[%s1 + $0x4c] sm:$0xf]
  %v42 = vld [vmem:[%s1 + $0x50] sm:$0xf]
  %v43 = vld [vmem:[%s1 + $0x54] sm:$0xf]
  %v44 = vld [vmem:[%s1 + $0x58] sm:$0xf]
  %v45 = vld [vmem:[%s1 + $0x5c] sm:$0xf]
  %v46 = vld [vmem:[%s1 + $0x60] sm:$0xf]
  %v47 = vld [vmem:[%s1 + $0x64] sm:$0xf]
  %v48 = vld [vmem:[%s1 + $0x68] sm:$0xf]
  %v49 = vld [vmem:[%s1 + $0x6c] sm:$0xf]
  %v50 = vld [vmem:[%s1 + $0x70] sm:$0xf]
  %v51 = vld [vmem:[%s1 + $0x74] sm:$0xf]
  %v52 = vld [vmem:[%s1 + $0x78] sm:$0xf]
  %v53 = vld [vmem:[%s1 + $0x7c] sm:$0xf]
  %v58 = vunpack.c.l.b16 %v18
  %v59 = vunpack.c.h.b16 %v18
  %v60 = vunpack.c.l.b16 %v19
  %v61 = vunpack.c.h.b16 %v19
  %v62 = vunpack.c.l.b16 %v20
  %v63 = vunpack.c.h.b16 %v20
  %v64 = vunpack.c.l.b16 %v21
  %v65 = vunpack.c.h.b16 %v21
  %v66 = vpack.c.b16 %v60, %v58
  %v67 = vpack.c.b16 %v61, %v59
  %v68 = vpack.c.b16 %v64, %v62
  %v69 = vpack.c.b16 %v65, %v63
  %v106 = vunpack.c.l.b16 %v22
  %v107 = vunpack.c.l.b16 %v23
  %v108 = vunpack.c.l.b16 %v24
  %v109 = vunpack.c.l.b16 %v25
  %v110 = vunpack.c.l.b16 %v26
  %v111 = vunpack.c.l.b16 %v27
  %v112 = vunpack.c.l.b16 %v28
  %v113 = vunpack.c.l.b16 %v29
  %v114 = vunpack.c.l.b16 %v30
  %v115 = vunpack.c.l.b16 %v31
  %v116 = vunpack.c.l.b16 %v32
  %v117 = vunpack.c.l.b16 %v33
  %v118 = vunpack.c.l.b16 %v34
  %v119 = vunpack.c.l.b16 %v35
  %v120 = vunpack.c.l.b16 %v36
  %v121 = vunpack.c.l.b16 %v37
  %v122 = vunpack.c.l.b16 %v38
  %v123 = vunpack.c.l.b16 %v39
  %v124 = vunpack.c.l.b16 %v40
  %v125 = vunpack.c.l.b16 %v41
  %v126 = vunpack.c.l.b16 %v42
  %v127 = vunpack.c.l.b16 %v43
  %v128 = vunpack.c.l.b16 %v44
  %v129 = vunpack.c.l.b16 %v45
  %v130 = vunpack.c.l.b16 %v46
  %v131 = vunpack.c.l.b16 %v47
  %v132 = vunpack.c.l.b16 %v48
  %v133 = vunpack.c.l.b16 %v49
  %v134 = vunpack.c.l.b16 %v50
  %v135 = vunpack.c.l.b16 %v51
  %v136 = vunpack.c.l.b16 %v52
  %v137 = vunpack.c.l.b16 %v53
  %v138 = vpack.c.b16 %v107, %v106
  %v139 = vpack.c.b16 %v109, %v108
  %v140 = vpack.c.b16 %v111, %v110
  %v141 = vpack.c.b16 %v113, %v112
  %v142 = vpack.c.b16 %v115, %v114
  %v143 = vpack.c.b16 %v117, %v116
  %v144 = vpack.c.b16 %v119, %v118
  %v145 = vpack.c.b16 %v121, %v120
  %v146 = vpack.c.b16 %v123, %v122
  %v147 = vpack.c.b16 %v125, %v124
  %v148 = vpack.c.b16 %v127, %v126
  %v149 = vpack.c.b16 %v129, %v128
  %v150 = vpack.c.b16 %v131, %v130
  %v151 = vpack.c.b16 %v133, %v132
  %v152 = vpack.c.b16 %v135, %v134
  %v153 = vpack.c.b16 %v137, %v136
  %170 = vmatprep.subr.bf16.mxu0 0
  %171 = vmatpush1.bf16.msra.mxu0 %v138
  %172 = vmatprep.subr.bf16.mxu0 0
  %173 = vmatpush1.bf16.msra.mxu0 %v139
  %174 = vmatprep.subr.bf16.mxu0 0
  %175 = vmatpush1.bf16.msra.mxu0 %v140
  %176 = vmatprep.subr.bf16.mxu0 0
  %177 = vmatpush1.bf16.msra.mxu0 %v141
  %178 = vmatprep.subr.bf16.mxu0 0
  %179 = vmatpush1.bf16.msra.mxu0 %v142
  %180 = vmatprep.subr.bf16.mxu0 0
  %181 = vmatpush1.bf16.msra.mxu0 %v143
  %182 = vmatprep.subr.bf16.mxu0 0
  %183 = vmatpush1.bf16.msra.mxu0 %v144
  %184 = vmatprep.subr.bf16.mxu0 0
  %185 = vmatpush1.bf16.msra.mxu0 %v145
  %186 = vmatprep.subr.bf16.mxu0 0
  %187 = vmatpush1.bf16.msra.mxu0 %v146
  %188 = vmatprep.subr.bf16.mxu0 0
  %189 = vmatpush1.bf16.msra.mxu0 %v147
  %190 = vmatprep.subr.bf16.mxu0 0
  %191 = vmatpush1.bf16.msra.mxu0 %v148
  %192 = vmatprep.subr.bf16.mxu0 0
  %193 = vmatpush1.bf16.msra.mxu0 %v149
  %194 = vmatprep.subr.bf16.mxu0 0
  %195 = vmatpush1.bf16.msra.mxu0 %v150
  %196 = vmatprep.subr.bf16.mxu0 0
  %197 = vmatpush1.bf16.msra.mxu0 %v151
  %198 = vmatprep.subr.bf16.mxu0 0
  %199 = vmatpush1.bf16.msra.mxu0 %v152
  %200 = vmatprep.subr.bf16.mxu0 0
  %201 = vmatpush1.bf16.msra.mxu0 %v153
  %202 = vmatprep.mubr.bf16.mxu0 %v67
  %203 = vmatmul.mubr.bf16.gmra.mrb[0].mxu0 %v66
  %v204 = vpop.f32.mrb[0].mxu0
  %v205 = vadd.f32 0.0, %v204
  %v206 = vpop.f32.mrb[0].mxu0
  %v207 = vpop.f32.mrb[0].mxu0
  %v208 = vadd.f32 0.0, %v207
  %v209 = vpop.f32.mrb[0].mxu0
  %210 = vmatprep.mubr.bf16.mxu0 %v69
  %211 = vmatmul.mubr.bf16.gmra.mrb[0].mxu0 %v68
  %v212 = vpop.f32.mrb[0].mxu0
  %v213 = vadd.f32 0.0, %v212
  %v214 = vpop.f32.mrb[0].mxu0
  %v215 = vpop.f32.mrb[0].mxu0
  %v216 = vadd.f32 0.0, %v215
  %v217 = vpop.f32.mrb[0].mxu0
  %218 = vdwg.mxu0
  %vm219 = vcmask 261120
  %v221 = vsel %vm219, 1.0, 0
  %223 = vmatprep.subr.mxu0 0.0
  %224 = vmatpush1.msra.mxu0 %v205
  %225 = vmatprep.subr.mxu0 0.0
  %226 = vmatpush1.msra.mxu0 %v208
  %227 = vmatprep.subr.mxu0 0.0
  %228 = vmatpush1.msra.mxu0 %v213
  %229 = vmatprep.subr.mxu0 0.0
  %230 = vmatpush1.msra.mxu0 %v216
  %231 = vmatprep.subr.mxu0 0.0
  %232 = vmatpush1.msra.mxu0 0.0
  %233 = vmatprep.subr.mxu0 0.0
  %234 = vmatpush1.msra.mxu0 0.0
  %235 = vmatprep.subr.mxu0 0.0
  %236 = vmatpush1.msra.mxu0 0.0
  %237 = vmatprep.subr.mxu0 0.0
  %238 = vmatpush1.msra.mxu0 0.0
  %239 = vmatprep.subr.mxu0 0.0
  %240 = vmatpush1.msra.mxu0 0.0
  %241 = vmatprep.subr.mxu0 0.0
  %242 = vmatpush1.msra.mxu0 0.0
  %243 = vmatprep.subr.mxu0 0.0
  %244 = vmatpush1.msra.mxu0 0.0
  %245 = vmatprep.subr.mxu0 0.0
  %246 = vmatpush1.msra.mxu0 0.0
  %247 = vmatprep.subr.mxu0 0.0
  %248 = vmatpush1.msra.mxu0 0.0
  %249 = vmatprep.subr.mxu0 0.0
  %250 = vmatpush1.msra.mxu0 0.0
  %251 = vmatprep.subr.mxu0 0.0
  %252 = vmatpush1.msra.mxu0 0.0
  %253 = vmatprep.subr.mxu0 0.0
  %254 = vmatpush1.msra.mxu0 0.0
  %255 = vmatprep.subr.mxu0 0.0
  %256 = vmatpush1.msra.mxu0 0.0
  %257 = vmatprep.subr.mxu0 0.0
  %258 = vmatpush1.msra.mxu0 0.0
  %259 = vmatprep.subr.mxu0 0.0
  %260 = vmatpush1.msra.mxu0 0.0
  %261 = vmatprep.subr.mxu0 0.0
  %262 = vmatpush1.msra.mxu0 0.0
  %263 = vmatprep.subr.mxu0 0.0
  %264 = vmatpush1.msra.mxu0 0.0
  %265 = vmatprep.subr.mxu0 0.0
  %266 = vmatpush1.msra.mxu0 0.0
  %267 = vmatprep.subr.mxu0 0.0
  %268 = vmatpush1.msra.mxu0 0.0
  %269 = vmatprep.subr.mxu0 0.0
  %270 = vmatpush1.msra.mxu0 0.0
  %271 = vmatprep.subr.mxu0 0.0
  %272 = vmatpush1.msra.mxu0 0.0
  %273 = vmatprep.subr.mxu0 0.0
  %274 = vmatpush1.msra.mxu0 0.0
  %275 = vmatprep.subr.mxu0 0.0
  %276 = vmatpush1.msra.mxu0 0.0
  %277 = vmatprep.subr.mxu0 0.0
  %278 = vmatpush1.msra.mxu0 0.0
  %279 = vmatprep.subr.mxu0 0.0
  %280 = vmatpush1.msra.mxu0 0.0
  %281 = vmatprep.subr.mxu0 0.0
  %282 = vmatpush1.msra.mxu0 0.0
  %283 = vmatprep.subr.mxu0 0.0
  %284 = vmatpush1.msra.mxu0 0.0
  %285 = vmatprep.subr.mxu0 0.0
  %286 = vmatpush1.msra.mxu0 0.0
  %287 = vmatprep.mubr.f32.mxu0 0.0
  %288 = vmatmul.mubr.f32.gmra.mrb[0].mxu0 %v221
  %v289 = vpop.f32.mrb[0].mxu0
  %v290 = vadd.f32 0.0, %v289
  %v291 = vpop.f32.mrb[0].mxu0
  %292 = vdwg.mxu0
  %v293 = vmul.f32 %v205, %v205
  %v294 = vmul.f32 %v208, %v208
  %v295 = vmul.f32 %v213, %v213
  %v296 = vmul.f32 %v216, %v216
  %v297 = vadd.f32 %v293, %v294
  %v298 = vadd.f32 %v297, %v295
  %v299 = vadd.f32 %v298, %v296
  %v300 = vrot.slane %v299, 4
  %v301 = vadd.f32 %v299, %v300
  %v302 = vrot.slane %v301, 2
  %v303 = vadd.f32 %v301, %v302
  %v304 = vrot.slane %v303, 1
  %v305 = vadd.f32 %v303, %v304
  %v306 = vmul.f32 %v290, 0.03125
  %v307 = vmul.f32 %v305, 0.03125
  %v308 = vmul.f32 %v306, %v306
  %v309 = vsub.f32 %v307, %v308
  %v310 = vmax.f32 %v309, 0.0
  %v311 = vld [vmem:[%s2] sm:$0x1]
  %v312 = vadd.f32 %v310, 1e-05
  %v313 = vrsqrt.pop %v312
  %v314 = vmul.f32 %v311, %v313
  %v315 = vld [vmem:[%s3] sm:$0x1]
  %v316 = vmul.f32 %v306, %v314
  %v317 = vsub.f32 %v315, %v316
  %v319 = vlaneseq
  %v320 = vshrl.u32 %v319, 7
  %v321 = vsub.s32 0, %v320
  %v322 = vrot.slane %v314, %v321
  %v324 = vmul.f32 %v205, %v322
  %v325 = vmul.f32 %v208, %v322
  %v326 = vmul.f32 %v213, %v322
  %v327 = vmul.f32 %v216, %v322
  %v329 = vlaneseq
  %v330 = vshrl.u32 %v329, 7
  %v331 = vsub.s32 0, %v330
  %v332 = vrot.slane %v317, %v331
  %v334 = vadd.f32 %v324, %v332
  %v335 = vadd.f32 %v325, %v332
  %v336 = vadd.f32 %v326, %v332
  %v337 = vadd.f32 %v327, %v332
  %v338 = vmul.f32 %v334, 0.2
  %v339 = vmul.f32 %v335, 0.2
  %v340 = vmul.f32 %v336, 0.2
  %v341 = vmul.f32 %v337, 0.2
  %v342 = vmax.f32 %v334, %v338
  %v343 = vmax.f32 %v335, %v339
  %v344 = vmax.f32 %v336, %v340
  %v345 = vmax.f32 %v337, %v341
  %v346 = vpack.c.bf16 %v343, %v342
  %v347 = vpack.c.bf16 %v345, %v344
  %v350 = vunpack.c.l.b16 %v346
  %v351 = vunpack.c.h.b16 %v346
  %v352 = vunpack.c.l.b16 %v347
  %v353 = vunpack.c.h.b16 %v347
  %v354 = vpack.c.b16 %v350, %v350
  %v355 = vpack.c.b16 %v351, %v351
  %v356 = vpack.c.b16 %v352, %v352
  %v357 = vpack.c.b16 %v353, %v353
  %362 = vst [vmem:[%s4] sm:$0xf] %v354
  %363 = vst [vmem:[%s4 + $0x4] sm:$0xf] %v355
  %364 = vst [vmem:[%s4 + $0x8] sm:$0xf] %v356
  %365 = vst [vmem:[%s4 + $0xc] sm:$0xf] %v357
  // Predicated region
  $region18: #{discriminator_forward.8} parent=0 // pred_check
    _
  $region19: #{discriminator_forward.8} parent=0 // pred_check_branch
    %367 = sbr.rel (0) target = $region21
  $region20: #{discriminator_forward.8} parent=0 // pred_region
    _
  $region21: #{discriminator_forward.8} parent=0 // pred_fallthru
    _
  // Predicated region
  $region22: #{discriminator_forward.8} parent=0 // pred_check
    _
  $region23: #{discriminator_forward.8} parent=0 // pred_check_branch
    %369 = sbr.rel (0) target = $region25
  $region24: #{discriminator_forward.8} parent=0 // pred_region
    _
  $region25: #{discriminator_forward.8} parent=0 // pred_fallthru
    _

// kernel: discriminator_forward.9
$region0: #{discriminator_forward.9}
  #allocation0 [shape = 'u32[]', space=smem, size = 0x4, offset = 0x4, fixed_abs, tag = 'smem constant byte address 0x4 - core index']
  #allocation1 [shape = 'u32[144,128]{1,0:T(1,128)}', space=vmem, size = 0x12000, scoped, tag = 'internal scratch']
  %s0 = inlined_call_operand.vmem [shape: bf16[16,512], index: 0, kind: input, shape index: {}]
  %s1 = inlined_call_operand.vmem [shape: bf16[512,128], index: 1, kind: input, shape index: {}]
  %s2 = inlined_call_operand.vmem [shape: f32[16,128], index: 2, kind: output, shape index: {}]
  %s3 = sld [smem:[#allocation0]]
  $region18: #{discriminator_forward.9} parent=0
    _
  %s5 = ssub.s32 1, %s3
  %s6 = scalar_select 0, %s5, %s3
  // Predicated region
  $region2: #{discriminator_forward.9} parent=0 // pred_check
    _
  $region3: #{discriminator_forward.9} parent=0 // pred_check_branch
    %8 = sbr.rel (0) target = $region5
  $region4: #{discriminator_forward.9} parent=0 // pred_region
    _
  $region5: #{discriminator_forward.9} parent=0 // pred_fallthru
    _
  // Predicated region
  $region6: #{discriminator_forward.9} parent=0 // pred_check
    _
  $region7: #{discriminator_forward.9} parent=0 // pred_check_branch
    %10 = sbr.rel (0) target = $region9
  $region8: #{discriminator_forward.9} parent=0 // pred_region
    _
  $region9: #{discriminator_forward.9} parent=0 // pred_fallthru
    _
  %v12 = vld [vmem:[%s0] sm:$0xff]
  %v13 = vld [vmem:[%s0 + $0x8] sm:$0xff]
  %v14 = vld [vmem:[%s0 + $0x10] sm:$0xff]
  %v15 = vld [vmem:[%s0 + $0x18] sm:$0xff]
  %v16 = vld [vmem:[%s1] sm:$0xf]
  %v17 = vld [vmem:[%s1 + $0x4] sm:$0xf]
  %v18 = vld [vmem:[%s1 + $0x8] sm:$0xf]
  %v19 = vld [vmem:[%s1 + $0xc] sm:$0xf]
  %v20 = vld [vmem:[%s1 + $0x10] sm:$0xf]
  %v21 = vld [vmem:[%s1 + $0x14] sm:$0xf]
  %v22 = vld [vmem:[%s1 + $0x18] sm:$0xf]
  %v23 = vld [vmem:[%s1 + $0x1c] sm:$0xf]
  %v24 = vld [vmem:[%s1 + $0x20] sm:$0xf]
  %v25 = vld [vmem:[%s1 + $0x24] sm:$0xf]
  %v26 = vld [vmem:[%s1 + $0x28] sm:$0xf]
  %v27 = vld [vmem:[%s1 + $0x2c] sm:$0xf]
  %v28 = vld [vmem:[%s1 + $0x30] sm:$0xf]
  %v29 = vld [vmem:[%s1 + $0x34] sm:$0xf]
  %v30 = vld [vmem:[%s1 + $0x38] sm:$0xf]
  %v31 = vld [vmem:[%s1 + $0x3c] sm:$0xf]
  %v32 = vld [vmem:[%s1 + $0x40] sm:$0xf]
  %v33 = vld [vmem:[%s1 + $0x44] sm:$0xf]
  %v34 = vld [vmem:[%s1 + $0x48] sm:$0xf]
  %v35 = vld [vmem:[%s1 + $0x4c] sm:$0xf]
  %v36 = vld [vmem:[%s1 + $0x50] sm:$0xf]
  %v37 = vld [vmem:[%s1 + $0x54] sm:$0xf]
  %v38 = vld [vmem:[%s1 + $0x58] sm:$0xf]
  %v39 = vld [vmem:[%s1 + $0x5c] sm:$0xf]
  %v40 = vld [vmem:[%s1 + $0x60] sm:$0xf]
  %v41 = vld [vmem:[%s1 + $0x64] sm:$0xf]
  %v42 = vld [vmem:[%s1 + $0x68] sm:$0xf]
  %v43 = vld [vmem:[%s1 + $0x6c] sm:$0xf]
  %v44 = vld [vmem:[%s1 + $0x70] sm:$0xf]
  %v45 = vld [vmem:[%s1 + $0x74] sm:$0xf]
  %v46 = vld [vmem:[%s1 + $0x78] sm:$0xf]
  %v47 = vld [vmem:[%s1 + $0x7c] sm:$0xf]
  %v48 = vld [vmem:[%s1 + $0x80] sm:$0xf]
  %v49 = vld [vmem:[%s1 + $0x84] sm:$0xf]
  %v50 = vld [vmem:[%s1 + $0x88] sm:$0xf]
  %v51 = vld [vmem:[%s1 + $0x8c] sm:$0xf]
  %v52 = vld [vmem:[%s1 + $0x90] sm:$0xf]
  %v53 = vld [vmem:[%s1 + $0x94] sm:$0xf]
  %v54 = vld [vmem:[%s1 + $0x98] sm:$0xf]
  %v55 = vld [vmem:[%s1 + $0x9c] sm:$0xf]
  %v56 = vld [vmem:[%s1 + $0xa0] sm:$0xf]
  %v57 = vld [vmem:[%s1 + $0xa4] sm:$0xf]
  %v58 = vld [vmem:[%s1 + $0xa8] sm:$0xf]
  %v59 = vld [vmem:[%s1 + $0xac] sm:$0xf]
  %v60 = vld [vmem:[%s1 + $0xb0] sm:$0xf]
  %v61 = vld [vmem:[%s1 + $0xb4] sm:$0xf]
  %v62 = vld [vmem:[%s1 + $0xb8] sm:$0xf]
  %v63 = vld [vmem:[%s1 + $0xbc] sm:$0xf]
  %v64 = vld [vmem:[%s1 + $0xc0] sm:$0xf]
  %v65 = vld [vmem:[%s1 + $0xc4] sm:$0xf]
  %v66 = vld [vmem:[%s1 + $0xc8] sm:$0xf]
  %v67 = vld [vmem:[%s1 + $0xcc] sm:$0xf]
  %v68 = vld [vmem:[%s1 + $0xd0] sm:$0xf]
  %v69 = vld [vmem:[%s1 + $0xd4] sm:$0xf]
  %v70 = vld [vmem:[%s1 + $0xd8] sm:$0xf]
  %v71 = vld [vmem:[%s1 + $0xdc] sm:$0xf]
  %v72 = vld [vmem:[%s1 + $0xe0] sm:$0xf]
  %v73 = vld [vmem:[%s1 + $0xe4] sm:$0xf]
  %v74 = vld [vmem:[%s1 + $0xe8] sm:$0xf]
  %v75 = vld [vmem:[%s1 + $0xec] sm:$0xf]
  %v76 = vld [vmem:[%s1 + $0xf0] sm:$0xf]
  %v77 = vld [vmem:[%s1 + $0xf4] sm:$0xf]
  %v78 = vld [vmem:[%s1 + $0xf8] sm:$0xf]
  %v79 = vld [vmem:[%s1 + $0xfc] sm:$0xf]
  %v84 = vunpack.c.l.b16 %v12
  %v85 = vunpack.c.h.b16 %v12
  %v86 = vunpack.c.l.b16 %v13
  %v87 = vunpack.c.h.b16 %v13
  %v88 = vunpack.c.l.b16 %v14
  %v89 = vunpack.c.h.b16 %v14
  %v90 = vunpack.c.l.b16 %v15
  %v91 = vunpack.c.h.b16 %v15
  %v92 = vpack.c.b16 %v88, %v84
  %v93 = vpack.c.b16 %v89, %v85
  %v94 = vpack.c.b16 %v90, %v86
  %v95 = vpack.c.b16 %v91, %v87
  %v164 = vunpack.c.l.b16 %v16
  %v165 = vunpack.c.l.b16 %v17
  %v166 = vunpack.c.l.b16 %v18
  %v167 = vunpack.c.l.b16 %v19
  %v168 = vunpack.c.l.b16 %v20
  %v169 = vunpack.c.l.b16 %v21
  %v170 = vunpack.c.l.b16 %v22
  %v171 = vunpack.c.l.b16 %v23
  %v172 = vunpack.c.l.b16 %v24
  %v173 = vunpack.c.l.b16 %v25
  %v174 = vunpack.c.l.b16 %v26
  %v175 = vunpack.c.l.b16 %v27
  %v176 = vunpack.c.l.b16 %v28
  %v177 = vunpack.c.l.b16 %v29
  %v178 = vunpack.c.l.b16 %v30
  %v179 = vunpack.c.l.b16 %v31
  %v180 = vunpack.c.l.b16 %v32
  %v181 = vunpack.c.l.b16 %v33
  %v182 = vunpack.c.l.b16 %v34
  %v183 = vunpack.c.l.b16 %v35
  %v184 = vunpack.c.l.b16 %v36
  %v185 = vunpack.c.l.b16 %v37
  %v186 = vunpack.c.l.b16 %v38
  %v187 = vunpack.c.l.b16 %v39
  %v188 = vunpack.c.l.b16 %v40
  %v189 = vunpack.c.l.b16 %v41
  %v190 = vunpack.c.l.b16 %v42
  %v191 = vunpack.c.l.b16 %v43
  %v192 = vunpack.c.l.b16 %v44
  %v193 = vunpack.c.l.b16 %v45
  %v194 = vunpack.c.l.b16 %v46
  %v195 = vunpack.c.l.b16 %v47
  %v196 = vunpack.c.l.b16 %v48
  %v197 = vunpack.c.l.b16 %v49
  %v198 = vunpack.c.l.b16 %v50
  %v199 = vunpack.c.l.b16 %v51
  %v200 = vunpack.c.l.b16 %v52
  %v201 = vunpack.c.l.b16 %v53
  %v202 = vunpack.c.l.b16 %v54
  %v203 = vunpack.c.l.b16 %v55
  %v204 = vunpack.c.l.b16 %v56
  %v205 = vunpack.c.l.b16 %v57
  %v206 = vunpack.c.l.b16 %v58
  %v207 = vunpack.c.l.b16 %v59
  %v208 = vunpack.c.l.b16 %v60
  %v209 = vunpack.c.l.b16 %v61
  %v210 = vunpack.c.l.b16 %v62
  %v211 = vunpack.c.l.b16 %v63
  %v212 = vunpack.c.l.b16 %v64
  %v213 = vunpack.c.l.b16 %v65
  %v214 = vunpack.c.l.b16 %v66
  %v215 = vunpack.c.l.b16 %v67
  %v216 = vunpack.c.l.b16 %v68
  %v217 = vunpack.c.l.b16 %v69
  %v218 = vunpack.c.l.b16 %v70
  %v219 = vunpack.c.l.b16 %v71
  %v220 = vunpack.c.l.b16 %v72
  %v221 = vunpack.c.l.b16 %v73
  %v222 = vunpack.c.l.b16 %v74
  %v223 = vunpack.c.l.b16 %v75
  %v224 = vunpack.c.l.b16 %v76
  %v225 = vunpack.c.l.b16 %v77
  %v226 = vunpack.c.l.b16 %v78
  %v227 = vunpack.c.l.b16 %v79
  %v228 = vpack.c.b16 %v165, %v164
  %v229 = vpack.c.b16 %v167, %v166
  %v230 = vpack.c.b16 %v169, %v168
  %v231 = vpack.c.b16 %v171, %v170
  %v232 = vpack.c.b16 %v173, %v172
  %v233 = vpack.c.b16 %v175, %v174
  %v234 = vpack.c.b16 %v177, %v176
  %v235 = vpack.c.b16 %v179, %v178
  %v236 = vpack.c.b16 %v181, %v180
  %v237 = vpack.c.b16 %v183, %v182
  %v238 = vpack.c.b16 %v185, %v184
  %v239 = vpack.c.b16 %v187, %v186
  %v240 = vpack.c.b16 %v189, %v188
  %v241 = vpack.c.b16 %v191, %v190
  %v242 = vpack.c.b16 %v193, %v192
  %v243 = vpack.c.b16 %v195, %v194
  %v244 = vpack.c.b16 %v197, %v196
  %v245 = vpack.c.b16 %v199, %v198
  %v246 = vpack.c.b16 %v201, %v200
  %v247 = vpack.c.b16 %v203, %v202
  %v248 = vpack.c.b16 %v205, %v204
  %v249 = vpack.c.b16 %v207, %v206
  %v250 = vpack.c.b16 %v209, %v208
  %v251 = vpack.c.b16 %v211, %v210
  %v252 = vpack.c.b16 %v213, %v212
  %v253 = vpack.c.b16 %v215, %v214
  %v254 = vpack.c.b16 %v217, %v216
  %v255 = vpack.c.b16 %v219, %v218
  %v256 = vpack.c.b16 %v221, %v220
  %v257 = vpack.c.b16 %v223, %v222
  %v258 = vpack.c.b16 %v225, %v224
  %v259 = vpack.c.b16 %v227, %v226
  %292 = vmatprep.subr.bf16.mxu0 0
  %293 = vmatpush1.bf16.msra.mxu0 %v228
  %294 = vmatprep.subr.bf16.mxu0 0
  %295 = vmatpush1.bf16.msra.mxu0 %v229
  %296 = vmatprep.subr.bf16.mxu0 0
  %297 = vmatpush1.bf16.msra.mxu0 %v230
  %298 = vmatprep.subr.bf16.mxu0 0
  %299 = vmatpush1.bf16.msra.mxu0 %v231
  %300 = vmatprep.subr.bf16.mxu0 0
  %301 = vmatpush1.bf16.msra.mxu0 %v232
  %302 = vmatprep.subr.bf16.mxu0 0
  %303 = vmatpush1.bf16.msra.mxu0 %v233
  %304 = vmatprep.subr.bf16.mxu0 0
  %305 = vmatpush1.bf16.msra.mxu0 %v234
  %306 = vmatprep.subr.bf16.mxu0 0
  %307 = vmatpush1.bf16.msra.mxu0 %v235
  %308 = vmatprep.subr.bf16.mxu0 0
  %309 = vmatpush1.bf16.msra.mxu0 %v236
  %310 = vmatprep.subr.bf16.mxu0 0
  %311 = vmatpush1.bf16.msra.mxu0 %v237
  %312 = vmatprep.subr.bf16.mxu0 0
  %313 = vmatpush1.bf16.msra.mxu0 %v238
  %314 = vmatprep.subr.bf16.mxu0 0
  %315 = vmatpush1.bf16.msra.mxu0 %v239
  %316 = vmatprep.subr.bf16.mxu0 0
  %317 = vmatpush1.bf16.msra.mxu0 %v240
  %318 = vmatprep.subr.bf16.mxu0 0
  %319 = vmatpush1.bf16.msra.mxu0 %v241
  %320 = vmatprep.subr.bf16.mxu0 0
  %321 = vmatpush1.bf16.msra.mxu0 %v242
  %322 = vmatprep.subr.bf16.mxu0 0
  %323 = vmatpush1.bf16.msra.mxu0 %v243
  %324 = vmatprep.mubr.bf16.mxu0 %v93
  %325 = vmatmul.mubr.bf16.gmra.mrb[0].mxu0 %v92
  %v326 = vpop.f32.mrb[0].mxu0
  %v327 = vadd.f32 0.0, %v326
  %v328 = vpop.f32.mrb[0].mxu0
  %v329 = vpop.f32.mrb[0].mxu0
  %v330 = vadd.f32 0.0, %v329
  %v331 = vpop.f32.mrb[0].mxu0
  %332 = vdwg.mxu0
  %333 = vmatprep.subr.bf16.mxu0 0
  %334 = vmatpush1.bf16.msra.mxu0 %v244
  %335 = vmatprep.subr.bf16.mxu0 0
  %336 = vmatpush1.bf16.msra.mxu0 %v245
  %337 = vmatprep.subr.bf16.mxu0 0
  %338 = vmatpush1.bf16.msra.mxu0 %v246
  %339 = vmatprep.subr.bf16.mxu0 0
  %340 = vmatpush1.bf16.msra.mxu0 %v247
  %341 = vmatprep.subr.bf16.mxu0 0
  %342 = vmatpush1.bf16.msra.mxu0 %v248
  %343 = vmatprep.subr.bf16.mxu0 0
  %344 = vmatpush1.bf16.msra.mxu0 %v249
  %345 = vmatprep.subr.bf16.mxu0 0
  %346 = vmatpush1.bf16.msra.mxu0 %v250
  %347 = vmatprep.subr.bf16.mxu0 0
  %348 = vmatpush1.bf16.msra.mxu0 %v251
  %349 = vmatprep.subr.bf16.mxu0 0
  %350 = vmatpush1.bf16.msra.mxu0 %v252
  %351 = vmatprep.subr.bf16.mxu0 0
  %352 = vmatpush1.bf16.msra.mxu0 %v253
  %353 = vmatprep.subr.bf16.mxu0 0
  %354 = vmatpush1.bf16.msra.mxu0 %v254
  %355 = vmatprep.subr.bf16.mxu0 0
  %356 = vmatpush1.bf16.msra.mxu0 %v255
  %357 = vmatprep.subr.bf16.mxu0 0
  %358 = vmatpush1.bf16.msra.mxu0 %v256
  %359 = vmatprep.subr.bf16.mxu0 0
  %360 = vmatpush1.bf16.msra.mxu0 %v257
  %361 = vmatprep.subr.bf16.mxu0 0
  %362 = vmatpush1.bf16.msra.mxu0 %v258
  %363 = vmatprep.subr.bf16.mxu0 0
  %364 = vmatpush1.bf16.msra.mxu0 %v259
  %365 = vmatprep.mubr.bf16.mxu0 %v95
  %366 = vmatmul.mubr.bf16.gmra.mrb[0].mxu0 %v94
  %v367 = vpop.f32.mrb[0].mxu0
  %v368 = vadd.f32 %v327, %v367
  %v369 = vpop.f32.mrb[0].mxu0
  %v370 = vpop.f32.mrb[0].mxu0
  %v371 = vadd.f32 %v330, %v370
  %v372 = vpop.f32.mrb[0].mxu0
  %373 = vdwg.mxu0
  %v374 = vsub.f32 0.0, %v368
  %v375 = vsub.f32 0.0, %v371
  %v376 = vmul.f32 %v374, 1.442695
  %v377 = vpow.pop %v376
  %v378 = vmul.f32 %v375, 1.442695
  %v379 = vpow.pop %v378
  %v380 = vadd.f32 %v377, 1.0
  %v381 = vadd.f32 %v379, 1.0
  %v382 = vrcp.pop %v380
  %v383 = vmul.f32 1.0, %v382
  %v384 = vrcp.pop %v381
  %v385 = vmul.f32 1.0, %v384
  %386 = vst [vmem:[%s2] sm:$0xff] %v383
  %387 = vst [vmem:[%s2 + $0x8] sm:$0xff] %v385
  // Predicated region
  $region10: #{discriminator_forward.9} parent=0 // pred_check
    _
  $region11: #{discriminator_forward.9} parent=0 // pred_check_branch
    %389 = sbr.rel (0) target = $region13
  $region12: #{discriminator_forward.9} parent=0 // pred_region
    _
  $region13: #{discriminator_forward.9} parent=0 // pred_fallthru
    _
  // Predicated region
  $region14: #{discriminator_forward.9} parent=0 // pred_check
    _
  $region15: #{discriminator_forward.9} parent=0 // pred_check_branch
    %391 = sbr.rel (0) target = $region17
  $region16: #{discriminator_forward.9} parent=0 // pred_region
    _
  $region17: #{discriminator_forward.9} parent=0 // pred_fallthru
    _

</llo_original>
